<compile_context>
chip_gen: v7x
topology: tpu7x:2x2x1
jax: 0.10.0
libtpu: 0.0.40
codegen_flags: <defaults>
</compile_context>

<pallas_src>
import functools
import math

import jax
import jax.numpy as jnp
from jax.experimental import pallas as pl
from jax.experimental.pallas import tpu as pltpu

LN_EPS = 1e-5  # PyTorch nn.LayerNorm default


# ----------------------------------------------------------------------------
# In-kernel helpers (pure jnp/lax on VMEM-resident values)
# ----------------------------------------------------------------------------
def _ln(x, w, b):
    x = x.astype(jnp.float32)
    mu = jnp.mean(x, axis=-1, keepdims=True)
    var = jnp.mean(jnp.square(x - mu), axis=-1, keepdims=True)
    return (x - mu) * jax.lax.rsqrt(var + LN_EPS) * w + b


def _erf(x):
    # Abramowitz & Stegun 7.1.26: |error| < 1.5e-7 (~f32 eps).  Uses only
    # exp/abs/compare/select/mul/add, all of which lower cleanly in Mosaic,
    # while matching torch's exact-erf GELU at f32 precision.
    a1, a2, a3, a4, a5 = (0.254829592, -0.284496736, 1.421413741,
                          -1.453152027, 1.061405429)
    p = 0.3275911
    s = jnp.where(x >= 0.0, 1.0, -1.0).astype(jnp.float32)
    ax = jnp.abs(x)
    t = 1.0 / (1.0 + p * ax)
    poly = t * (a1 + t * (a2 + t * (a3 + t * (a4 + t * a5))))
    return s * (1.0 - poly * jnp.exp(-ax * ax))


def _gelu(x):
    return 0.5 * x * (1.0 + _erf(x * jnp.float32(1.0 / math.sqrt(2.0))))


def _mha(q, k, v, heads, dim_head):
    """softmax(q k^T / sqrt(dim_head)) v on lane-dense (L, heads*dim_head) tiles.

    Equivalent to torch's (q*s) @ (k*s).T with s = dim_head**-0.25 (scale applied
    once to q, hoisted out of the per-head loop).
    """
    q = q * jnp.float32(1.0 / math.sqrt(dim_head))
    outs = []
    for h in range(heads):  # static unroll; head slices are static lane offsets
        lo = h * dim_head
        hi = lo + dim_head
        # contract last dims directly -- no explicit k.T (no XLU transpose)
        s = jax.lax.dot_general(q[:, lo:hi], k[:, lo:hi],
                                (((1,), (1,)), ((), ())),
                                preferred_element_type=jnp.float32)
        s = s - jnp.max(s, axis=-1, keepdims=True)
        p = jnp.exp(s)
        p = p / jnp.sum(p, axis=-1, keepdims=True)  # exact softmax (matches torch)
        outs.append(jnp.dot(p, v[:, lo:hi], preferred_element_type=jnp.float32))
    return jnp.concatenate(outs, axis=-1)  # (L, heads*dim_head), lane-dense


# ----------------------------------------------------------------------------
# The single fused kernel: one grid step == one transformer layer
# ----------------------------------------------------------------------------
def _imr_kernel(
    # constant-index inputs (DMA'd once)
    allfeat_ref, xin_ref,
    f_ln0w_ref, f_ln0b_ref, f_w1_ref, f_b1_ref,
    f_ln1w_ref, f_ln1b_ref, f_w2_ref, f_b2_ref,
    nin_w_ref, nin_b_ref, pin_w_ref, pin_b_ref,
    nout_w_ref, nout_b_ref, pout_w_ref, pout_b_ref,
    # per-layer stacked weights (double-buffered, one layer per grid step)
    lnp_ref, win_ref, wo_ref, ffw2_ref,
    # output
    o_ref,
    # scratch (persist across grid steps)
    x_scr, lat_src, lat_tgt,
    *, heads, dim_head, nq, n_dis):
    layer = pl.program_id(0)
    inner = heads * dim_head
    dim = x_scr.shape[-1]
    ff_inner = win_ref.shape[2] - 6 * inner

    # ---- prologue (layer 0): feature_fusion -> latents; norm_in + proj_in ----
    @pl.when(layer == 0)
    def _prologue():
        h = _ln(allfeat_ref[...], f_ln0w_ref[...], f_ln0b_ref[...])
        h = _gelu(jnp.dot(h, f_w1_ref[...], preferred_element_type=jnp.float32)
                  + f_b1_ref[...])
        h = _ln(h, f_ln1w_ref[...], f_ln1b_ref[...])
        # Linear(dim -> nq*dim) + GELU, emitted per query slot so the latent
        # scratch keeps a clean (nq, dim) layout (no lane->sublane reshape).
        for qi in range(nq):
            lo = qi * dim
            slab = _gelu(jnp.dot(h, f_w2_ref[:, lo:lo + dim],
                                 preferred_element_type=jnp.float32)
                         + f_b2_ref[:, lo:lo + dim])          # (2, dim)
            lat_src[qi:qi + 1, :] = slab[0:1, :]
            lat_tgt[qi:qi + 1, :] = slab[1:2, :]
        xh = _ln(xin_ref[...], nin_w_ref[...], nin_b_ref[...])
        x_scr[...] = (jnp.dot(xh, pin_w_ref[...],
                              preferred_element_type=jnp.float32)
                      + pin_b_ref[...])

    # ---- one layer: attn1 (perceiver) + attn2 (self) + feed-forward ----------
    x = x_scr[...]                                            # (n1, dim)
    # disentangle layers attend to src latents, entangle layers to tgt latents
    t = (layer >= n_dis).astype(jnp.float32)
    lat = lat_src[...] * (1.0 - t) + lat_tgt[...] * t         # (nq, dim)

    lnp = lnp_ref[0]  # (8, dim): [a1.n1 w,b | a1.n2 w,b | a2.n1 w,b | ff.ln w,b]

    o_wq1, o_wkv1 = 0, inner
    o_wq2, o_wkv2 = 3 * inner, 4 * inner
    o_ffw1 = 6 * inner

    # attn1 = PerceiverAttention(latents=x_running, x=imr_latents) + residual.
    # torch: q = to_q(norm2(latents_arg)); kv = to_kv(cat(norm1(x_arg),
    # norm2(latents_arg))) -- here x_arg = imr latents, latents_arg = running x.
    lat_n = _ln(lat, lnp[0:1, :], lnp[1:2, :])
    x_n = _ln(x, lnp[2:3, :], lnp[3:4, :])
    q = jnp.dot(x_n, win_ref[0, :, o_wq1:o_wq1 + inner],
                preferred_element_type=jnp.float32)
    kv_in = jnp.concatenate([lat_n, x_n], axis=0)             # (nq+n1, dim)
    kv = jnp.dot(kv_in, win_ref[0, :, o_wkv1:o_wkv1 + 2 * inner],
                 preferred_element_type=jnp.float32)
    att = _mha(q, kv[:, :inner], kv[:, inner:], heads, dim_head)
    x = jnp.dot(att, wo_ref[0, :, 0:dim],
                preferred_element_type=jnp.float32) + x

    # attn2 = MultAttention (self attention) + residual
    xn = _ln(x, lnp[4:5, :], lnp[5:6, :])
    q = jnp.dot(xn, win_ref[0, :, o_wq2:o_wq2 + inner],
                preferred_element_type=jnp.float32)
    kv = jnp.dot(xn, win_ref[0, :, o_wkv2:o_wkv2 + 2 * inner],
                 preferred_element_type=jnp.float32)
    att = _mha(q, kv[:, :inner], kv[:, inner:], heads, dim_head)
    x = jnp.dot(att, wo_ref[0, :, dim:2 * dim],
                preferred_element_type=jnp.float32) + x

    # feed-forward (LN -> Linear -> GELU -> Linear, bias-free) + residual
    hf = _ln(x, lnp[6:7, :], lnp[7:8, :])
    hf = _gelu(jnp.dot(hf, win_ref[0, :, o_ffw1:o_ffw1 + ff_inner],
                       preferred_element_type=jnp.float32))
    x = jnp.dot(hf, ffw2_ref[0], preferred_element_type=jnp.float32) + x

    x_scr[...] = x

    # ---- epilogue (last layer): norm_out + proj_out (lane-dense padded) ------
    @pl.when(layer == pl.num_programs(0) - 1)
    def _epilogue():
        ho = _ln(x, nout_w_ref[...], nout_b_ref[...])
        o_ref[...] = (jnp.dot(ho, pout_w_ref[...],
                              preferred_element_type=jnp.float32)
                      + pout_b_ref[...]).astype(o_ref.dtype)


# ----------------------------------------------------------------------------
# Wrapper: weight packing + single pallas_call
# ----------------------------------------------------------------------------
def _r2(v):
    # 1-D per-channel param -> (1, D) so it broadcasts on the lane axis in-kernel
    return v.reshape(1, -1)


def _stack_layer_params(layers):
    """Stack per-layer params along a leading layer axis, packed into 4 arrays."""
    lnp, win, wo, ffw2 = [], [], [], []
    for lyr in layers:
        a1, a2, ff = lyr["attn1"], lyr["attn2"], lyr["ff"]
        lnp.append(jnp.stack([a1["norm1"]["w"], a1["norm1"]["b"],
                              a1["norm2"]["w"], a1["norm2"]["b"],
                              a2["norm1"]["w"], a2["norm1"]["b"],
                              ff["ln"]["w"], ff["ln"]["b"]], axis=0))
        win.append(jnp.concatenate([a1["wq"], a1["wkv"],
                                    a2["wq"], a2["wkv"], ff["w1"]], axis=1))
        wo.append(jnp.concatenate([a1["wo"], a2["wo"]], axis=1))
        ffw2.append(ff["w2"])
    return (jnp.stack(lnp), jnp.stack(win), jnp.stack(wo), jnp.stack(ffw2))


def imr_forward(params, cfg, x, src_landmark, tgt_landmark,
                src_txt_embed, tgt_txt_embed):
    dim = cfg["dim"]
    heads = cfg["heads"]
    dim_head = cfg["dim_head"]
    nq = cfg["num_queries"]
    B, n1, emb = x.shape
    assert B == 1, "IMR forward processes a single image-feature batch"

    src_feature = jnp.concatenate([src_landmark, src_txt_embed], axis=1)
    tgt_feature = jnp.concatenate([tgt_landmark, tgt_txt_embed], axis=1)
    all_feature = jnp.concatenate([src_feature, tgt_feature], axis=0)
    # TODO(synk): the fused kernel assumes one src + one tgt latent row
    # (all_feature.shape[0] == 2), i.e. torch's x.repeat(tgt_latents.shape[0],..)
    # is the identity -- exactly what this module's forward produces here.
    assert all_feature.shape[0] == 2

    layers = list(params["disentangle"]) + list(params["entangle"])
    n_dis = len(params["disentangle"])
    n_layers = len(layers)
    assert n_layers >= 1
    lnp, win, wo, ffw2 = _stack_layer_params(layers)

    # pad proj_out to a 128-lane multiple -> unmasked lane-dense output stores
    emb_pad = ((emb + 127) // 128) * 128
    pout_w, pout_b = params["proj_out_w"], params["proj_out_b"]
    if emb_pad != emb:
        pout_w = jnp.pad(pout_w, ((0, 0), (0, emb_pad - emb)))
        pout_b = jnp.pad(pout_b, ((0, emb_pad - emb),))

    ffp = params["feature_fusion"]
    const_args = (
        all_feature, x[0],
        _r2(ffp["ln0"]["w"]), _r2(ffp["ln0"]["b"]), ffp["w1"], _r2(ffp["b1"]),
        _r2(ffp["ln1"]["w"]), _r2(ffp["ln1"]["b"]), ffp["w2"], _r2(ffp["b2"]),
        _r2(params["norm_in"]["w"]), _r2(params["norm_in"]["b"]),
        params["proj_in_w"], _r2(params["proj_in_b"]),
        _r2(params["norm_out"]["w"]), _r2(params["norm_out"]["b"]),
        pout_w, _r2(pout_b),
    )

    def const_spec(a):
        nd = a.ndim
        return pl.BlockSpec(a.shape, lambda l, _nd=nd: (0,) * _nd)

    def layer_spec(a):
        return pl.BlockSpec((1,) + a.shape[1:], lambda l: (l, 0, 0))

    in_specs = ([const_spec(a) for a in const_args]
                + [layer_spec(a) for a in (lnp, win, wo, ffw2)])

    out = pl.pallas_call(
        functools.partial(_imr_kernel, heads=heads, dim_head=dim_head,
                          nq=nq, n_dis=n_dis),
        grid=(n_layers,),
        out_shape=jax.ShapeDtypeStruct((n1, emb_pad), x.dtype),
        in_specs=in_specs,
        out_specs=pl.BlockSpec((n1, emb_pad), lambda l: (0, 0)),
        scratch_shapes=[pltpu.VMEM((n1, dim), jnp.float32),   # running x
                        pltpu.VMEM((nq, dim), jnp.float32),   # src latents
                        pltpu.VMEM((nq, dim), jnp.float32)],  # tgt latents
        compiler_params=pltpu.CompilerParams(
            dimension_semantics=("arbitrary",)),
    )(*const_args, lnp, win, wo, ffw2)

    return out[:, :emb].reshape(1, n1, emb)


# ----------------------------------------------------------------------------
# Deterministic parameter init (synthetic; matches module shapes)
# ----------------------------------------------------------------------------
def init_params(key, *, dim, dim_head, heads, num_queries, embedding_dim, txt_dim,
                ff_mult, erase_layer_num, drive_layer_num):
    inner = dim_head * heads
    keys = iter(jax.random.split(key, 256))

    def w(shape):
        return jax.random.normal(next(keys), shape, jnp.float32) * 0.02

    def ln(d):
        return {"w": jnp.ones((d,), jnp.float32), "b": jnp.zeros((d,), jnp.float32)}

    def perceiver_p():
        return {"norm1": ln(dim), "norm2": ln(dim),
                "wq": w((dim, inner)), "wkv": w((dim, 2 * inner)),
                "wo": w((inner, dim))}

    def mult_p():
        return {"norm1": ln(dim),
                "wq": w((dim, inner)), "wkv": w((dim, 2 * inner)),
                "wo": w((inner, dim))}

    def ff_p():
        inner_ff = int(dim * ff_mult)
        return {"ln": ln(dim), "w1": w((dim, inner_ff)), "w2": w((inner_ff, dim))}

    return {
        "feature_fusion": {
            "ln0": ln(embedding_dim + txt_dim),
            "w1": w((embedding_dim + txt_dim, dim)),
            "b1": jnp.zeros((dim,), jnp.float32),
            "ln1": ln(dim),
            "w2": w((dim, num_queries * dim)),
            "b2": jnp.zeros((num_queries * dim,), jnp.float32),
        },
        "norm_in": ln(embedding_dim),
        "proj_in_w": w((embedding_dim, dim)),
        "proj_in_b": jnp.zeros((dim,), jnp.float32),
        "proj_out_w": w((dim, embedding_dim)),
        "proj_out_b": jnp.zeros((embedding_dim,), jnp.float32),
        "norm_out": ln(dim),
        "disentangle": [{"attn1": perceiver_p(), "attn2": mult_p(), "ff": ff_p()}
                        for _ in range(erase_layer_num)],
        "entangle": [{"attn1": perceiver_p(), "attn2": mult_p(), "ff": ff_p()}
                     for _ in range(drive_layer_num)],
    }


# ----------------------------------------------------------------------------
if __name__ == "__main__":
    cfg = dict(dim=128, dim_head=32, heads=4, num_queries=4, embedding_dim=64,
               txt_dim=64, ff_mult=2, erase_layer_num=2, drive_layer_num=2)

    key = jax.random.PRNGKey(0)
    kp, kx, k1, k2, k3, k4 = jax.random.split(key, 6)
    params = init_params(kp, **cfg)

    n1 = 8  # image feature sequence length
    x = jax.random.normal(kx, (1, n1, cfg["embedding_dim"]), jnp.float32)
    src_landmark = jax.random.normal(k1, (1, cfg["embedding_dim"]), jnp.float32)
    tgt_landmark = jax.random.normal(k2, (1, cfg["embedding_dim"]), jnp.float32)
    src_txt_embed = jax.random.normal(k3, (1, cfg["txt_dim"]), jnp.float32)
    tgt_txt_embed = jax.random.normal(k4, (1, cfg["txt_dim"]), jnp.float32)

    out = imr_forward(params, cfg, x, src_landmark, tgt_landmark,
                      src_txt_embed, tgt_txt_embed)
    jax.block_until_ready(out)
    assert out.shape == (1, n1, cfg["embedding_dim"]), out.shape
    assert jnp.all(jnp.isfinite(out))
    print("KERNEL_OK")
</pallas_src>

<mosaic_0001>
module attributes {stable_mosaic.version = 11 : i64} {
  func.func @_imr_kernel(%arg0: i32, %arg1: memref<2x128xf32, #tpu.memory_space<vmem>>, %arg2: memref<8x64xf32, #tpu.memory_space<vmem>>, %arg3: memref<1x128xf32, #tpu.memory_space<vmem>>, %arg4: memref<1x128xf32, #tpu.memory_space<vmem>>, %arg5: memref<128x128xf32, #tpu.memory_space<vmem>>, %arg6: memref<1x128xf32, #tpu.memory_space<vmem>>, %arg7: memref<1x128xf32, #tpu.memory_space<vmem>>, %arg8: memref<1x128xf32, #tpu.memory_space<vmem>>, %arg9: memref<128x512xf32, #tpu.memory_space<vmem>>, %arg10: memref<1x512xf32, #tpu.memory_space<vmem>>, %arg11: memref<1x64xf32, #tpu.memory_space<vmem>>, %arg12: memref<1x64xf32, #tpu.memory_space<vmem>>, %arg13: memref<64x128xf32, #tpu.memory_space<vmem>>, %arg14: memref<1x128xf32, #tpu.memory_space<vmem>>, %arg15: memref<1x128xf32, #tpu.memory_space<vmem>>, %arg16: memref<1x128xf32, #tpu.memory_space<vmem>>, %arg17: memref<128x128xf32, #tpu.memory_space<vmem>>, %arg18: memref<1x128xf32, #tpu.memory_space<vmem>>, %arg19: memref<1x8x128xf32, #tpu.memory_space<vmem>>, %arg20: memref<1x128x1024xf32, #tpu.memory_space<vmem>>, %arg21: memref<1x128x256xf32, #tpu.memory_space<vmem>>, %arg22: memref<1x256x128xf32, #tpu.memory_space<vmem>>, %arg23: memref<8x128xf32, #tpu.memory_space<vmem>>, %arg24: memref<8x128xf32, #tpu.memory_space<vmem>>, %arg25: memref<4x128xf32, #tpu.memory_space<vmem>>, %arg26: memref<4x128xf32, #tpu.memory_space<vmem>>) attributes {dimension_semantics = [#tpu.dimension_semantics<arbitrary>], iteration_bounds = array<i64: 4>, scalar_prefetch = 0 : i64, scratch_operands = 3 : i64, tpu.core_type = #tpu.core_type<tc>, window_params = [{pipeline_mode = #tpu.pipeline_mode<synchronous>, transform_indices = @transform_0, window_bounds = array<i64: 2, 128>}, {pipeline_mode = #tpu.pipeline_mode<synchronous>, transform_indices = @transform_1, window_bounds = array<i64: 8, 64>}, {pipeline_mode = #tpu.pipeline_mode<synchronous>, transform_indices = @transform_2, window_bounds = array<i64: 1, 128>}, {pipeline_mode = #tpu.pipeline_mode<synchronous>, transform_indices = @transform_3, window_bounds = array<i64: 1, 128>}, {pipeline_mode = #tpu.pipeline_mode<synchronous>, transform_indices = @transform_4, window_bounds = array<i64: 128, 128>}, {pipeline_mode = #tpu.pipeline_mode<synchronous>, transform_indices = @transform_5, window_bounds = array<i64: 1, 128>}, {pipeline_mode = #tpu.pipeline_mode<synchronous>, transform_indices = @transform_6, window_bounds = array<i64: 1, 128>}, {pipeline_mode = #tpu.pipeline_mode<synchronous>, transform_indices = @transform_7, window_bounds = array<i64: 1, 128>}, {pipeline_mode = #tpu.pipeline_mode<synchronous>, transform_indices = @transform_8, window_bounds = array<i64: 128, 512>}, {pipeline_mode = #tpu.pipeline_mode<synchronous>, transform_indices = @transform_9, window_bounds = array<i64: 1, 512>}, {pipeline_mode = #tpu.pipeline_mode<synchronous>, transform_indices = @transform_10, window_bounds = array<i64: 1, 64>}, {pipeline_mode = #tpu.pipeline_mode<synchronous>, transform_indices = @transform_11, window_bounds = array<i64: 1, 64>}, {pipeline_mode = #tpu.pipeline_mode<synchronous>, transform_indices = @transform_12, window_bounds = array<i64: 64, 128>}, {pipeline_mode = #tpu.pipeline_mode<synchronous>, transform_indices = @transform_13, window_bounds = array<i64: 1, 128>}, {pipeline_mode = #tpu.pipeline_mode<synchronous>, transform_indices = @transform_14, window_bounds = array<i64: 1, 128>}, {pipeline_mode = #tpu.pipeline_mode<synchronous>, transform_indices = @transform_15, window_bounds = array<i64: 1, 128>}, {pipeline_mode = #tpu.pipeline_mode<synchronous>, transform_indices = @transform_16, window_bounds = array<i64: 128, 128>}, {pipeline_mode = #tpu.pipeline_mode<synchronous>, transform_indices = @transform_17, window_bounds = array<i64: 1, 128>}, {transform_indices = @transform_18, window_bounds = array<i64: 1, 8, 128>}, {transform_indices = @transform_19, window_bounds = array<i64: 1, 128, 1024>}, {transform_indices = @transform_20, window_bounds = array<i64: 1, 128, 256>}, {transform_indices = @transform_21, window_bounds = array<i64: 1, 256, 128>}, {pipeline_mode = #tpu.pipeline_mode<synchronous>, transform_indices = @transform_22, window_bounds = array<i64: 8, 128>}]} {
    %c0_i32 = arith.constant 0 : i32
    %0 = arith.cmpi eq, %arg0, %c0_i32 : i32
    %1 = arith.extui %0 : i1 to i32
    %c0_i32_0 = arith.constant 0 : i32
    %2 = arith.cmpi ne, %1, %c0_i32_0 : i32
    scf.if %2 {
      %c0_110 = arith.constant 0 : index
      %c0_111 = arith.constant 0 : index
      %308 = vector.load %arg1[%c0_110, %c0_111] : memref<2x128xf32, #tpu.memory_space<vmem>>, vector<2x128xf32>
      %c0_112 = arith.constant 0 : index
      %c0_113 = arith.constant 0 : index
      %309 = vector.load %arg3[%c0_112, %c0_113] : memref<1x128xf32, #tpu.memory_space<vmem>>, vector<1x128xf32>
      %c0_114 = arith.constant 0 : index
      %c0_115 = arith.constant 0 : index
      %310 = vector.load %arg4[%c0_114, %c0_115] : memref<1x128xf32, #tpu.memory_space<vmem>>, vector<1x128xf32>
      %cst_116 = arith.constant dense<0.000000e+00> : vector<2xf32>
      %311 = vector.multi_reduction <add>, %308, %cst_116 [1] : vector<2x128xf32> to vector<2xf32>
      %312 = vector.shape_cast %311 : vector<2xf32> to vector<2x1xf32>
      %cst_117 = arith.constant 1.280000e+02 : f32
      %313 = vector.broadcast %cst_117 : f32 to vector<2x1xf32>
      %314 = arith.divf %312, %313 : vector<2x1xf32>
      %315 = vector.broadcast %314 : vector<2x1xf32> to vector<2x128xf32>
      %316 = arith.subf %308, %315 : vector<2x128xf32>
      %317 = arith.mulf %316, %316 : vector<2x128xf32>
      %cst_118 = arith.constant dense<0.000000e+00> : vector<2xf32>
      %318 = vector.multi_reduction <add>, %317, %cst_118 [1] : vector<2x128xf32> to vector<2xf32>
      %319 = vector.shape_cast %318 : vector<2xf32> to vector<2x1xf32>
      %cst_119 = arith.constant 1.280000e+02 : f32
      %320 = vector.broadcast %cst_119 : f32 to vector<2x1xf32>
      %321 = arith.divf %319, %320 : vector<2x1xf32>
      %322 = vector.broadcast %314 : vector<2x1xf32> to vector<2x128xf32>
      %323 = arith.subf %308, %322 : vector<2x128xf32>
      %cst_120 = arith.constant 9.99999974E-6 : f32
      %324 = vector.broadcast %cst_120 : f32 to vector<2x1xf32>
      %325 = arith.addf %321, %324 : vector<2x1xf32>
      %326 = math.rsqrt %325 : vector<2x1xf32>
      %327 = vector.broadcast %326 : vector<2x1xf32> to vector<2x128xf32>
      %328 = arith.mulf %323, %327 : vector<2x128xf32>
      %329 = vector.broadcast %309 : vector<1x128xf32> to vector<2x128xf32>
      %330 = arith.mulf %328, %329 : vector<2x128xf32>
      %331 = vector.broadcast %310 : vector<1x128xf32> to vector<2x128xf32>
      %332 = arith.addf %330, %331 : vector<2x128xf32>
      %c0_121 = arith.constant 0 : index
      %c0_122 = arith.constant 0 : index
      %333 = vector.load %arg5[%c0_121, %c0_122] : memref<128x128xf32, #tpu.memory_space<vmem>>, vector<128x128xf32>
      %cst_123 = arith.constant dense<0.000000e+00> : vector<2x128xf32>
      %334 = tpu.matmul %332, %333, %cst_123 {dimension_numbers = #tpu.dot_dimension_numbers<[1], [0], [0], [1], [0, 0, 1, 1], [], []>} : vector<2x128xf32>, vector<128x128xf32>, vector<2x128xf32> -> vector<2x128xf32>
      %c0_124 = arith.constant 0 : index
      %c0_125 = arith.constant 0 : index
      %335 = vector.load %arg6[%c0_124, %c0_125] : memref<1x128xf32, #tpu.memory_space<vmem>>, vector<1x128xf32>
      %336 = vector.broadcast %335 : vector<1x128xf32> to vector<2x128xf32>
      %337 = arith.addf %334, %336 : vector<2x128xf32>
      %cst_126 = arith.constant 5.000000e-01 : f32
      %338 = vector.broadcast %cst_126 : f32 to vector<2x128xf32>
      %339 = arith.mulf %338, %337 : vector<2x128xf32>
      %cst_127 = arith.constant 0.707106769 : f32
      %340 = vector.broadcast %cst_127 : f32 to vector<2x128xf32>
      %341 = arith.mulf %337, %340 : vector<2x128xf32>
      %cst_128 = arith.constant 0.000000e+00 : f32
      %342 = vector.broadcast %cst_128 : f32 to vector<2x128xf32>
      %343 = arith.cmpf oge, %341, %342 : vector<2x128xf32>
      %cst_129 = arith.constant 1.000000e+00 : f32
      %cst_130 = arith.constant -1.000000e+00 : f32
      %344 = vector.broadcast %cst_129 : f32 to vector<2x128xf32>
      %345 = vector.broadcast %cst_130 : f32 to vector<2x128xf32>
      %346 = arith.select %343, %344, %345 : vector<2x128xi1>, vector<2x128xf32>
      %347 = math.absf %341 : vector<2x128xf32>
      %cst_131 = arith.constant 0.327591091 : f32
      %348 = vector.broadcast %cst_131 : f32 to vector<2x128xf32>
      %349 = arith.mulf %348, %347 : vector<2x128xf32>
      %cst_132 = arith.constant 1.000000e+00 : f32
      %350 = vector.broadcast %cst_132 : f32 to vector<2x128xf32>
      %351 = arith.addf %350, %349 : vector<2x128xf32>
      %cst_133 = arith.constant 1.000000e+00 : f32
      %352 = vector.broadcast %cst_133 : f32 to vector<2x128xf32>
      %353 = arith.divf %352, %351 : vector<2x128xf32>
      %cst_134 = arith.constant 1.06140542 : f32
      %354 = vector.broadcast %cst_134 : f32 to vector<2x128xf32>
      %355 = arith.mulf %353, %354 : vector<2x128xf32>
      %cst_135 = arith.constant -1.45315206 : f32
      %356 = vector.broadcast %cst_135 : f32 to vector<2x128xf32>
      %357 = arith.addf %356, %355 : vector<2x128xf32>
      %358 = arith.mulf %353, %357 : vector<2x128xf32>
      %cst_136 = arith.constant 1.42141378 : f32
      %359 = vector.broadcast %cst_136 : f32 to vector<2x128xf32>
      %360 = arith.addf %359, %358 : vector<2x128xf32>
      %361 = arith.mulf %353, %360 : vector<2x128xf32>
      %cst_137 = arith.constant -0.284496725 : f32
      %362 = vector.broadcast %cst_137 : f32 to vector<2x128xf32>
      %363 = arith.addf %362, %361 : vector<2x128xf32>
      %364 = arith.mulf %353, %363 : vector<2x128xf32>
      %cst_138 = arith.constant 0.254829586 : f32
      %365 = vector.broadcast %cst_138 : f32 to vector<2x128xf32>
      %366 = arith.addf %365, %364 : vector<2x128xf32>
      %367 = arith.mulf %353, %366 : vector<2x128xf32>
      %cst_139 = arith.constant 0.000000e+00 : f32
      %368 = vector.broadcast %cst_139 : f32 to vector<2x128xf32>
      %369 = arith.subf %368, %347 : vector<2x128xf32>
      %370 = arith.mulf %369, %347 : vector<2x128xf32>
      %371 = math.exp %370 : vector<2x128xf32>
      %372 = arith.mulf %367, %371 : vector<2x128xf32>
      %cst_140 = arith.constant 1.000000e+00 : f32
      %373 = vector.broadcast %cst_140 : f32 to vector<2x128xf32>
      %374 = arith.subf %373, %372 : vector<2x128xf32>
      %375 = arith.mulf %346, %374 : vector<2x128xf32>
      %cst_141 = arith.constant 1.000000e+00 : f32
      %376 = vector.broadcast %cst_141 : f32 to vector<2x128xf32>
      %377 = arith.addf %376, %375 : vector<2x128xf32>
      %378 = arith.mulf %339, %377 : vector<2x128xf32>
      %c0_142 = arith.constant 0 : index
      %c0_143 = arith.constant 0 : index
      %379 = vector.load %arg7[%c0_142, %c0_143] : memref<1x128xf32, #tpu.memory_space<vmem>>, vector<1x128xf32>
      %c0_144 = arith.constant 0 : index
      %c0_145 = arith.constant 0 : index
      %380 = vector.load %arg8[%c0_144, %c0_145] : memref<1x128xf32, #tpu.memory_space<vmem>>, vector<1x128xf32>
      %cst_146 = arith.constant dense<0.000000e+00> : vector<2xf32>
      %381 = vector.multi_reduction <add>, %378, %cst_146 [1] : vector<2x128xf32> to vector<2xf32>
      %382 = vector.shape_cast %381 : vector<2xf32> to vector<2x1xf32>
      %cst_147 = arith.constant 1.280000e+02 : f32
      %383 = vector.broadcast %cst_147 : f32 to vector<2x1xf32>
      %384 = arith.divf %382, %383 : vector<2x1xf32>
      %385 = vector.broadcast %384 : vector<2x1xf32> to vector<2x128xf32>
      %386 = arith.subf %378, %385 : vector<2x128xf32>
      %387 = arith.mulf %386, %386 : vector<2x128xf32>
      %cst_148 = arith.constant dense<0.000000e+00> : vector<2xf32>
      %388 = vector.multi_reduction <add>, %387, %cst_148 [1] : vector<2x128xf32> to vector<2xf32>
      %389 = vector.shape_cast %388 : vector<2xf32> to vector<2x1xf32>
      %cst_149 = arith.constant 1.280000e+02 : f32
      %390 = vector.broadcast %cst_149 : f32 to vector<2x1xf32>
      %391 = arith.divf %389, %390 : vector<2x1xf32>
      %392 = vector.broadcast %384 : vector<2x1xf32> to vector<2x128xf32>
      %393 = arith.subf %378, %392 : vector<2x128xf32>
      %cst_150 = arith.constant 9.99999974E-6 : f32
      %394 = vector.broadcast %cst_150 : f32 to vector<2x1xf32>
      %395 = arith.addf %391, %394 : vector<2x1xf32>
      %396 = math.rsqrt %395 : vector<2x1xf32>
      %397 = vector.broadcast %396 : vector<2x1xf32> to vector<2x128xf32>
      %398 = arith.mulf %393, %397 : vector<2x128xf32>
      %399 = vector.broadcast %379 : vector<1x128xf32> to vector<2x128xf32>
      %400 = arith.mulf %398, %399 : vector<2x128xf32>
      %401 = vector.broadcast %380 : vector<1x128xf32> to vector<2x128xf32>
      %402 = arith.addf %400, %401 : vector<2x128xf32>
      %c0_151 = arith.constant 0 : index
      %c0_152 = arith.constant 0 : index
      %403 = vector.load %arg9[%c0_151, %c0_152] : memref<128x512xf32, #tpu.memory_space<vmem>>, vector<128x128xf32>
      %cst_153 = arith.constant dense<0.000000e+00> : vector<2x128xf32>
      %404 = tpu.matmul %402, %403, %cst_153 {dimension_numbers = #tpu.dot_dimension_numbers<[1], [0], [0], [1], [0, 0, 1, 1], [], []>} : vector<2x128xf32>, vector<128x128xf32>, vector<2x128xf32> -> vector<2x128xf32>
      %c0_154 = arith.constant 0 : index
      %c0_155 = arith.constant 0 : index
      %405 = vector.load %arg10[%c0_154, %c0_155] : memref<1x512xf32, #tpu.memory_space<vmem>>, vector<1x128xf32>
      %406 = vector.broadcast %405 : vector<1x128xf32> to vector<2x128xf32>
      %407 = arith.addf %404, %406 : vector<2x128xf32>
      %cst_156 = arith.constant 5.000000e-01 : f32
      %408 = vector.broadcast %cst_156 : f32 to vector<2x128xf32>
      %409 = arith.mulf %408, %407 : vector<2x128xf32>
      %cst_157 = arith.constant 0.707106769 : f32
      %410 = vector.broadcast %cst_157 : f32 to vector<2x128xf32>
      %411 = arith.mulf %407, %410 : vector<2x128xf32>
      %cst_158 = arith.constant 0.000000e+00 : f32
      %412 = vector.broadcast %cst_158 : f32 to vector<2x128xf32>
      %413 = arith.cmpf oge, %411, %412 : vector<2x128xf32>
      %cst_159 = arith.constant 1.000000e+00 : f32
      %cst_160 = arith.constant -1.000000e+00 : f32
      %414 = vector.broadcast %cst_159 : f32 to vector<2x128xf32>
      %415 = vector.broadcast %cst_160 : f32 to vector<2x128xf32>
      %416 = arith.select %413, %414, %415 : vector<2x128xi1>, vector<2x128xf32>
      %417 = math.absf %411 : vector<2x128xf32>
      %cst_161 = arith.constant 0.327591091 : f32
      %418 = vector.broadcast %cst_161 : f32 to vector<2x128xf32>
      %419 = arith.mulf %418, %417 : vector<2x128xf32>
      %cst_162 = arith.constant 1.000000e+00 : f32
      %420 = vector.broadcast %cst_162 : f32 to vector<2x128xf32>
      %421 = arith.addf %420, %419 : vector<2x128xf32>
      %cst_163 = arith.constant 1.000000e+00 : f32
      %422 = vector.broadcast %cst_163 : f32 to vector<2x128xf32>
      %423 = arith.divf %422, %421 : vector<2x128xf32>
      %cst_164 = arith.constant 1.06140542 : f32
      %424 = vector.broadcast %cst_164 : f32 to vector<2x128xf32>
      %425 = arith.mulf %423, %424 : vector<2x128xf32>
      %cst_165 = arith.constant -1.45315206 : f32
      %426 = vector.broadcast %cst_165 : f32 to vector<2x128xf32>
      %427 = arith.addf %426, %425 : vector<2x128xf32>
      %428 = arith.mulf %423, %427 : vector<2x128xf32>
      %cst_166 = arith.constant 1.42141378 : f32
      %429 = vector.broadcast %cst_166 : f32 to vector<2x128xf32>
      %430 = arith.addf %429, %428 : vector<2x128xf32>
      %431 = arith.mulf %423, %430 : vector<2x128xf32>
      %cst_167 = arith.constant -0.284496725 : f32
      %432 = vector.broadcast %cst_167 : f32 to vector<2x128xf32>
      %433 = arith.addf %432, %431 : vector<2x128xf32>
      %434 = arith.mulf %423, %433 : vector<2x128xf32>
      %cst_168 = arith.constant 0.254829586 : f32
      %435 = vector.broadcast %cst_168 : f32 to vector<2x128xf32>
      %436 = arith.addf %435, %434 : vector<2x128xf32>
      %437 = arith.mulf %423, %436 : vector<2x128xf32>
      %cst_169 = arith.constant 0.000000e+00 : f32
      %438 = vector.broadcast %cst_169 : f32 to vector<2x128xf32>
      %439 = arith.subf %438, %417 : vector<2x128xf32>
      %440 = arith.mulf %439, %417 : vector<2x128xf32>
      %441 = math.exp %440 : vector<2x128xf32>
      %442 = arith.mulf %437, %441 : vector<2x128xf32>
      %cst_170 = arith.constant 1.000000e+00 : f32
      %443 = vector.broadcast %cst_170 : f32 to vector<2x128xf32>
      %444 = arith.subf %443, %442 : vector<2x128xf32>
      %445 = arith.mulf %416, %444 : vector<2x128xf32>
      %cst_171 = arith.constant 1.000000e+00 : f32
      %446 = vector.broadcast %cst_171 : f32 to vector<2x128xf32>
      %447 = arith.addf %446, %445 : vector<2x128xf32>
      %448 = arith.mulf %409, %447 : vector<2x128xf32>
      %449 = vector.extract_strided_slice %448 {offsets = [0, 0], sizes = [1, 128], strides = [1, 1]} : vector<2x128xf32> to vector<1x128xf32>
      %c0_172 = arith.constant 0 : index
      %c0_173 = arith.constant 0 : index
      %450 = vector.load %arg25[%c0_172, %c0_173] : memref<4x128xf32, #tpu.memory_space<vmem>>, vector<1x128xf32>
      tpu.vector_store %arg25[%c0_172, %c0_173], %449 {strides = array<i32>} : memref<4x128xf32, #tpu.memory_space<vmem>>, vector<1x128xf32>,
      %451 = vector.extract_strided_slice %448 {offsets = [1, 0], sizes = [1, 128], strides = [1, 1]} : vector<2x128xf32> to vector<1x128xf32>
      %c0_174 = arith.constant 0 : index
      %c0_175 = arith.constant 0 : index
      %452 = vector.load %arg26[%c0_174, %c0_175] : memref<4x128xf32, #tpu.memory_space<vmem>>, vector<1x128xf32>
      tpu.vector_store %arg26[%c0_174, %c0_175], %451 {strides = array<i32>} : memref<4x128xf32, #tpu.memory_space<vmem>>, vector<1x128xf32>,
      %c0_176 = arith.constant 0 : index
      %c128_177 = arith.constant 128 : index
      %453 = vector.load %arg9[%c0_176, %c128_177] : memref<128x512xf32, #tpu.memory_space<vmem>>, vector<128x128xf32>
      %cst_178 = arith.constant dense<0.000000e+00> : vector<2x128xf32>
      %454 = tpu.matmul %402, %453, %cst_178 {dimension_numbers = #tpu.dot_dimension_numbers<[1], [0], [0], [1], [0, 0, 1, 1], [], []>} : vector<2x128xf32>, vector<128x128xf32>, vector<2x128xf32> -> vector<2x128xf32>
      %c0_179 = arith.constant 0 : index
      %c128_180 = arith.constant 128 : index
      %455 = vector.load %arg10[%c0_179, %c128_180] : memref<1x512xf32, #tpu.memory_space<vmem>>, vector<1x128xf32>
      %456 = vector.broadcast %455 : vector<1x128xf32> to vector<2x128xf32>
      %457 = arith.addf %454, %456 : vector<2x128xf32>
      %cst_181 = arith.constant 5.000000e-01 : f32
      %458 = vector.broadcast %cst_181 : f32 to vector<2x128xf32>
      %459 = arith.mulf %458, %457 : vector<2x128xf32>
      %cst_182 = arith.constant 0.707106769 : f32
      %460 = vector.broadcast %cst_182 : f32 to vector<2x128xf32>
      %461 = arith.mulf %457, %460 : vector<2x128xf32>
      %cst_183 = arith.constant 0.000000e+00 : f32
      %462 = vector.broadcast %cst_183 : f32 to vector<2x128xf32>
      %463 = arith.cmpf oge, %461, %462 : vector<2x128xf32>
      %cst_184 = arith.constant 1.000000e+00 : f32
      %cst_185 = arith.constant -1.000000e+00 : f32
      %464 = vector.broadcast %cst_184 : f32 to vector<2x128xf32>
      %465 = vector.broadcast %cst_185 : f32 to vector<2x128xf32>
      %466 = arith.select %463, %464, %465 : vector<2x128xi1>, vector<2x128xf32>
      %467 = math.absf %461 : vector<2x128xf32>
      %cst_186 = arith.constant 0.327591091 : f32
      %468 = vector.broadcast %cst_186 : f32 to vector<2x128xf32>
      %469 = arith.mulf %468, %467 : vector<2x128xf32>
      %cst_187 = arith.constant 1.000000e+00 : f32
      %470 = vector.broadcast %cst_187 : f32 to vector<2x128xf32>
      %471 = arith.addf %470, %469 : vector<2x128xf32>
      %cst_188 = arith.constant 1.000000e+00 : f32
      %472 = vector.broadcast %cst_188 : f32 to vector<2x128xf32>
      %473 = arith.divf %472, %471 : vector<2x128xf32>
      %cst_189 = arith.constant 1.06140542 : f32
      %474 = vector.broadcast %cst_189 : f32 to vector<2x128xf32>
      %475 = arith.mulf %473, %474 : vector<2x128xf32>
      %cst_190 = arith.constant -1.45315206 : f32
      %476 = vector.broadcast %cst_190 : f32 to vector<2x128xf32>
      %477 = arith.addf %476, %475 : vector<2x128xf32>
      %478 = arith.mulf %473, %477 : vector<2x128xf32>
      %cst_191 = arith.constant 1.42141378 : f32
      %479 = vector.broadcast %cst_191 : f32 to vector<2x128xf32>
      %480 = arith.addf %479, %478 : vector<2x128xf32>
      %481 = arith.mulf %473, %480 : vector<2x128xf32>
      %cst_192 = arith.constant -0.284496725 : f32
      %482 = vector.broadcast %cst_192 : f32 to vector<2x128xf32>
      %483 = arith.addf %482, %481 : vector<2x128xf32>
      %484 = arith.mulf %473, %483 : vector<2x128xf32>
      %cst_193 = arith.constant 0.254829586 : f32
      %485 = vector.broadcast %cst_193 : f32 to vector<2x128xf32>
      %486 = arith.addf %485, %484 : vector<2x128xf32>
      %487 = arith.mulf %473, %486 : vector<2x128xf32>
      %cst_194 = arith.constant 0.000000e+00 : f32
      %488 = vector.broadcast %cst_194 : f32 to vector<2x128xf32>
      %489 = arith.subf %488, %467 : vector<2x128xf32>
      %490 = arith.mulf %489, %467 : vector<2x128xf32>
      %491 = math.exp %490 : vector<2x128xf32>
      %492 = arith.mulf %487, %491 : vector<2x128xf32>
      %cst_195 = arith.constant 1.000000e+00 : f32
      %493 = vector.broadcast %cst_195 : f32 to vector<2x128xf32>
      %494 = arith.subf %493, %492 : vector<2x128xf32>
      %495 = arith.mulf %466, %494 : vector<2x128xf32>
      %cst_196 = arith.constant 1.000000e+00 : f32
      %496 = vector.broadcast %cst_196 : f32 to vector<2x128xf32>
      %497 = arith.addf %496, %495 : vector<2x128xf32>
      %498 = arith.mulf %459, %497 : vector<2x128xf32>
      %499 = vector.extract_strided_slice %498 {offsets = [0, 0], sizes = [1, 128], strides = [1, 1]} : vector<2x128xf32> to vector<1x128xf32>
      %c1 = arith.constant 1 : index
      %c0_197 = arith.constant 0 : index
      %500 = vector.load %arg25[%c1, %c0_197] : memref<4x128xf32, #tpu.memory_space<vmem>>, vector<1x128xf32>
      tpu.vector_store %arg25[%c1, %c0_197], %499 {strides = array<i32>} : memref<4x128xf32, #tpu.memory_space<vmem>>, vector<1x128xf32>,
      %501 = vector.extract_strided_slice %498 {offsets = [1, 0], sizes = [1, 128], strides = [1, 1]} : vector<2x128xf32> to vector<1x128xf32>
      %c1_198 = arith.constant 1 : index
      %c0_199 = arith.constant 0 : index
      %502 = vector.load %arg26[%c1_198, %c0_199] : memref<4x128xf32, #tpu.memory_space<vmem>>, vector<1x128xf32>
      tpu.vector_store %arg26[%c1_198, %c0_199], %501 {strides = array<i32>} : memref<4x128xf32, #tpu.memory_space<vmem>>, vector<1x128xf32>,
      %c0_200 = arith.constant 0 : index
      %c256 = arith.constant 256 : index
      %503 = vector.load %arg9[%c0_200, %c256] : memref<128x512xf32, #tpu.memory_space<vmem>>, vector<128x128xf32>
      %cst_201 = arith.constant dense<0.000000e+00> : vector<2x128xf32>
      %504 = tpu.matmul %402, %503, %cst_201 {dimension_numbers = #tpu.dot_dimension_numbers<[1], [0], [0], [1], [0, 0, 1, 1], [], []>} : vector<2x128xf32>, vector<128x128xf32>, vector<2x128xf32> -> vector<2x128xf32>
      %c0_202 = arith.constant 0 : index
      %c256_203 = arith.constant 256 : index
      %505 = vector.load %arg10[%c0_202, %c256_203] : memref<1x512xf32, #tpu.memory_space<vmem>>, vector<1x128xf32>
      %506 = vector.broadcast %505 : vector<1x128xf32> to vector<2x128xf32>
      %507 = arith.addf %504, %506 : vector<2x128xf32>
      %cst_204 = arith.constant 5.000000e-01 : f32
      %508 = vector.broadcast %cst_204 : f32 to vector<2x128xf32>
      %509 = arith.mulf %508, %507 : vector<2x128xf32>
      %cst_205 = arith.constant 0.707106769 : f32
      %510 = vector.broadcast %cst_205 : f32 to vector<2x128xf32>
      %511 = arith.mulf %507, %510 : vector<2x128xf32>
      %cst_206 = arith.constant 0.000000e+00 : f32
      %512 = vector.broadcast %cst_206 : f32 to vector<2x128xf32>
      %513 = arith.cmpf oge, %511, %512 : vector<2x128xf32>
      %cst_207 = arith.constant 1.000000e+00 : f32
      %cst_208 = arith.constant -1.000000e+00 : f32
      %514 = vector.broadcast %cst_207 : f32 to vector<2x128xf32>
      %515 = vector.broadcast %cst_208 : f32 to vector<2x128xf32>
      %516 = arith.select %513, %514, %515 : vector<2x128xi1>, vector<2x128xf32>
      %517 = math.absf %511 : vector<2x128xf32>
      %cst_209 = arith.constant 0.327591091 : f32
      %518 = vector.broadcast %cst_209 : f32 to vector<2x128xf32>
      %519 = arith.mulf %518, %517 : vector<2x128xf32>
      %cst_210 = arith.constant 1.000000e+00 : f32
      %520 = vector.broadcast %cst_210 : f32 to vector<2x128xf32>
      %521 = arith.addf %520, %519 : vector<2x128xf32>
      %cst_211 = arith.constant 1.000000e+00 : f32
      %522 = vector.broadcast %cst_211 : f32 to vector<2x128xf32>
      %523 = arith.divf %522, %521 : vector<2x128xf32>
      %cst_212 = arith.constant 1.06140542 : f32
      %524 = vector.broadcast %cst_212 : f32 to vector<2x128xf32>
      %525 = arith.mulf %523, %524 : vector<2x128xf32>
      %cst_213 = arith.constant -1.45315206 : f32
      %526 = vector.broadcast %cst_213 : f32 to vector<2x128xf32>
      %527 = arith.addf %526, %525 : vector<2x128xf32>
      %528 = arith.mulf %523, %527 : vector<2x128xf32>
      %cst_214 = arith.constant 1.42141378 : f32
      %529 = vector.broadcast %cst_214 : f32 to vector<2x128xf32>
      %530 = arith.addf %529, %528 : vector<2x128xf32>
      %531 = arith.mulf %523, %530 : vector<2x128xf32>
      %cst_215 = arith.constant -0.284496725 : f32
      %532 = vector.broadcast %cst_215 : f32 to vector<2x128xf32>
      %533 = arith.addf %532, %531 : vector<2x128xf32>
      %534 = arith.mulf %523, %533 : vector<2x128xf32>
      %cst_216 = arith.constant 0.254829586 : f32
      %535 = vector.broadcast %cst_216 : f32 to vector<2x128xf32>
      %536 = arith.addf %535, %534 : vector<2x128xf32>
      %537 = arith.mulf %523, %536 : vector<2x128xf32>
      %cst_217 = arith.constant 0.000000e+00 : f32
      %538 = vector.broadcast %cst_217 : f32 to vector<2x128xf32>
      %539 = arith.subf %538, %517 : vector<2x128xf32>
      %540 = arith.mulf %539, %517 : vector<2x128xf32>
      %541 = math.exp %540 : vector<2x128xf32>
      %542 = arith.mulf %537, %541 : vector<2x128xf32>
      %cst_218 = arith.constant 1.000000e+00 : f32
      %543 = vector.broadcast %cst_218 : f32 to vector<2x128xf32>
      %544 = arith.subf %543, %542 : vector<2x128xf32>
      %545 = arith.mulf %516, %544 : vector<2x128xf32>
      %cst_219 = arith.constant 1.000000e+00 : f32
      %546 = vector.broadcast %cst_219 : f32 to vector<2x128xf32>
      %547 = arith.addf %546, %545 : vector<2x128xf32>
      %548 = arith.mulf %509, %547 : vector<2x128xf32>
      %549 = vector.extract_strided_slice %548 {offsets = [0, 0], sizes = [1, 128], strides = [1, 1]} : vector<2x128xf32> to vector<1x128xf32>
      %c2 = arith.constant 2 : index
      %c0_220 = arith.constant 0 : index
      %550 = vector.load %arg25[%c2, %c0_220] : memref<4x128xf32, #tpu.memory_space<vmem>>, vector<1x128xf32>
      tpu.vector_store %arg25[%c2, %c0_220], %549 {strides = array<i32>} : memref<4x128xf32, #tpu.memory_space<vmem>>, vector<1x128xf32>,
      %551 = vector.extract_strided_slice %548 {offsets = [1, 0], sizes = [1, 128], strides = [1, 1]} : vector<2x128xf32> to vector<1x128xf32>
      %c2_221 = arith.constant 2 : index
      %c0_222 = arith.constant 0 : index
      %552 = vector.load %arg26[%c2_221, %c0_222] : memref<4x128xf32, #tpu.memory_space<vmem>>, vector<1x128xf32>
      tpu.vector_store %arg26[%c2_221, %c0_222], %551 {strides = array<i32>} : memref<4x128xf32, #tpu.memory_space<vmem>>, vector<1x128xf32>,
      %c0_223 = arith.constant 0 : index
      %c384_224 = arith.constant 384 : index
      %553 = vector.load %arg9[%c0_223, %c384_224] : memref<128x512xf32, #tpu.memory_space<vmem>>, vector<128x128xf32>
      %cst_225 = arith.constant dense<0.000000e+00> : vector<2x128xf32>
      %554 = tpu.matmul %402, %553, %cst_225 {dimension_numbers = #tpu.dot_dimension_numbers<[1], [0], [0], [1], [0, 0, 1, 1], [], []>} : vector<2x128xf32>, vector<128x128xf32>, vector<2x128xf32> -> vector<2x128xf32>
      %c0_226 = arith.constant 0 : index
      %c384_227 = arith.constant 384 : index
      %555 = vector.load %arg10[%c0_226, %c384_227] : memref<1x512xf32, #tpu.memory_space<vmem>>, vector<1x128xf32>
      %556 = vector.broadcast %555 : vector<1x128xf32> to vector<2x128xf32>
      %557 = arith.addf %554, %556 : vector<2x128xf32>
      %cst_228 = arith.constant 5.000000e-01 : f32
      %558 = vector.broadcast %cst_228 : f32 to vector<2x128xf32>
      %559 = arith.mulf %558, %557 : vector<2x128xf32>
      %cst_229 = arith.constant 0.707106769 : f32
      %560 = vector.broadcast %cst_229 : f32 to vector<2x128xf32>
      %561 = arith.mulf %557, %560 : vector<2x128xf32>
      %cst_230 = arith.constant 0.000000e+00 : f32
      %562 = vector.broadcast %cst_230 : f32 to vector<2x128xf32>
      %563 = arith.cmpf oge, %561, %562 : vector<2x128xf32>
      %cst_231 = arith.constant 1.000000e+00 : f32
      %cst_232 = arith.constant -1.000000e+00 : f32
      %564 = vector.broadcast %cst_231 : f32 to vector<2x128xf32>
      %565 = vector.broadcast %cst_232 : f32 to vector<2x128xf32>
      %566 = arith.select %563, %564, %565 : vector<2x128xi1>, vector<2x128xf32>
      %567 = math.absf %561 : vector<2x128xf32>
      %cst_233 = arith.constant 0.327591091 : f32
      %568 = vector.broadcast %cst_233 : f32 to vector<2x128xf32>
      %569 = arith.mulf %568, %567 : vector<2x128xf32>
      %cst_234 = arith.constant 1.000000e+00 : f32
      %570 = vector.broadcast %cst_234 : f32 to vector<2x128xf32>
      %571 = arith.addf %570, %569 : vector<2x128xf32>
      %cst_235 = arith.constant 1.000000e+00 : f32
      %572 = vector.broadcast %cst_235 : f32 to vector<2x128xf32>
      %573 = arith.divf %572, %571 : vector<2x128xf32>
      %cst_236 = arith.constant 1.06140542 : f32
      %574 = vector.broadcast %cst_236 : f32 to vector<2x128xf32>
      %575 = arith.mulf %573, %574 : vector<2x128xf32>
      %cst_237 = arith.constant -1.45315206 : f32
      %576 = vector.broadcast %cst_237 : f32 to vector<2x128xf32>
      %577 = arith.addf %576, %575 : vector<2x128xf32>
      %578 = arith.mulf %573, %577 : vector<2x128xf32>
      %cst_238 = arith.constant 1.42141378 : f32
      %579 = vector.broadcast %cst_238 : f32 to vector<2x128xf32>
      %580 = arith.addf %579, %578 : vector<2x128xf32>
      %581 = arith.mulf %573, %580 : vector<2x128xf32>
      %cst_239 = arith.constant -0.284496725 : f32
      %582 = vector.broadcast %cst_239 : f32 to vector<2x128xf32>
      %583 = arith.addf %582, %581 : vector<2x128xf32>
      %584 = arith.mulf %573, %583 : vector<2x128xf32>
      %cst_240 = arith.constant 0.254829586 : f32
      %585 = vector.broadcast %cst_240 : f32 to vector<2x128xf32>
      %586 = arith.addf %585, %584 : vector<2x128xf32>
      %587 = arith.mulf %573, %586 : vector<2x128xf32>
      %cst_241 = arith.constant 0.000000e+00 : f32
      %588 = vector.broadcast %cst_241 : f32 to vector<2x128xf32>
      %589 = arith.subf %588, %567 : vector<2x128xf32>
      %590 = arith.mulf %589, %567 : vector<2x128xf32>
      %591 = math.exp %590 : vector<2x128xf32>
      %592 = arith.mulf %587, %591 : vector<2x128xf32>
      %cst_242 = arith.constant 1.000000e+00 : f32
      %593 = vector.broadcast %cst_242 : f32 to vector<2x128xf32>
      %594 = arith.subf %593, %592 : vector<2x128xf32>
      %595 = arith.mulf %566, %594 : vector<2x128xf32>
      %cst_243 = arith.constant 1.000000e+00 : f32
      %596 = vector.broadcast %cst_243 : f32 to vector<2x128xf32>
      %597 = arith.addf %596, %595 : vector<2x128xf32>
      %598 = arith.mulf %559, %597 : vector<2x128xf32>
      %599 = vector.extract_strided_slice %598 {offsets = [0, 0], sizes = [1, 128], strides = [1, 1]} : vector<2x128xf32> to vector<1x128xf32>
      %c3 = arith.constant 3 : index
      %c0_244 = arith.constant 0 : index
      %600 = vector.load %arg25[%c3, %c0_244] : memref<4x128xf32, #tpu.memory_space<vmem>>, vector<1x128xf32>
      tpu.vector_store %arg25[%c3, %c0_244], %599 {strides = array<i32>} : memref<4x128xf32, #tpu.memory_space<vmem>>, vector<1x128xf32>,
      %601 = vector.extract_strided_slice %598 {offsets = [1, 0], sizes = [1, 128], strides = [1, 1]} : vector<2x128xf32> to vector<1x128xf32>
      %c3_245 = arith.constant 3 : index
      %c0_246 = arith.constant 0 : index
      %602 = vector.load %arg26[%c3_245, %c0_246] : memref<4x128xf32, #tpu.memory_space<vmem>>, vector<1x128xf32>
      tpu.vector_store %arg26[%c3_245, %c0_246], %601 {strides = array<i32>} : memref<4x128xf32, #tpu.memory_space<vmem>>, vector<1x128xf32>,
      %c0_247 = arith.constant 0 : index
      %c0_248 = arith.constant 0 : index
      %603 = vector.load %arg2[%c0_247, %c0_248] : memref<8x64xf32, #tpu.memory_space<vmem>>, vector<8x64xf32>
      %c0_249 = arith.constant 0 : index
      %c0_250 = arith.constant 0 : index
      %604 = vector.load %arg11[%c0_249, %c0_250] : memref<1x64xf32, #tpu.memory_space<vmem>>, vector<1x64xf32>
      %c0_251 = arith.constant 0 : index
      %c0_252 = arith.constant 0 : index
      %605 = vector.load %arg12[%c0_251, %c0_252] : memref<1x64xf32, #tpu.memory_space<vmem>>, vector<1x64xf32>
      %cst_253 = arith.constant dense<0.000000e+00> : vector<8xf32>
      %606 = vector.multi_reduction <add>, %603, %cst_253 [1] : vector<8x64xf32> to vector<8xf32>
      %607 = vector.shape_cast %606 : vector<8xf32> to vector<8x1xf32>
      %cst_254 = arith.constant 6.400000e+01 : f32
      %608 = vector.broadcast %cst_254 : f32 to vector<8x1xf32>
      %609 = arith.divf %607, %608 : vector<8x1xf32>
      %610 = vector.broadcast %609 : vector<8x1xf32> to vector<8x64xf32>
      %611 = arith.subf %603, %610 : vector<8x64xf32>
      %612 = arith.mulf %611, %611 : vector<8x64xf32>
      %cst_255 = arith.constant dense<0.000000e+00> : vector<8xf32>
      %613 = vector.multi_reduction <add>, %612, %cst_255 [1] : vector<8x64xf32> to vector<8xf32>
      %614 = vector.shape_cast %613 : vector<8xf32> to vector<8x1xf32>
      %cst_256 = arith.constant 6.400000e+01 : f32
      %615 = vector.broadcast %cst_256 : f32 to vector<8x1xf32>
      %616 = arith.divf %614, %615 : vector<8x1xf32>
      %617 = vector.broadcast %609 : vector<8x1xf32> to vector<8x64xf32>
      %618 = arith.subf %603, %617 : vector<8x64xf32>
      %cst_257 = arith.constant 9.99999974E-6 : f32
      %619 = vector.broadcast %cst_257 : f32 to vector<8x1xf32>
      %620 = arith.addf %616, %619 : vector<8x1xf32>
      %621 = math.rsqrt %620 : vector<8x1xf32>
      %622 = vector.broadcast %621 : vector<8x1xf32> to vector<8x64xf32>
      %623 = arith.mulf %618, %622 : vector<8x64xf32>
      %624 = vector.broadcast %604 : vector<1x64xf32> to vector<8x64xf32>
      %625 = arith.mulf %623, %624 : vector<8x64xf32>
      %626 = vector.broadcast %605 : vector<1x64xf32> to vector<8x64xf32>
      %627 = arith.addf %625, %626 : vector<8x64xf32>
      %c0_258 = arith.constant 0 : index
      %c0_259 = arith.constant 0 : index
      %628 = vector.load %arg13[%c0_258, %c0_259] : memref<64x128xf32, #tpu.memory_space<vmem>>, vector<64x128xf32>
      %cst_260 = arith.constant dense<0.000000e+00> : vector<8x128xf32>
      %629 = tpu.matmul %627, %628, %cst_260 {dimension_numbers = #tpu.dot_dimension_numbers<[1], [0], [0], [1], [0, 0, 1, 1], [], []>} : vector<8x64xf32>, vector<64x128xf32>, vector<8x128xf32> -> vector<8x128xf32>
      %c0_261 = arith.constant 0 : index
      %c0_262 = arith.constant 0 : index
      %630 = vector.load %arg14[%c0_261, %c0_262] : memref<1x128xf32, #tpu.memory_space<vmem>>, vector<1x128xf32>
      %631 = vector.broadcast %630 : vector<1x128xf32> to vector<8x128xf32>
      %632 = arith.addf %629, %631 : vector<8x128xf32>
      %c0_263 = arith.constant 0 : index
      %c0_264 = arith.constant 0 : index
      %633 = vector.load %arg24[%c0_263, %c0_264] : memref<8x128xf32, #tpu.memory_space<vmem>>, vector<8x128xf32>
      tpu.vector_store %arg24[%c0_263, %c0_264], %632 {strides = array<i32>} : memref<8x128xf32, #tpu.memory_space<vmem>>, vector<8x128xf32>,
    } else {
    }
    %c0 = arith.constant 0 : index
    %c0_1 = arith.constant 0 : index
    %3 = vector.load %arg24[%c0, %c0_1] : memref<8x128xf32, #tpu.memory_space<vmem>>, vector<8x128xf32>
    %c2_i32 = arith.constant 2 : i32
    %4 = arith.cmpi sge, %arg0, %c2_i32 : i32
    %5 = arith.extui %4 : i1 to i32
    %6 = arith.sitofp %5 : i32 to f32
    %c0_2 = arith.constant 0 : index
    %c0_3 = arith.constant 0 : index
    %7 = vector.load %arg25[%c0_2, %c0_3] : memref<4x128xf32, #tpu.memory_space<vmem>>, vector<4x128xf32>
    %cst = arith.constant 1.000000e+00 : f32
    %8 = arith.subf %cst, %6 : f32
    %9 = vector.broadcast %8 : f32 to vector<4x128xf32>
    %10 = arith.mulf %7, %9 : vector<4x128xf32>
    %c0_4 = arith.constant 0 : index
    %c0_5 = arith.constant 0 : index
    %11 = vector.load %arg26[%c0_4, %c0_5] : memref<4x128xf32, #tpu.memory_space<vmem>>, vector<4x128xf32>
    %12 = vector.broadcast %6 : f32 to vector<4x128xf32>
    %13 = arith.mulf %11, %12 : vector<4x128xf32>
    %14 = arith.addf %10, %13 : vector<4x128xf32>
    %c0_6 = arith.constant 0 : index
    %c0_7 = arith.constant 0 : index
    %c0_8 = arith.constant 0 : index
    %15 = vector.load %arg19[%c0_6, %c0_7, %c0_8] : memref<1x8x128xf32, #tpu.memory_space<vmem>>, vector<1x8x128xf32>
    %16 = vector.shape_cast %15 : vector<1x8x128xf32> to vector<8x128xf32>
    %17 = vector.extract_strided_slice %16 {offsets = [0, 0], sizes = [1, 128], strides = [1, 1]} : vector<8x128xf32> to vector<1x128xf32>
    %18 = vector.extract_strided_slice %16 {offsets = [1, 0], sizes = [1, 128], strides = [1, 1]} : vector<8x128xf32> to vector<1x128xf32>
    %cst_9 = arith.constant dense<0.000000e+00> : vector<4xf32>
    %19 = vector.multi_reduction <add>, %14, %cst_9 [1] : vector<4x128xf32> to vector<4xf32>
    %20 = vector.shape_cast %19 : vector<4xf32> to vector<4x1xf32>
    %cst_10 = arith.constant 1.280000e+02 : f32
    %21 = vector.broadcast %cst_10 : f32 to vector<4x1xf32>
    %22 = arith.divf %20, %21 : vector<4x1xf32>
    %23 = vector.broadcast %22 : vector<4x1xf32> to vector<4x128xf32>
    %24 = arith.subf %14, %23 : vector<4x128xf32>
    %25 = arith.mulf %24, %24 : vector<4x128xf32>
    %cst_11 = arith.constant dense<0.000000e+00> : vector<4xf32>
    %26 = vector.multi_reduction <add>, %25, %cst_11 [1] : vector<4x128xf32> to vector<4xf32>
    %27 = vector.shape_cast %26 : vector<4xf32> to vector<4x1xf32>
    %cst_12 = arith.constant 1.280000e+02 : f32
    %28 = vector.broadcast %cst_12 : f32 to vector<4x1xf32>
    %29 = arith.divf %27, %28 : vector<4x1xf32>
    %30 = vector.broadcast %22 : vector<4x1xf32> to vector<4x128xf32>
    %31 = arith.subf %14, %30 : vector<4x128xf32>
    %cst_13 = arith.constant 9.99999974E-6 : f32
    %32 = vector.broadcast %cst_13 : f32 to vector<4x1xf32>
    %33 = arith.addf %29, %32 : vector<4x1xf32>
    %34 = math.rsqrt %33 : vector<4x1xf32>
    %35 = vector.broadcast %34 : vector<4x1xf32> to vector<4x128xf32>
    %36 = arith.mulf %31, %35 : vector<4x128xf32>
    %37 = vector.broadcast %17 : vector<1x128xf32> to vector<4x128xf32>
    %38 = arith.mulf %36, %37 : vector<4x128xf32>
    %39 = vector.broadcast %18 : vector<1x128xf32> to vector<4x128xf32>
    %40 = arith.addf %38, %39 : vector<4x128xf32>
    %41 = vector.extract_strided_slice %16 {offsets = [2, 0], sizes = [1, 128], strides = [1, 1]} : vector<8x128xf32> to vector<1x128xf32>
    %42 = vector.extract_strided_slice %16 {offsets = [3, 0], sizes = [1, 128], strides = [1, 1]} : vector<8x128xf32> to vector<1x128xf32>
    %cst_14 = arith.constant dense<0.000000e+00> : vector<8xf32>
    %43 = vector.multi_reduction <add>, %3, %cst_14 [1] : vector<8x128xf32> to vector<8xf32>
    %44 = vector.shape_cast %43 : vector<8xf32> to vector<8x1xf32>
    %cst_15 = arith.constant 1.280000e+02 : f32
    %45 = vector.broadcast %cst_15 : f32 to vector<8x1xf32>
    %46 = arith.divf %44, %45 : vector<8x1xf32>
    %47 = vector.broadcast %46 : vector<8x1xf32> to vector<8x128xf32>
    %48 = arith.subf %3, %47 : vector<8x128xf32>
    %49 = arith.mulf %48, %48 : vector<8x128xf32>
    %cst_16 = arith.constant dense<0.000000e+00> : vector<8xf32>
    %50 = vector.multi_reduction <add>, %49, %cst_16 [1] : vector<8x128xf32> to vector<8xf32>
    %51 = vector.shape_cast %50 : vector<8xf32> to vector<8x1xf32>
    %cst_17 = arith.constant 1.280000e+02 : f32
    %52 = vector.broadcast %cst_17 : f32 to vector<8x1xf32>
    %53 = arith.divf %51, %52 : vector<8x1xf32>
    %54 = vector.broadcast %46 : vector<8x1xf32> to vector<8x128xf32>
    %55 = arith.subf %3, %54 : vector<8x128xf32>
    %cst_18 = arith.constant 9.99999974E-6 : f32
    %56 = vector.broadcast %cst_18 : f32 to vector<8x1xf32>
    %57 = arith.addf %53, %56 : vector<8x1xf32>
    %58 = math.rsqrt %57 : vector<8x1xf32>
    %59 = vector.broadcast %58 : vector<8x1xf32> to vector<8x128xf32>
    %60 = arith.mulf %55, %59 : vector<8x128xf32>
    %61 = vector.broadcast %41 : vector<1x128xf32> to vector<8x128xf32>
    %62 = arith.mulf %60, %61 : vector<8x128xf32>
    %63 = vector.broadcast %42 : vector<1x128xf32> to vector<8x128xf32>
    %64 = arith.addf %62, %63 : vector<8x128xf32>
    %c0_19 = arith.constant 0 : index
    %c0_20 = arith.constant 0 : index
    %c0_21 = arith.constant 0 : index
    %65 = vector.load %arg20[%c0_19, %c0_20, %c0_21] : memref<1x128x1024xf32, #tpu.memory_space<vmem>>, vector<1x128x128xf32>
    %66 = vector.shape_cast %65 : vector<1x128x128xf32> to vector<128x128xf32>
    %cst_22 = arith.constant dense<0.000000e+00> : vector<8x128xf32>
    %67 = tpu.matmul %64, %66, %cst_22 {dimension_numbers = #tpu.dot_dimension_numbers<[1], [0], [0], [1], [0, 0, 1, 1], [], []>} : vector<8x128xf32>, vector<128x128xf32>, vector<8x128xf32> -> vector<8x128xf32>
    %68 = tpu.concatenate %40, %64 in 0 : vector<4x128xf32>, vector<8x128xf32> -> vector<12x128xf32>
    %c0_23 = arith.constant 0 : index
    %c0_24 = arith.constant 0 : index
    %c128 = arith.constant 128 : index
    %69 = vector.load %arg20[%c0_23, %c0_24, %c128] : memref<1x128x1024xf32, #tpu.memory_space<vmem>>, vector<1x128x256xf32>
    %70 = vector.shape_cast %69 : vector<1x128x256xf32> to vector<128x256xf32>
    %cst_25 = arith.constant dense<0.000000e+00> : vector<12x256xf32>
    %71 = tpu.matmul %68, %70, %cst_25 {dimension_numbers = #tpu.dot_dimension_numbers<[1], [0], [0], [1], [0, 0, 1, 1], [], []>} : vector<12x128xf32>, vector<128x256xf32>, vector<12x256xf32> -> vector<12x256xf32>
    %72 = vector.extract_strided_slice %71 {offsets = [0, 0], sizes = [12, 128], strides = [1, 1]} : vector<12x256xf32> to vector<12x128xf32>
    %73 = vector.extract_strided_slice %71 {offsets = [0, 128], sizes = [12, 128], strides = [1, 1]} : vector<12x256xf32> to vector<12x128xf32>
    %cst_26 = arith.constant 0.176776692 : f32
    %74 = vector.broadcast %cst_26 : f32 to vector<8x128xf32>
    %75 = arith.mulf %67, %74 : vector<8x128xf32>
    %76 = vector.extract_strided_slice %75 {offsets = [0, 0], sizes = [8, 32], strides = [1, 1]} : vector<8x128xf32> to vector<8x32xf32>
    %77 = vector.extract_strided_slice %72 {offsets = [0, 0], sizes = [12, 32], strides = [1, 1]} : vector<12x128xf32> to vector<12x32xf32>
    %cst_27 = arith.constant dense<0.000000e+00> : vector<8x12xf32>
    %78 = tpu.matmul %76, %77, %cst_27 {dimension_numbers = #tpu.dot_dimension_numbers<[1], [1], [0], [0], [0, 0, 1, 0], [], []>} : vector<8x32xf32>, vector<12x32xf32>, vector<8x12xf32> -> vector<8x12xf32>
    %cst_28 = arith.constant dense<0xFF800000> : vector<8xf32>
    %79 = vector.multi_reduction <maximumf>, %78, %cst_28 [1] : vector<8x12xf32> to vector<8xf32>
    %80 = vector.shape_cast %79 : vector<8xf32> to vector<8x1xf32>
    %81 = vector.broadcast %80 : vector<8x1xf32> to vector<8x12xf32>
    %82 = arith.subf %78, %81 : vector<8x12xf32>
    %83 = math.exp %82 : vector<8x12xf32>
    %cst_29 = arith.constant dense<0.000000e+00> : vector<8xf32>
    %84 = vector.multi_reduction <add>, %83, %cst_29 [1] : vector<8x12xf32> to vector<8xf32>
    %85 = vector.shape_cast %84 : vector<8xf32> to vector<8x1xf32>
    %86 = vector.broadcast %85 : vector<8x1xf32> to vector<8x12xf32>
    %87 = arith.divf %83, %86 : vector<8x12xf32>
    %88 = vector.extract_strided_slice %73 {offsets = [0, 0], sizes = [12, 32], strides = [1, 1]} : vector<12x128xf32> to vector<12x32xf32>
    %cst_30 = arith.constant dense<0.000000e+00> : vector<8x32xf32>
    %89 = tpu.matmul %87, %88, %cst_30 {dimension_numbers = #tpu.dot_dimension_numbers<[1], [0], [0], [1], [0, 0, 1, 1], [], []>} : vector<8x12xf32>, vector<12x32xf32>, vector<8x32xf32> -> vector<8x32xf32>
    %90 = vector.extract_strided_slice %75 {offsets = [0, 32], sizes = [8, 32], strides = [1, 1]} : vector<8x128xf32> to vector<8x32xf32>
    %91 = vector.extract_strided_slice %72 {offsets = [0, 32], sizes = [12, 32], strides = [1, 1]} : vector<12x128xf32> to vector<12x32xf32>
    %cst_31 = arith.constant dense<0.000000e+00> : vector<8x12xf32>
    %92 = tpu.matmul %90, %91, %cst_31 {dimension_numbers = #tpu.dot_dimension_numbers<[1], [1], [0], [0], [0, 0, 1, 0], [], []>} : vector<8x32xf32>, vector<12x32xf32>, vector<8x12xf32> -> vector<8x12xf32>
    %cst_32 = arith.constant dense<0xFF800000> : vector<8xf32>
    %93 = vector.multi_reduction <maximumf>, %92, %cst_32 [1] : vector<8x12xf32> to vector<8xf32>
    %94 = vector.shape_cast %93 : vector<8xf32> to vector<8x1xf32>
    %95 = vector.broadcast %94 : vector<8x1xf32> to vector<8x12xf32>
    %96 = arith.subf %92, %95 : vector<8x12xf32>
    %97 = math.exp %96 : vector<8x12xf32>
    %cst_33 = arith.constant dense<0.000000e+00> : vector<8xf32>
    %98 = vector.multi_reduction <add>, %97, %cst_33 [1] : vector<8x12xf32> to vector<8xf32>
    %99 = vector.shape_cast %98 : vector<8xf32> to vector<8x1xf32>
    %100 = vector.broadcast %99 : vector<8x1xf32> to vector<8x12xf32>
    %101 = arith.divf %97, %100 : vector<8x12xf32>
    %102 = vector.extract_strided_slice %73 {offsets = [0, 32], sizes = [12, 32], strides = [1, 1]} : vector<12x128xf32> to vector<12x32xf32>
    %cst_34 = arith.constant dense<0.000000e+00> : vector<8x32xf32>
    %103 = tpu.matmul %101, %102, %cst_34 {dimension_numbers = #tpu.dot_dimension_numbers<[1], [0], [0], [1], [0, 0, 1, 1], [], []>} : vector<8x12xf32>, vector<12x32xf32>, vector<8x32xf32> -> vector<8x32xf32>
    %104 = vector.extract_strided_slice %75 {offsets = [0, 64], sizes = [8, 32], strides = [1, 1]} : vector<8x128xf32> to vector<8x32xf32>
    %105 = vector.extract_strided_slice %72 {offsets = [0, 64], sizes = [12, 32], strides = [1, 1]} : vector<12x128xf32> to vector<12x32xf32>
    %cst_35 = arith.constant dense<0.000000e+00> : vector<8x12xf32>
    %106 = tpu.matmul %104, %105, %cst_35 {dimension_numbers = #tpu.dot_dimension_numbers<[1], [1], [0], [0], [0, 0, 1, 0], [], []>} : vector<8x32xf32>, vector<12x32xf32>, vector<8x12xf32> -> vector<8x12xf32>
    %cst_36 = arith.constant dense<0xFF800000> : vector<8xf32>
    %107 = vector.multi_reduction <maximumf>, %106, %cst_36 [1] : vector<8x12xf32> to vector<8xf32>
    %108 = vector.shape_cast %107 : vector<8xf32> to vector<8x1xf32>
    %109 = vector.broadcast %108 : vector<8x1xf32> to vector<8x12xf32>
    %110 = arith.subf %106, %109 : vector<8x12xf32>
    %111 = math.exp %110 : vector<8x12xf32>
    %cst_37 = arith.constant dense<0.000000e+00> : vector<8xf32>
    %112 = vector.multi_reduction <add>, %111, %cst_37 [1] : vector<8x12xf32> to vector<8xf32>
    %113 = vector.shape_cast %112 : vector<8xf32> to vector<8x1xf32>
    %114 = vector.broadcast %113 : vector<8x1xf32> to vector<8x12xf32>
    %115 = arith.divf %111, %114 : vector<8x12xf32>
    %116 = vector.extract_strided_slice %73 {offsets = [0, 64], sizes = [12, 32], strides = [1, 1]} : vector<12x128xf32> to vector<12x32xf32>
    %cst_38 = arith.constant dense<0.000000e+00> : vector<8x32xf32>
    %117 = tpu.matmul %115, %116, %cst_38 {dimension_numbers = #tpu.dot_dimension_numbers<[1], [0], [0], [1], [0, 0, 1, 1], [], []>} : vector<8x12xf32>, vector<12x32xf32>, vector<8x32xf32> -> vector<8x32xf32>
    %118 = vector.extract_strided_slice %75 {offsets = [0, 96], sizes = [8, 32], strides = [1, 1]} : vector<8x128xf32> to vector<8x32xf32>
    %119 = vector.extract_strided_slice %72 {offsets = [0, 96], sizes = [12, 32], strides = [1, 1]} : vector<12x128xf32> to vector<12x32xf32>
    %cst_39 = arith.constant dense<0.000000e+00> : vector<8x12xf32>
    %120 = tpu.matmul %118, %119, %cst_39 {dimension_numbers = #tpu.dot_dimension_numbers<[1], [1], [0], [0], [0, 0, 1, 0], [], []>} : vector<8x32xf32>, vector<12x32xf32>, vector<8x12xf32> -> vector<8x12xf32>
    %cst_40 = arith.constant dense<0xFF800000> : vector<8xf32>
    %121 = vector.multi_reduction <maximumf>, %120, %cst_40 [1] : vector<8x12xf32> to vector<8xf32>
    %122 = vector.shape_cast %121 : vector<8xf32> to vector<8x1xf32>
    %123 = vector.broadcast %122 : vector<8x1xf32> to vector<8x12xf32>
    %124 = arith.subf %120, %123 : vector<8x12xf32>
    %125 = math.exp %124 : vector<8x12xf32>
    %cst_41 = arith.constant dense<0.000000e+00> : vector<8xf32>
    %126 = vector.multi_reduction <add>, %125, %cst_41 [1] : vector<8x12xf32> to vector<8xf32>
    %127 = vector.shape_cast %126 : vector<8xf32> to vector<8x1xf32>
    %128 = vector.broadcast %127 : vector<8x1xf32> to vector<8x12xf32>
    %129 = arith.divf %125, %128 : vector<8x12xf32>
    %130 = vector.extract_strided_slice %73 {offsets = [0, 96], sizes = [12, 32], strides = [1, 1]} : vector<12x128xf32> to vector<12x32xf32>
    %cst_42 = arith.constant dense<0.000000e+00> : vector<8x32xf32>
    %131 = tpu.matmul %129, %130, %cst_42 {dimension_numbers = #tpu.dot_dimension_numbers<[1], [0], [0], [1], [0, 0, 1, 1], [], []>} : vector<8x12xf32>, vector<12x32xf32>, vector<8x32xf32> -> vector<8x32xf32>
    %132 = tpu.concatenate %89, %103, %117, %131 in 1 : vector<8x32xf32>, vector<8x32xf32>, vector<8x32xf32>, vector<8x32xf32> -> vector<8x128xf32>
    %c0_43 = arith.constant 0 : index
    %c0_44 = arith.constant 0 : index
    %c0_45 = arith.constant 0 : index
    %133 = vector.load %arg21[%c0_43, %c0_44, %c0_45] : memref<1x128x256xf32, #tpu.memory_space<vmem>>, vector<1x128x128xf32>
    %134 = vector.shape_cast %133 : vector<1x128x128xf32> to vector<128x128xf32>
    %cst_46 = arith.constant dense<0.000000e+00> : vector<8x128xf32>
    %135 = tpu.matmul %132, %134, %cst_46 {dimension_numbers = #tpu.dot_dimension_numbers<[1], [0], [0], [1], [0, 0, 1, 1], [], []>} : vector<8x128xf32>, vector<128x128xf32>, vector<8x128xf32> -> vector<8x128xf32>
    %136 = arith.addf %135, %3 : vector<8x128xf32>
    %137 = vector.extract_strided_slice %16 {offsets = [4, 0], sizes = [1, 128], strides = [1, 1]} : vector<8x128xf32> to vector<1x128xf32>
    %138 = vector.extract_strided_slice %16 {offsets = [5, 0], sizes = [1, 128], strides = [1, 1]} : vector<8x128xf32> to vector<1x128xf32>
    %cst_47 = arith.constant dense<0.000000e+00> : vector<8xf32>
    %139 = vector.multi_reduction <add>, %136, %cst_47 [1] : vector<8x128xf32> to vector<8xf32>
    %140 = vector.shape_cast %139 : vector<8xf32> to vector<8x1xf32>
    %cst_48 = arith.constant 1.280000e+02 : f32
    %141 = vector.broadcast %cst_48 : f32 to vector<8x1xf32>
    %142 = arith.divf %140, %141 : vector<8x1xf32>
    %143 = vector.broadcast %142 : vector<8x1xf32> to vector<8x128xf32>
    %144 = arith.subf %136, %143 : vector<8x128xf32>
    %145 = arith.mulf %144, %144 : vector<8x128xf32>
    %cst_49 = arith.constant dense<0.000000e+00> : vector<8xf32>
    %146 = vector.multi_reduction <add>, %145, %cst_49 [1] : vector<8x128xf32> to vector<8xf32>
    %147 = vector.shape_cast %146 : vector<8xf32> to vector<8x1xf32>
    %cst_50 = arith.constant 1.280000e+02 : f32
    %148 = vector.broadcast %cst_50 : f32 to vector<8x1xf32>
    %149 = arith.divf %147, %148 : vector<8x1xf32>
    %150 = vector.broadcast %142 : vector<8x1xf32> to vector<8x128xf32>
    %151 = arith.subf %136, %150 : vector<8x128xf32>
    %cst_51 = arith.constant 9.99999974E-6 : f32
    %152 = vector.broadcast %cst_51 : f32 to vector<8x1xf32>
    %153 = arith.addf %149, %152 : vector<8x1xf32>
    %154 = math.rsqrt %153 : vector<8x1xf32>
    %155 = vector.broadcast %154 : vector<8x1xf32> to vector<8x128xf32>
    %156 = arith.mulf %151, %155 : vector<8x128xf32>
    %157 = vector.broadcast %137 : vector<1x128xf32> to vector<8x128xf32>
    %158 = arith.mulf %156, %157 : vector<8x128xf32>
    %159 = vector.broadcast %138 : vector<1x128xf32> to vector<8x128xf32>
    %160 = arith.addf %158, %159 : vector<8x128xf32>
    %c0_52 = arith.constant 0 : index
    %c0_53 = arith.constant 0 : index
    %c384 = arith.constant 384 : index
    %161 = vector.load %arg20[%c0_52, %c0_53, %c384] : memref<1x128x1024xf32, #tpu.memory_space<vmem>>, vector<1x128x128xf32>
    %162 = vector.shape_cast %161 : vector<1x128x128xf32> to vector<128x128xf32>
    %cst_54 = arith.constant dense<0.000000e+00> : vector<8x128xf32>
    %163 = tpu.matmul %160, %162, %cst_54 {dimension_numbers = #tpu.dot_dimension_numbers<[1], [0], [0], [1], [0, 0, 1, 1], [], []>} : vector<8x128xf32>, vector<128x128xf32>, vector<8x128xf32> -> vector<8x128xf32>
    %c0_55 = arith.constant 0 : index
    %c0_56 = arith.constant 0 : index
    %c512 = arith.constant 512 : index
    %164 = vector.load %arg20[%c0_55, %c0_56, %c512] : memref<1x128x1024xf32, #tpu.memory_space<vmem>>, vector<1x128x256xf32>
    %165 = vector.shape_cast %164 : vector<1x128x256xf32> to vector<128x256xf32>
    %cst_57 = arith.constant dense<0.000000e+00> : vector<8x256xf32>
    %166 = tpu.matmul %160, %165, %cst_57 {dimension_numbers = #tpu.dot_dimension_numbers<[1], [0], [0], [1], [0, 0, 1, 1], [], []>} : vector<8x128xf32>, vector<128x256xf32>, vector<8x256xf32> -> vector<8x256xf32>
    %167 = vector.extract_strided_slice %166 {offsets = [0, 0], sizes = [8, 128], strides = [1, 1]} : vector<8x256xf32> to vector<8x128xf32>
    %168 = vector.extract_strided_slice %166 {offsets = [0, 128], sizes = [8, 128], strides = [1, 1]} : vector<8x256xf32> to vector<8x128xf32>
    %cst_58 = arith.constant 0.176776692 : f32
    %169 = vector.broadcast %cst_58 : f32 to vector<8x128xf32>
    %170 = arith.mulf %163, %169 : vector<8x128xf32>
    %171 = vector.extract_strided_slice %170 {offsets = [0, 0], sizes = [8, 32], strides = [1, 1]} : vector<8x128xf32> to vector<8x32xf32>
    %172 = vector.extract_strided_slice %167 {offsets = [0, 0], sizes = [8, 32], strides = [1, 1]} : vector<8x128xf32> to vector<8x32xf32>
    %cst_59 = arith.constant dense<0.000000e+00> : vector<8x8xf32>
    %173 = tpu.matmul %171, %172, %cst_59 {dimension_numbers = #tpu.dot_dimension_numbers<[1], [1], [0], [0], [0, 0, 1, 0], [], []>} : vector<8x32xf32>, vector<8x32xf32>, vector<8x8xf32> -> vector<8x8xf32>
    %cst_60 = arith.constant dense<0xFF800000> : vector<8xf32>
    %174 = vector.multi_reduction <maximumf>, %173, %cst_60 [1] : vector<8x8xf32> to vector<8xf32>
    %175 = vector.shape_cast %174 : vector<8xf32> to vector<8x1xf32>
    %176 = vector.broadcast %175 : vector<8x1xf32> to vector<8x8xf32>
    %177 = arith.subf %173, %176 : vector<8x8xf32>
    %178 = math.exp %177 : vector<8x8xf32>
    %cst_61 = arith.constant dense<0.000000e+00> : vector<8xf32>
    %179 = vector.multi_reduction <add>, %178, %cst_61 [1] : vector<8x8xf32> to vector<8xf32>
    %180 = vector.shape_cast %179 : vector<8xf32> to vector<8x1xf32>
    %181 = vector.broadcast %180 : vector<8x1xf32> to vector<8x8xf32>
    %182 = arith.divf %178, %181 : vector<8x8xf32>
    %183 = vector.extract_strided_slice %168 {offsets = [0, 0], sizes = [8, 32], strides = [1, 1]} : vector<8x128xf32> to vector<8x32xf32>
    %cst_62 = arith.constant dense<0.000000e+00> : vector<8x32xf32>
    %184 = tpu.matmul %182, %183, %cst_62 {dimension_numbers = #tpu.dot_dimension_numbers<[1], [0], [0], [1], [0, 0, 1, 1], [], []>} : vector<8x8xf32>, vector<8x32xf32>, vector<8x32xf32> -> vector<8x32xf32>
    %185 = vector.extract_strided_slice %170 {offsets = [0, 32], sizes = [8, 32], strides = [1, 1]} : vector<8x128xf32> to vector<8x32xf32>
    %186 = vector.extract_strided_slice %167 {offsets = [0, 32], sizes = [8, 32], strides = [1, 1]} : vector<8x128xf32> to vector<8x32xf32>
    %cst_63 = arith.constant dense<0.000000e+00> : vector<8x8xf32>
    %187 = tpu.matmul %185, %186, %cst_63 {dimension_numbers = #tpu.dot_dimension_numbers<[1], [1], [0], [0], [0, 0, 1, 0], [], []>} : vector<8x32xf32>, vector<8x32xf32>, vector<8x8xf32> -> vector<8x8xf32>
    %cst_64 = arith.constant dense<0xFF800000> : vector<8xf32>
    %188 = vector.multi_reduction <maximumf>, %187, %cst_64 [1] : vector<8x8xf32> to vector<8xf32>
    %189 = vector.shape_cast %188 : vector<8xf32> to vector<8x1xf32>
    %190 = vector.broadcast %189 : vector<8x1xf32> to vector<8x8xf32>
    %191 = arith.subf %187, %190 : vector<8x8xf32>
    %192 = math.exp %191 : vector<8x8xf32>
    %cst_65 = arith.constant dense<0.000000e+00> : vector<8xf32>
    %193 = vector.multi_reduction <add>, %192, %cst_65 [1] : vector<8x8xf32> to vector<8xf32>
    %194 = vector.shape_cast %193 : vector<8xf32> to vector<8x1xf32>
    %195 = vector.broadcast %194 : vector<8x1xf32> to vector<8x8xf32>
    %196 = arith.divf %192, %195 : vector<8x8xf32>
    %197 = vector.extract_strided_slice %168 {offsets = [0, 32], sizes = [8, 32], strides = [1, 1]} : vector<8x128xf32> to vector<8x32xf32>
    %cst_66 = arith.constant dense<0.000000e+00> : vector<8x32xf32>
    %198 = tpu.matmul %196, %197, %cst_66 {dimension_numbers = #tpu.dot_dimension_numbers<[1], [0], [0], [1], [0, 0, 1, 1], [], []>} : vector<8x8xf32>, vector<8x32xf32>, vector<8x32xf32> -> vector<8x32xf32>
    %199 = vector.extract_strided_slice %170 {offsets = [0, 64], sizes = [8, 32], strides = [1, 1]} : vector<8x128xf32> to vector<8x32xf32>
    %200 = vector.extract_strided_slice %167 {offsets = [0, 64], sizes = [8, 32], strides = [1, 1]} : vector<8x128xf32> to vector<8x32xf32>
    %cst_67 = arith.constant dense<0.000000e+00> : vector<8x8xf32>
    %201 = tpu.matmul %199, %200, %cst_67 {dimension_numbers = #tpu.dot_dimension_numbers<[1], [1], [0], [0], [0, 0, 1, 0], [], []>} : vector<8x32xf32>, vector<8x32xf32>, vector<8x8xf32> -> vector<8x8xf32>
    %cst_68 = arith.constant dense<0xFF800000> : vector<8xf32>
    %202 = vector.multi_reduction <maximumf>, %201, %cst_68 [1] : vector<8x8xf32> to vector<8xf32>
    %203 = vector.shape_cast %202 : vector<8xf32> to vector<8x1xf32>
    %204 = vector.broadcast %203 : vector<8x1xf32> to vector<8x8xf32>
    %205 = arith.subf %201, %204 : vector<8x8xf32>
    %206 = math.exp %205 : vector<8x8xf32>
    %cst_69 = arith.constant dense<0.000000e+00> : vector<8xf32>
    %207 = vector.multi_reduction <add>, %206, %cst_69 [1] : vector<8x8xf32> to vector<8xf32>
    %208 = vector.shape_cast %207 : vector<8xf32> to vector<8x1xf32>
    %209 = vector.broadcast %208 : vector<8x1xf32> to vector<8x8xf32>
    %210 = arith.divf %206, %209 : vector<8x8xf32>
    %211 = vector.extract_strided_slice %168 {offsets = [0, 64], sizes = [8, 32], strides = [1, 1]} : vector<8x128xf32> to vector<8x32xf32>
    %cst_70 = arith.constant dense<0.000000e+00> : vector<8x32xf32>
    %212 = tpu.matmul %210, %211, %cst_70 {dimension_numbers = #tpu.dot_dimension_numbers<[1], [0], [0], [1], [0, 0, 1, 1], [], []>} : vector<8x8xf32>, vector<8x32xf32>, vector<8x32xf32> -> vector<8x32xf32>
    %213 = vector.extract_strided_slice %170 {offsets = [0, 96], sizes = [8, 32], strides = [1, 1]} : vector<8x128xf32> to vector<8x32xf32>
    %214 = vector.extract_strided_slice %167 {offsets = [0, 96], sizes = [8, 32], strides = [1, 1]} : vector<8x128xf32> to vector<8x32xf32>
    %cst_71 = arith.constant dense<0.000000e+00> : vector<8x8xf32>
    %215 = tpu.matmul %213, %214, %cst_71 {dimension_numbers = #tpu.dot_dimension_numbers<[1], [1], [0], [0], [0, 0, 1, 0], [], []>} : vector<8x32xf32>, vector<8x32xf32>, vector<8x8xf32> -> vector<8x8xf32>
    %cst_72 = arith.constant dense<0xFF800000> : vector<8xf32>
    %216 = vector.multi_reduction <maximumf>, %215, %cst_72 [1] : vector<8x8xf32> to vector<8xf32>
    %217 = vector.shape_cast %216 : vector<8xf32> to vector<8x1xf32>
    %218 = vector.broadcast %217 : vector<8x1xf32> to vector<8x8xf32>
    %219 = arith.subf %215, %218 : vector<8x8xf32>
    %220 = math.exp %219 : vector<8x8xf32>
    %cst_73 = arith.constant dense<0.000000e+00> : vector<8xf32>
    %221 = vector.multi_reduction <add>, %220, %cst_73 [1] : vector<8x8xf32> to vector<8xf32>
    %222 = vector.shape_cast %221 : vector<8xf32> to vector<8x1xf32>
    %223 = vector.broadcast %222 : vector<8x1xf32> to vector<8x8xf32>
    %224 = arith.divf %220, %223 : vector<8x8xf32>
    %225 = vector.extract_strided_slice %168 {offsets = [0, 96], sizes = [8, 32], strides = [1, 1]} : vector<8x128xf32> to vector<8x32xf32>
    %cst_74 = arith.constant dense<0.000000e+00> : vector<8x32xf32>
    %226 = tpu.matmul %224, %225, %cst_74 {dimension_numbers = #tpu.dot_dimension_numbers<[1], [0], [0], [1], [0, 0, 1, 1], [], []>} : vector<8x8xf32>, vector<8x32xf32>, vector<8x32xf32> -> vector<8x32xf32>
    %227 = tpu.concatenate %184, %198, %212, %226 in 1 : vector<8x32xf32>, vector<8x32xf32>, vector<8x32xf32>, vector<8x32xf32> -> vector<8x128xf32>
    %c0_75 = arith.constant 0 : index
    %c0_76 = arith.constant 0 : index
    %c128_77 = arith.constant 128 : index
    %228 = vector.load %arg21[%c0_75, %c0_76, %c128_77] : memref<1x128x256xf32, #tpu.memory_space<vmem>>, vector<1x128x128xf32>
    %229 = vector.shape_cast %228 : vector<1x128x128xf32> to vector<128x128xf32>
    %cst_78 = arith.constant dense<0.000000e+00> : vector<8x128xf32>
    %230 = tpu.matmul %227, %229, %cst_78 {dimension_numbers = #tpu.dot_dimension_numbers<[1], [0], [0], [1], [0, 0, 1, 1], [], []>} : vector<8x128xf32>, vector<128x128xf32>, vector<8x128xf32> -> vector<8x128xf32>
    %231 = arith.addf %230, %136 : vector<8x128xf32>
    %232 = vector.extract_strided_slice %16 {offsets = [6, 0], sizes = [1, 128], strides = [1, 1]} : vector<8x128xf32> to vector<1x128xf32>
    %233 = vector.extract_strided_slice %16 {offsets = [7, 0], sizes = [1, 128], strides = [1, 1]} : vector<8x128xf32> to vector<1x128xf32>
    %cst_79 = arith.constant dense<0.000000e+00> : vector<8xf32>
    %234 = vector.multi_reduction <add>, %231, %cst_79 [1] : vector<8x128xf32> to vector<8xf32>
    %235 = vector.shape_cast %234 : vector<8xf32> to vector<8x1xf32>
    %cst_80 = arith.constant 1.280000e+02 : f32
    %236 = vector.broadcast %cst_80 : f32 to vector<8x1xf32>
    %237 = arith.divf %235, %236 : vector<8x1xf32>
    %238 = vector.broadcast %237 : vector<8x1xf32> to vector<8x128xf32>
    %239 = arith.subf %231, %238 : vector<8x128xf32>
    %240 = arith.mulf %239, %239 : vector<8x128xf32>
    %cst_81 = arith.constant dense<0.000000e+00> : vector<8xf32>
    %241 = vector.multi_reduction <add>, %240, %cst_81 [1] : vector<8x128xf32> to vector<8xf32>
    %242 = vector.shape_cast %241 : vector<8xf32> to vector<8x1xf32>
    %cst_82 = arith.constant 1.280000e+02 : f32
    %243 = vector.broadcast %cst_82 : f32 to vector<8x1xf32>
    %244 = arith.divf %242, %243 : vector<8x1xf32>
    %245 = vector.broadcast %237 : vector<8x1xf32> to vector<8x128xf32>
    %246 = arith.subf %231, %245 : vector<8x128xf32>
    %cst_83 = arith.constant 9.99999974E-6 : f32
    %247 = vector.broadcast %cst_83 : f32 to vector<8x1xf32>
    %248 = arith.addf %244, %247 : vector<8x1xf32>
    %249 = math.rsqrt %248 : vector<8x1xf32>
    %250 = vector.broadcast %249 : vector<8x1xf32> to vector<8x128xf32>
    %251 = arith.mulf %246, %250 : vector<8x128xf32>
    %252 = vector.broadcast %232 : vector<1x128xf32> to vector<8x128xf32>
    %253 = arith.mulf %251, %252 : vector<8x128xf32>
    %254 = vector.broadcast %233 : vector<1x128xf32> to vector<8x128xf32>
    %255 = arith.addf %253, %254 : vector<8x128xf32>
    %c0_84 = arith.constant 0 : index
    %c0_85 = arith.constant 0 : index
    %c768 = arith.constant 768 : index
    %256 = vector.load %arg20[%c0_84, %c0_85, %c768] : memref<1x128x1024xf32, #tpu.memory_space<vmem>>, vector<1x128x256xf32>
    %257 = vector.shape_cast %256 : vector<1x128x256xf32> to vector<128x256xf32>
    %cst_86 = arith.constant dense<0.000000e+00> : vector<8x256xf32>
    %258 = tpu.matmul %255, %257, %cst_86 {dimension_numbers = #tpu.dot_dimension_numbers<[1], [0], [0], [1], [0, 0, 1, 1], [], []>} : vector<8x128xf32>, vector<128x256xf32>, vector<8x256xf32> -> vector<8x256xf32>
    %cst_87 = arith.constant 5.000000e-01 : f32
    %259 = vector.broadcast %cst_87 : f32 to vector<8x256xf32>
    %260 = arith.mulf %259, %258 : vector<8x256xf32>
    %cst_88 = arith.constant 0.707106769 : f32
    %261 = vector.broadcast %cst_88 : f32 to vector<8x256xf32>
    %262 = arith.mulf %258, %261 : vector<8x256xf32>
    %cst_89 = arith.constant 0.000000e+00 : f32
    %263 = vector.broadcast %cst_89 : f32 to vector<8x256xf32>
    %264 = arith.cmpf oge, %262, %263 : vector<8x256xf32>
    %cst_90 = arith.constant 1.000000e+00 : f32
    %cst_91 = arith.constant -1.000000e+00 : f32
    %265 = vector.broadcast %cst_90 : f32 to vector<8x256xf32>
    %266 = vector.broadcast %cst_91 : f32 to vector<8x256xf32>
    %267 = arith.select %264, %265, %266 : vector<8x256xi1>, vector<8x256xf32>
    %268 = math.absf %262 : vector<8x256xf32>
    %cst_92 = arith.constant 0.327591091 : f32
    %269 = vector.broadcast %cst_92 : f32 to vector<8x256xf32>
    %270 = arith.mulf %269, %268 : vector<8x256xf32>
    %cst_93 = arith.constant 1.000000e+00 : f32
    %271 = vector.broadcast %cst_93 : f32 to vector<8x256xf32>
    %272 = arith.addf %271, %270 : vector<8x256xf32>
    %cst_94 = arith.constant 1.000000e+00 : f32
    %273 = vector.broadcast %cst_94 : f32 to vector<8x256xf32>
    %274 = arith.divf %273, %272 : vector<8x256xf32>
    %cst_95 = arith.constant 1.06140542 : f32
    %275 = vector.broadcast %cst_95 : f32 to vector<8x256xf32>
    %276 = arith.mulf %274, %275 : vector<8x256xf32>
    %cst_96 = arith.constant -1.45315206 : f32
    %277 = vector.broadcast %cst_96 : f32 to vector<8x256xf32>
    %278 = arith.addf %277, %276 : vector<8x256xf32>
    %279 = arith.mulf %274, %278 : vector<8x256xf32>
    %cst_97 = arith.constant 1.42141378 : f32
    %280 = vector.broadcast %cst_97 : f32 to vector<8x256xf32>
    %281 = arith.addf %280, %279 : vector<8x256xf32>
    %282 = arith.mulf %274, %281 : vector<8x256xf32>
    %cst_98 = arith.constant -0.284496725 : f32
    %283 = vector.broadcast %cst_98 : f32 to vector<8x256xf32>
    %284 = arith.addf %283, %282 : vector<8x256xf32>
    %285 = arith.mulf %274, %284 : vector<8x256xf32>
    %cst_99 = arith.constant 0.254829586 : f32
    %286 = vector.broadcast %cst_99 : f32 to vector<8x256xf32>
    %287 = arith.addf %286, %285 : vector<8x256xf32>
    %288 = arith.mulf %274, %287 : vector<8x256xf32>
    %cst_100 = arith.constant 0.000000e+00 : f32
    %289 = vector.broadcast %cst_100 : f32 to vector<8x256xf32>
    %290 = arith.subf %289, %268 : vector<8x256xf32>
    %291 = arith.mulf %290, %268 : vector<8x256xf32>
    %292 = math.exp %291 : vector<8x256xf32>
    %293 = arith.mulf %288, %292 : vector<8x256xf32>
    %cst_101 = arith.constant 1.000000e+00 : f32
    %294 = vector.broadcast %cst_101 : f32 to vector<8x256xf32>
    %295 = arith.subf %294, %293 : vector<8x256xf32>
    %296 = arith.mulf %267, %295 : vector<8x256xf32>
    %cst_102 = arith.constant 1.000000e+00 : f32
    %297 = vector.broadcast %cst_102 : f32 to vector<8x256xf32>
    %298 = arith.addf %297, %296 : vector<8x256xf32>
    %299 = arith.mulf %260, %298 : vector<8x256xf32>
    %c0_103 = arith.constant 0 : index
    %c0_104 = arith.constant 0 : index
    %c0_105 = arith.constant 0 : index
    %300 = vector.load %arg22[%c0_103, %c0_104, %c0_105] : memref<1x256x128xf32, #tpu.memory_space<vmem>>, vector<1x256x128xf32>
    %301 = vector.shape_cast %300 : vector<1x256x128xf32> to vector<256x128xf32>
    %cst_106 = arith.constant dense<0.000000e+00> : vector<8x128xf32>
    %302 = tpu.matmul %299, %301, %cst_106 {dimension_numbers = #tpu.dot_dimension_numbers<[1], [0], [0], [1], [0, 0, 1, 1], [], []>} : vector<8x256xf32>, vector<256x128xf32>, vector<8x128xf32> -> vector<8x128xf32>
    %303 = arith.addf %302, %231 : vector<8x128xf32>
    %c0_107 = arith.constant 0 : index
    %c0_108 = arith.constant 0 : index
    %304 = vector.load %arg24[%c0_107, %c0_108] : memref<8x128xf32, #tpu.memory_space<vmem>>, vector<8x128xf32>
    tpu.vector_store %arg24[%c0_107, %c0_108], %303 {strides = array<i32>} : memref<8x128xf32, #tpu.memory_space<vmem>>, vector<8x128xf32>,
    %c3_i32 = arith.constant 3 : i32
    %305 = arith.cmpi eq, %arg0, %c3_i32 : i32
    %306 = arith.extui %305 : i1 to i32
    %c0_i32_109 = arith.constant 0 : i32
    %307 = arith.cmpi ne, %306, %c0_i32_109 : i32
    scf.if %307 {
      %c0_110 = arith.constant 0 : index
      %c0_111 = arith.constant 0 : index
      %308 = vector.load %arg15[%c0_110, %c0_111] : memref<1x128xf32, #tpu.memory_space<vmem>>, vector<1x128xf32>
      %c0_112 = arith.constant 0 : index
      %c0_113 = arith.constant 0 : index
      %309 = vector.load %arg16[%c0_112, %c0_113] : memref<1x128xf32, #tpu.memory_space<vmem>>, vector<1x128xf32>
      %cst_114 = arith.constant dense<0.000000e+00> : vector<8xf32>
      %310 = vector.multi_reduction <add>, %303, %cst_114 [1] : vector<8x128xf32> to vector<8xf32>
      %311 = vector.shape_cast %310 : vector<8xf32> to vector<8x1xf32>
      %cst_115 = arith.constant 1.280000e+02 : f32
      %312 = vector.broadcast %cst_115 : f32 to vector<8x1xf32>
      %313 = arith.divf %311, %312 : vector<8x1xf32>
      %314 = vector.broadcast %313 : vector<8x1xf32> to vector<8x128xf32>
      %315 = arith.subf %303, %314 : vector<8x128xf32>
      %316 = arith.mulf %315, %315 : vector<8x128xf32>
      %cst_116 = arith.constant dense<0.000000e+00> : vector<8xf32>
      %317 = vector.multi_reduction <add>, %316, %cst_116 [1] : vector<8x128xf32> to vector<8xf32>
      %318 = vector.shape_cast %317 : vector<8xf32> to vector<8x1xf32>
      %cst_117 = arith.constant 1.280000e+02 : f32
      %319 = vector.broadcast %cst_117 : f32 to vector<8x1xf32>
      %320 = arith.divf %318, %319 : vector<8x1xf32>
      %321 = vector.broadcast %313 : vector<8x1xf32> to vector<8x128xf32>
      %322 = arith.subf %303, %321 : vector<8x128xf32>
      %cst_118 = arith.constant 9.99999974E-6 : f32
      %323 = vector.broadcast %cst_118 : f32 to vector<8x1xf32>
      %324 = arith.addf %320, %323 : vector<8x1xf32>
      %325 = math.rsqrt %324 : vector<8x1xf32>
      %326 = vector.broadcast %325 : vector<8x1xf32> to vector<8x128xf32>
      %327 = arith.mulf %322, %326 : vector<8x128xf32>
      %328 = vector.broadcast %308 : vector<1x128xf32> to vector<8x128xf32>
      %329 = arith.mulf %327, %328 : vector<8x128xf32>
      %330 = vector.broadcast %309 : vector<1x128xf32> to vector<8x128xf32>
      %331 = arith.addf %329, %330 : vector<8x128xf32>
      %c0_119 = arith.constant 0 : index
      %c0_120 = arith.constant 0 : index
      %332 = vector.load %arg17[%c0_119, %c0_120] : memref<128x128xf32, #tpu.memory_space<vmem>>, vector<128x128xf32>
      %cst_121 = arith.constant dense<0.000000e+00> : vector<8x128xf32>
      %333 = tpu.matmul %331, %332, %cst_121 {dimension_numbers = #tpu.dot_dimension_numbers<[1], [0], [0], [1], [0, 0, 1, 1], [], []>} : vector<8x128xf32>, vector<128x128xf32>, vector<8x128xf32> -> vector<8x128xf32>
      %c0_122 = arith.constant 0 : index
      %c0_123 = arith.constant 0 : index
      %334 = vector.load %arg18[%c0_122, %c0_123] : memref<1x128xf32, #tpu.memory_space<vmem>>, vector<1x128xf32>
      %335 = vector.broadcast %334 : vector<1x128xf32> to vector<8x128xf32>
      %336 = arith.addf %333, %335 : vector<8x128xf32>
      %c0_124 = arith.constant 0 : index
      %c0_125 = arith.constant 0 : index
      %337 = vector.load %arg23[%c0_124, %c0_125] : memref<8x128xf32, #tpu.memory_space<vmem>>, vector<8x128xf32>
      tpu.vector_store %arg23[%c0_124, %c0_125], %336 {strides = array<i32>} : memref<8x128xf32, #tpu.memory_space<vmem>>, vector<8x128xf32>,
    } else {
    }
    return
  }
  func.func @transform_0(%arg0: i32) -> (i32, i32) {
    %c0_i32 = arith.constant 0 : i32
    %c0_i32_0 = arith.constant 0 : i32
    %c0_i32_1 = arith.constant 0 : i32
    return %c0_i32, %c0_i32_0 : i32, i32
  }
  func.func @transform_1(%arg0: i32) -> (i32, i32) {
    %c0_i32 = arith.constant 0 : i32
    %c0_i32_0 = arith.constant 0 : i32
    %c0_i32_1 = arith.constant 0 : i32
    return %c0_i32, %c0_i32_0 : i32, i32
  }
  func.func @transform_2(%arg0: i32) -> (i32, i32) {
    %c0_i32 = arith.constant 0 : i32
    %c0_i32_0 = arith.constant 0 : i32
    %c0_i32_1 = arith.constant 0 : i32
    return %c0_i32, %c0_i32_0 : i32, i32
  }
  func.func @transform_3(%arg0: i32) -> (i32, i32) {
    %c0_i32 = arith.constant 0 : i32
    %c0_i32_0 = arith.constant 0 : i32
    %c0_i32_1 = arith.constant 0 : i32
    return %c0_i32, %c0_i32_0 : i32, i32
  }
  func.func @transform_4(%arg0: i32) -> (i32, i32) {
    %c0_i32 = arith.constant 0 : i32
    %c0_i32_0 = arith.constant 0 : i32
    %c0_i32_1 = arith.constant 0 : i32
    return %c0_i32, %c0_i32_0 : i32, i32
  }
  func.func @transform_5(%arg0: i32) -> (i32, i32) {
    %c0_i32 = arith.constant 0 : i32
    %c0_i32_0 = arith.constant 0 : i32
    %c0_i32_1 = arith.constant 0 : i32
    return %c0_i32, %c0_i32_0 : i32, i32
  }
  func.func @transform_6(%arg0: i32) -> (i32, i32) {
    %c0_i32 = arith.constant 0 : i32
    %c0_i32_0 = arith.constant 0 : i32
    %c0_i32_1 = arith.constant 0 : i32
    return %c0_i32, %c0_i32_0 : i32, i32
  }
  func.func @transform_7(%arg0: i32) -> (i32, i32) {
    %c0_i32 = arith.constant 0 : i32
    %c0_i32_0 = arith.constant 0 : i32
    %c0_i32_1 = arith.constant 0 : i32
    return %c0_i32, %c0_i32_0 : i32, i32
  }
  func.func @transform_8(%arg0: i32) -> (i32, i32) {
    %c0_i32 = arith.constant 0 : i32
    %c0_i32_0 = arith.constant 0 : i32
    %c0_i32_1 = arith.constant 0 : i32
    return %c0_i32, %c0_i32_0 : i32, i32
  }
  func.func @transform_9(%arg0: i32) -> (i32, i32) {
    %c0_i32 = arith.constant 0 : i32
    %c0_i32_0 = arith.constant 0 : i32
    %c0_i32_1 = arith.constant 0 : i32
    return %c0_i32, %c0_i32_0 : i32, i32
  }
  func.func @transform_10(%arg0: i32) -> (i32, i32) {
    %c0_i32 = arith.constant 0 : i32
    %c0_i32_0 = arith.constant 0 : i32
    %c0_i32_1 = arith.constant 0 : i32
    return %c0_i32, %c0_i32_0 : i32, i32
  }
  func.func @transform_11(%arg0: i32) -> (i32, i32) {
    %c0_i32 = arith.constant 0 : i32
    %c0_i32_0 = arith.constant 0 : i32
    %c0_i32_1 = arith.constant 0 : i32
    return %c0_i32, %c0_i32_0 : i32, i32
  }
  func.func @transform_12(%arg0: i32) -> (i32, i32) {
    %c0_i32 = arith.constant 0 : i32
    %c0_i32_0 = arith.constant 0 : i32
    %c0_i32_1 = arith.constant 0 : i32
    return %c0_i32, %c0_i32_0 : i32, i32
  }
  func.func @transform_13(%arg0: i32) -> (i32, i32) {
    %c0_i32 = arith.constant 0 : i32
    %c0_i32_0 = arith.constant 0 : i32
    %c0_i32_1 = arith.constant 0 : i32
    return %c0_i32, %c0_i32_0 : i32, i32
  }
  func.func @transform_14(%arg0: i32) -> (i32, i32) {
    %c0_i32 = arith.constant 0 : i32
    %c0_i32_0 = arith.constant 0 : i32
    %c0_i32_1 = arith.constant 0 : i32
    return %c0_i32, %c0_i32_0 : i32, i32
  }
  func.func @transform_15(%arg0: i32) -> (i32, i32) {
    %c0_i32 = arith.constant 0 : i32
    %c0_i32_0 = arith.constant 0 : i32
    %c0_i32_1 = arith.constant 0 : i32
    return %c0_i32, %c0_i32_0 : i32, i32
  }
  func.func @transform_16(%arg0: i32) -> (i32, i32) {
    %c0_i32 = arith.constant 0 : i32
    %c0_i32_0 = arith.constant 0 : i32
    %c0_i32_1 = arith.constant 0 : i32
    return %c0_i32, %c0_i32_0 : i32, i32
  }
  func.func @transform_17(%arg0: i32) -> (i32, i32) {
    %c0_i32 = arith.constant 0 : i32
    %c0_i32_0 = arith.constant 0 : i32
    %c0_i32_1 = arith.constant 0 : i32
    return %c0_i32, %c0_i32_0 : i32, i32
  }
  func.func @transform_18(%arg0: i32) -> (i32, i32, i32) {
    %c0_i32 = arith.constant 0 : i32
    %c0_i32_0 = arith.constant 0 : i32
    %c0_i32_1 = arith.constant 0 : i32
    return %arg0, %c0_i32, %c0_i32_0 : i32, i32, i32
  }
  func.func @transform_19(%arg0: i32) -> (i32, i32, i32) {
    %c0_i32 = arith.constant 0 : i32
    %c0_i32_0 = arith.constant 0 : i32
    %c0_i32_1 = arith.constant 0 : i32
    return %arg0, %c0_i32, %c0_i32_0 : i32, i32, i32
  }
  func.func @transform_20(%arg0: i32) -> (i32, i32, i32) {
    %c0_i32 = arith.constant 0 : i32
    %c0_i32_0 = arith.constant 0 : i32
    %c0_i32_1 = arith.constant 0 : i32
    return %arg0, %c0_i32, %c0_i32_0 : i32, i32, i32
  }
  func.func @transform_21(%arg0: i32) -> (i32, i32, i32) {
    %c0_i32 = arith.constant 0 : i32
    %c0_i32_0 = arith.constant 0 : i32
    %c0_i32_1 = arith.constant 0 : i32
    return %arg0, %c0_i32, %c0_i32_0 : i32, i32, i32
  }
  func.func @transform_22(%arg0: i32) -> (i32, i32) {
    %c0_i32 = arith.constant 0 : i32
    %c0_i32_0 = arith.constant 0 : i32
    %c0_i32_1 = arith.constant 0 : i32
    return %c0_i32, %c0_i32_0 : i32, i32
  }
}

</mosaic_0001>

<llo_original>
// kernel: tpu_custom_call.1
$region0: #{tpu_custom_call.1}
  #allocation0 [shape = 'u32[]', space=smem, size = 0x4, offset = 0x4, fixed_abs, tag = 'smem constant byte address 0x4 - core index']
  #allocation1 [shape = 'u32[144,128]{1,0:T(1,128)}', space=vmem, size = 0x12000, scoped, tag = 'internal scratch']
  #allocation2 [shape = 'f32[8,128]{1,0:T(8,128)}', space=vmem, size = 0x1000, scoped, tag = 'scratch operand']
  #allocation3 [shape = 'f32[4,128]{1,0:T(4,128)}', space=vmem, size = 0x800, scoped, tag = 'scratch operand']
  #allocation4 [shape = 'f32[4,128]{1,0:T(4,128)}', space=vmem, size = 0x800, scoped, tag = 'scratch operand']
  %s0 = inlined_call_operand.hbm [shape: f32[2,128], index: 0, kind: input, shape index: {}]
  %s1 = inlined_call_operand.hbm [shape: f32[8,64], index: 1, kind: input, shape index: {}]
  %s2 = inlined_call_operand.hbm [shape: f32[1,128], index: 2, kind: input, shape index: {}]
  %s3 = inlined_call_operand.hbm [shape: f32[1,128], index: 3, kind: input, shape index: {}]
  %s4 = inlined_call_operand.hbm [shape: f32[128,128], index: 4, kind: input, shape index: {}]
  %s5 = inlined_call_operand.hbm [shape: f32[1,128], index: 5, kind: input, shape index: {}]
  %s6 = inlined_call_operand.hbm [shape: f32[1,128], index: 6, kind: input, shape index: {}]
  %s7 = inlined_call_operand.hbm [shape: f32[1,128], index: 7, kind: input, shape index: {}]
  %s8 = inlined_call_operand.hbm [shape: f32[128,512], index: 8, kind: input, shape index: {}]
  %s9 = inlined_call_operand.hbm [shape: f32[1,512], index: 9, kind: input, shape index: {}]
  %s10 = inlined_call_operand.hbm [shape: f32[1,64], index: 10, kind: input, shape index: {}]
  %s11 = inlined_call_operand.hbm [shape: f32[1,64], index: 11, kind: input, shape index: {}]
  %s12 = inlined_call_operand.hbm [shape: f32[64,128], index: 12, kind: input, shape index: {}]
  %s13 = inlined_call_operand.hbm [shape: f32[1,128], index: 13, kind: input, shape index: {}]
  %s14 = inlined_call_operand.hbm [shape: f32[1,128], index: 14, kind: input, shape index: {}]
  %s15 = inlined_call_operand.hbm [shape: f32[1,128], index: 15, kind: input, shape index: {}]
  %s16 = inlined_call_operand.hbm [shape: f32[128,128], index: 16, kind: input, shape index: {}]
  %s17 = inlined_call_operand.hbm [shape: f32[1,128], index: 17, kind: input, shape index: {}]
  %s18 = inlined_call_operand.hbm [shape: f32[4,8,128], index: 18, kind: input, shape index: {}]
  %s19 = inlined_call_operand.hbm [shape: f32[4,128,1024], index: 19, kind: input, shape index: {}]
  %s20 = inlined_call_operand.hbm [shape: f32[4,128,256], index: 20, kind: input, shape index: {}]
  %s21 = inlined_call_operand.hbm [shape: f32[4,256,128], index: 21, kind: input, shape index: {}]
  %s22 = inlined_call_operand.hbm [shape: f32[8,128], index: 22, kind: output, shape index: {}]
  %s23 = sld [smem:[#allocation0]]
  $region217: #{tpu_custom_call.1} parent=0
    _
  %s25 = ssub.s32 1, %s23
  %s26 = scalar_select 0, %s25, %s23
  $region1: #{tpu_custom_call.1} parent=0
    #allocation5 [shape = 'u8[1024]{0}', space=vmem, size = 0x400, scoped, tag = 'input window, operand 0, single buffered']
    #allocation6 [shape = 's32[2]{0}', space=sflag, size = 0x8, scoped, tag = 'scoped memory for tpu_custom_call.1']
    #allocation7 [shape = 's32[2]{0}', space=sflag, size = 0x8, scoped, tag = 'scoped memory for tpu_custom_call.1']
    #allocation8 [shape = 'u8[4096]{0}', space=vmem, size = 0x1000, scoped, tag = 'input window, operand 1, single buffered']
    #allocation9 [shape = 's32[1]{0}', space=sflag, size = 0x4, scoped, tag = 'scoped memory for tpu_custom_call.1']
    #allocation10 [shape = 'u8[512]{0}', space=vmem, size = 0x400, scoped, tag = 'input window, operand 2, single buffered']
    #allocation11 [shape = 'u8[512]{0}', space=vmem, size = 0x400, scoped, tag = 'input window, operand 3, single buffered']
    #allocation12 [shape = 's32[1]{0}', space=sflag, size = 0x4, scoped, tag = 'scoped memory for tpu_custom_call.1']
    #allocation13 [shape = 'u8[65536]{0}', space=vmem, size = 0x10000, scoped, tag = 'input window, operand 4, single buffered']
    #allocation14 [shape = 'u8[512]{0}', space=vmem, size = 0x400, scoped, tag = 'input window, operand 5, single buffered']
    #allocation15 [shape = 's32[1]{0}', space=sflag, size = 0x4, scoped, tag = 'scoped memory for tpu_custom_call.1']
    #allocation16 [shape = 'u8[512]{0}', space=vmem, size = 0x400, scoped, tag = 'input window, operand 6, single buffered']
    #allocation17 [shape = 'u8[512]{0}', space=vmem, size = 0x400, scoped, tag = 'input window, operand 7, single buffered']
    #allocation18 [shape = 's32[1]{0}', space=sflag, size = 0x4, scoped, tag = 'scoped memory for tpu_custom_call.1']
    #allocation19 [shape = 'u8[262144]{0}', space=vmem, size = 0x40000, scoped, tag = 'input window, operand 8, single buffered']
    #allocation20 [shape = 'u8[2048]{0}', space=vmem, size = 0x800, scoped, tag = 'input window, operand 9, single buffered']
    #allocation21 [shape = 's32[1]{0}', space=sflag, size = 0x4, scoped, tag = 'scoped memory for tpu_custom_call.1']
    #allocation22 [shape = 'u8[512]{0}', space=vmem, size = 0x400, scoped, tag = 'input window, operand 10, single buffered']
    #allocation23 [shape = 'u8[512]{0}', space=vmem, size = 0x400, scoped, tag = 'input window, operand 11, single buffered']
    #allocation24 [shape = 's32[1]{0}', space=sflag, size = 0x4, scoped, tag = 'scoped memory for tpu_custom_call.1']
    #allocation25 [shape = 'u8[32768]{0}', space=vmem, size = 0x8000, scoped, tag = 'input window, operand 12, single buffered']
    #allocation26 [shape = 'u8[512]{0}', space=vmem, size = 0x400, scoped, tag = 'input window, operand 13, single buffered']
    #allocation27 [shape = 's32[1]{0}', space=sflag, size = 0x4, scoped, tag = 'scoped memory for tpu_custom_call.1']
    #allocation28 [shape = 'u8[512]{0}', space=vmem, size = 0x400, scoped, tag = 'input window, operand 14, single buffered']
    #allocation29 [shape = 'u8[512]{0}', space=vmem, size = 0x400, scoped, tag = 'input window, operand 15, single buffered']
    #allocation30 [shape = 's32[1]{0}', space=sflag, size = 0x4, scoped, tag = 'scoped memory for tpu_custom_call.1']
    #allocation31 [shape = 'u8[65536]{0}', space=vmem, size = 0x10000, scoped, tag = 'input window, operand 16, single buffered']
    #allocation32 [shape = 'u8[512]{0}', space=vmem, size = 0x400, scoped, tag = 'input window, operand 17, single buffered']
    #allocation33 [shape = 's32[1]{0}', space=sflag, size = 0x4, scoped, tag = 'scoped memory for tpu_custom_call.1']
    #allocation34 [shape = 'u8[8192]{0}', space=vmem, size = 0x2000, scoped, tag = 'input window, operand 18']
    #allocation35 [shape = 'u8[1048576]{0}', space=vmem, size = 0x100000, scoped, tag = 'input window, operand 19']
    #allocation36 [shape = 'u8[262144]{0}', space=vmem, size = 0x40000, scoped, tag = 'input window, operand 20']
    #allocation37 [shape = 'u8[262144]{0}', space=vmem, size = 0x40000, scoped, tag = 'input window, operand 21']
    #allocation38 [shape = 'u8[4096]{0}', space=vmem, size = 0x1000, scoped, tag = 'output window, operand 0, single buffered']
    %27 = vsyncpa [#allocation6], 0
    %28 = vsyncpa [#allocation9], 0
    %29 = vsyncpa [#allocation12], 0
    %30 = vsyncpa [#allocation15], 0
    %31 = vsyncpa [#allocation18], 0
    %32 = vsyncpa [#allocation21], 0
    %33 = vsyncpa [#allocation24], 0
    %34 = vsyncpa [#allocation27], 0
    %35 = vsyncpa [#allocation30], 0
    %36 = vsyncpa [#allocation33], 0
    %37 = vsyncpa [#allocation7], 0
    loop: start=0, step=1, limit=6
    $region2: #{tpu_custom_call.1} parent=1 // loop_pre_header
      _
    $region3: #{tpu_custom_call.1} parent=1 // loop_header
      %s39 = sphi 0, %s43
      %p40 = scmp.ge.s32.totalorder %s39, 6
      %s47 = sphi 0, %s47
      %s49 = sphi 0, %s47
      %s50 = sphi 0, %s49
      %s64 = sphi 0, %s50
      %s68 = sphi 0, %s68
      %s70 = sphi 0, %s68
      %s71 = sphi 0, %s70
      %s85 = sphi 0, %s71
      %s89 = sphi 0, %s89
      %s91 = sphi 0, %s89
      %s92 = sphi 0, %s91
      %s106 = sphi 0, %s92
      %s110 = sphi 0, %s110
      %s112 = sphi 0, %s110
      %s113 = sphi 0, %s112
      %s127 = sphi 0, %s113
      %s131 = sphi 0, %s131
      %s133 = sphi 0, %s131
      %s134 = sphi 0, %s133
      %s148 = sphi 0, %s134
      %s152 = sphi 0, %s152
      %s154 = sphi 0, %s152
      %s155 = sphi 0, %s154
      %s169 = sphi 0, %s155
      %s173 = sphi 0, %s173
      %s175 = sphi 0, %s173
      %s176 = sphi 0, %s175
      %s190 = sphi 0, %s176
      %s194 = sphi 0, %s194
      %s196 = sphi 0, %s194
      %s197 = sphi 0, %s196
      %s211 = sphi 0, %s197
      %s215 = sphi 0, %s215
      %s217 = sphi 0, %s215
      %s218 = sphi 0, %s217
      %s232 = sphi 0, %s218
      %s236 = sphi 0, %s236
      %s238 = sphi 0, %s236
      %s239 = sphi 0, %s238
      %s253 = sphi 0, %s239
      %s257 = sphi 0, %s257
      %s259 = sphi 0, %s257
      %s260 = sphi 0, %s259
      %s274 = sphi 0, %s260
      %s278 = sphi 0, %s278
      %s280 = sphi 0, %s278
      %s281 = sphi 0, %s280
      %s295 = sphi 0, %s281
      %s299 = sphi 0, %s299
      %s301 = sphi 0, %s299
      %s302 = sphi 0, %s301
      %s316 = sphi 0, %s302
      %s320 = sphi 0, %s320
      %s322 = sphi 0, %s320
      %s323 = sphi 0, %s322
      %s337 = sphi 0, %s323
      %s341 = sphi 0, %s341
      %s343 = sphi 0, %s341
      %s344 = sphi 0, %s343
      %s358 = sphi 0, %s344
      %s362 = sphi 0, %s362
      %s364 = sphi 0, %s362
      %s365 = sphi 0, %s364
      %s379 = sphi 0, %s365
      %s383 = sphi 0, %s383
      %s385 = sphi 0, %s383
      %s386 = sphi 0, %s385
      %s400 = sphi 0, %s386
      %s404 = sphi 0, %s404
      %s406 = sphi 0, %s404
      %s407 = sphi 0, %s406
      %s421 = sphi 0, %s407
      %s427 = sphi 0, %s429
      %s430 = sphi 0, %s427
      %s431 = sphi 0, %s430
      %s447 = sphi 0, %s431
      %s453 = sphi 0, %s455
      %s456 = sphi 0, %s453
      %s457 = sphi 0, %s456
      %s473 = sphi 0, %s457
      %s479 = sphi 0, %s481
      %s482 = sphi 0, %s479
      %s483 = sphi 0, %s482
      %s499 = sphi 0, %s483
      %s505 = sphi 0, %s507
      %s508 = sphi 0, %s505
      %s509 = sphi 0, %s508
      %s525 = sphi 0, %s509
      %s529 = sphi 0, %s529
      %s531 = sphi 0, %s529
      %s532 = sphi 0, %s531
      %s546 = sphi 0, %s532
    $region4: #{tpu_custom_call.1} parent=1 // loop_header_branch
      %42 = sbr.rel (%p40) target = $region8
    $region5: #{tpu_custom_call.1} parent=1 // loop_body
      %s44 = ssub.s32 %s39, 1
      %s45 = ssub.s32 %s39, 2
      %s46 = sadd.s32 %s39, 1
      %s48 = sadd.s32 %s47, 1
      %p51 = scmp.eq.s32.totalorder %s39, 3
      %p52 = scmp.ne.s32.totalorder %s47, %s49
      %p53 = scmp.eq.s32.totalorder %s39, 0
      %p54 = por %p52, %p53
      %p55 = scmp.ne.s32.totalorder %s47, %s49
      %p56 = scmp.eq.s32.totalorder %s44, 3
      %p57 = por %p55, %p56
      %p58 = scmp.ne.s32.totalorder %s49, %s50
      %p59 = scmp.eq.s32.totalorder %s44, 0
      %p60 = por %p58, %p59
      %p61 = scmp.ne.s32.totalorder %s49, %s50
      %p62 = scmp.eq.s32.totalorder %s45, 3
      %p63 = por %p61, %p62
      %p65 = scmp.ne.s32.totalorder %s50, %s64
      %p66 = scmp.eq.s32.totalorder %s45, 0
      %p67 = por %p65, %p66
      %s69 = sadd.s32 %s68, 1
      %p72 = scmp.eq.s32.totalorder %s39, 3
      %p73 = scmp.ne.s32.totalorder %s68, %s70
      %p74 = scmp.eq.s32.totalorder %s39, 0
      %p75 = por %p73, %p74
      %p76 = scmp.ne.s32.totalorder %s68, %s70
      %p77 = scmp.eq.s32.totalorder %s44, 3
      %p78 = por %p76, %p77
      %p79 = scmp.ne.s32.totalorder %s70, %s71
      %p80 = scmp.eq.s32.totalorder %s44, 0
      %p81 = por %p79, %p80
      %p82 = scmp.ne.s32.totalorder %s70, %s71
      %p83 = scmp.eq.s32.totalorder %s45, 3
      %p84 = por %p82, %p83
      %p86 = scmp.ne.s32.totalorder %s71, %s85
      %p87 = scmp.eq.s32.totalorder %s45, 0
      %p88 = por %p86, %p87
      %s90 = sadd.s32 %s89, 1
      %p93 = scmp.eq.s32.totalorder %s39, 3
      %p94 = scmp.ne.s32.totalorder %s89, %s91
      %p95 = scmp.eq.s32.totalorder %s39, 0
      %p96 = por %p94, %p95
      %p97 = scmp.ne.s32.totalorder %s89, %s91
      %p98 = scmp.eq.s32.totalorder %s44, 3
      %p99 = por %p97, %p98
      %p100 = scmp.ne.s32.totalorder %s91, %s92
      %p101 = scmp.eq.s32.totalorder %s44, 0
      %p102 = por %p100, %p101
      %p103 = scmp.ne.s32.totalorder %s91, %s92
      %p104 = scmp.eq.s32.totalorder %s45, 3
      %p105 = por %p103, %p104
      %p107 = scmp.ne.s32.totalorder %s92, %s106
      %p108 = scmp.eq.s32.totalorder %s45, 0
      %p109 = por %p107, %p108
      %s111 = sadd.s32 %s110, 1
      %p114 = scmp.eq.s32.totalorder %s39, 3
      %p115 = scmp.ne.s32.totalorder %s110, %s112
      %p116 = scmp.eq.s32.totalorder %s39, 0
      %p117 = por %p115, %p116
      %p118 = scmp.ne.s32.totalorder %s110, %s112
      %p119 = scmp.eq.s32.totalorder %s44, 3
      %p120 = por %p118, %p119
      %p121 = scmp.ne.s32.totalorder %s112, %s113
      %p122 = scmp.eq.s32.totalorder %s44, 0
      %p123 = por %p121, %p122
      %p124 = scmp.ne.s32.totalorder %s112, %s113
      %p125 = scmp.eq.s32.totalorder %s45, 3
      %p126 = por %p124, %p125
      %p128 = scmp.ne.s32.totalorder %s113, %s127
      %p129 = scmp.eq.s32.totalorder %s45, 0
      %p130 = por %p128, %p129
      %s132 = sadd.s32 %s131, 1
      %p135 = scmp.eq.s32.totalorder %s39, 3
      %p136 = scmp.ne.s32.totalorder %s131, %s133
      %p137 = scmp.eq.s32.totalorder %s39, 0
      %p138 = por %p136, %p137
      %p139 = scmp.ne.s32.totalorder %s131, %s133
      %p140 = scmp.eq.s32.totalorder %s44, 3
      %p141 = por %p139, %p140
      %p142 = scmp.ne.s32.totalorder %s133, %s134
      %p143 = scmp.eq.s32.totalorder %s44, 0
      %p144 = por %p142, %p143
      %p145 = scmp.ne.s32.totalorder %s133, %s134
      %p146 = scmp.eq.s32.totalorder %s45, 3
      %p147 = por %p145, %p146
      %p149 = scmp.ne.s32.totalorder %s134, %s148
      %p150 = scmp.eq.s32.totalorder %s45, 0
      %p151 = por %p149, %p150
      %s153 = sadd.s32 %s152, 1
      %p156 = scmp.eq.s32.totalorder %s39, 3
      %p157 = scmp.ne.s32.totalorder %s152, %s154
      %p158 = scmp.eq.s32.totalorder %s39, 0
      %p159 = por %p157, %p158
      %p160 = scmp.ne.s32.totalorder %s152, %s154
      %p161 = scmp.eq.s32.totalorder %s44, 3
      %p162 = por %p160, %p161
      %p163 = scmp.ne.s32.totalorder %s154, %s155
      %p164 = scmp.eq.s32.totalorder %s44, 0
      %p165 = por %p163, %p164
      %p166 = scmp.ne.s32.totalorder %s154, %s155
      %p167 = scmp.eq.s32.totalorder %s45, 3
      %p168 = por %p166, %p167
      %p170 = scmp.ne.s32.totalorder %s155, %s169
      %p171 = scmp.eq.s32.totalorder %s45, 0
      %p172 = por %p170, %p171
      %s174 = sadd.s32 %s173, 1
      %p177 = scmp.eq.s32.totalorder %s39, 3
      %p178 = scmp.ne.s32.totalorder %s173, %s175
      %p179 = scmp.eq.s32.totalorder %s39, 0
      %p180 = por %p178, %p179
      %p181 = scmp.ne.s32.totalorder %s173, %s175
      %p182 = scmp.eq.s32.totalorder %s44, 3
      %p183 = por %p181, %p182
      %p184 = scmp.ne.s32.totalorder %s175, %s176
      %p185 = scmp.eq.s32.totalorder %s44, 0
      %p186 = por %p184, %p185
      %p187 = scmp.ne.s32.totalorder %s175, %s176
      %p188 = scmp.eq.s32.totalorder %s45, 3
      %p189 = por %p187, %p188
      %p191 = scmp.ne.s32.totalorder %s176, %s190
      %p192 = scmp.eq.s32.totalorder %s45, 0
      %p193 = por %p191, %p192
      %s195 = sadd.s32 %s194, 1
      %p198 = scmp.eq.s32.totalorder %s39, 3
      %p199 = scmp.ne.s32.totalorder %s194, %s196
      %p200 = scmp.eq.s32.totalorder %s39, 0
      %p201 = por %p199, %p200
      %p202 = scmp.ne.s32.totalorder %s194, %s196
      %p203 = scmp.eq.s32.totalorder %s44, 3
      %p204 = por %p202, %p203
      %p205 = scmp.ne.s32.totalorder %s196, %s197
      %p206 = scmp.eq.s32.totalorder %s44, 0
      %p207 = por %p205, %p206
      %p208 = scmp.ne.s32.totalorder %s196, %s197
      %p209 = scmp.eq.s32.totalorder %s45, 3
      %p210 = por %p208, %p209
      %p212 = scmp.ne.s32.totalorder %s197, %s211
      %p213 = scmp.eq.s32.totalorder %s45, 0
      %p214 = por %p212, %p213
      %s216 = sadd.s32 %s215, 1
      %p219 = scmp.eq.s32.totalorder %s39, 3
      %p220 = scmp.ne.s32.totalorder %s215, %s217
      %p221 = scmp.eq.s32.totalorder %s39, 0
      %p222 = por %p220, %p221
      %p223 = scmp.ne.s32.totalorder %s215, %s217
      %p224 = scmp.eq.s32.totalorder %s44, 3
      %p225 = por %p223, %p224
      %p226 = scmp.ne.s32.totalorder %s217, %s218
      %p227 = scmp.eq.s32.totalorder %s44, 0
      %p228 = por %p226, %p227
      %p229 = scmp.ne.s32.totalorder %s217, %s218
      %p230 = scmp.eq.s32.totalorder %s45, 3
      %p231 = por %p229, %p230
      %p233 = scmp.ne.s32.totalorder %s218, %s232
      %p234 = scmp.eq.s32.totalorder %s45, 0
      %p235 = por %p233, %p234
      %s237 = sadd.s32 %s236, 1
      %p240 = scmp.eq.s32.totalorder %s39, 3
      %p241 = scmp.ne.s32.totalorder %s236, %s238
      %p242 = scmp.eq.s32.totalorder %s39, 0
      %p243 = por %p241, %p242
      %p244 = scmp.ne.s32.totalorder %s236, %s238
      %p245 = scmp.eq.s32.totalorder %s44, 3
      %p246 = por %p244, %p245
      %p247 = scmp.ne.s32.totalorder %s238, %s239
      %p248 = scmp.eq.s32.totalorder %s44, 0
      %p249 = por %p247, %p248
      %p250 = scmp.ne.s32.totalorder %s238, %s239
      %p251 = scmp.eq.s32.totalorder %s45, 3
      %p252 = por %p250, %p251
      %p254 = scmp.ne.s32.totalorder %s239, %s253
      %p255 = scmp.eq.s32.totalorder %s45, 0
      %p256 = por %p254, %p255
      %s258 = sadd.s32 %s257, 1
      %p261 = scmp.eq.s32.totalorder %s39, 3
      %p262 = scmp.ne.s32.totalorder %s257, %s259
      %p263 = scmp.eq.s32.totalorder %s39, 0
      %p264 = por %p262, %p263
      %p265 = scmp.ne.s32.totalorder %s257, %s259
      %p266 = scmp.eq.s32.totalorder %s44, 3
      %p267 = por %p265, %p266
      %p268 = scmp.ne.s32.totalorder %s259, %s260
      %p269 = scmp.eq.s32.totalorder %s44, 0
      %p270 = por %p268, %p269
      %p271 = scmp.ne.s32.totalorder %s259, %s260
      %p272 = scmp.eq.s32.totalorder %s45, 3
      %p273 = por %p271, %p272
      %p275 = scmp.ne.s32.totalorder %s260, %s274
      %p276 = scmp.eq.s32.totalorder %s45, 0
      %p277 = por %p275, %p276
      %s279 = sadd.s32 %s278, 1
      %p282 = scmp.eq.s32.totalorder %s39, 3
      %p283 = scmp.ne.s32.totalorder %s278, %s280
      %p284 = scmp.eq.s32.totalorder %s39, 0
      %p285 = por %p283, %p284
      %p286 = scmp.ne.s32.totalorder %s278, %s280
      %p287 = scmp.eq.s32.totalorder %s44, 3
      %p288 = por %p286, %p287
      %p289 = scmp.ne.s32.totalorder %s280, %s281
      %p290 = scmp.eq.s32.totalorder %s44, 0
      %p291 = por %p289, %p290
      %p292 = scmp.ne.s32.totalorder %s280, %s281
      %p293 = scmp.eq.s32.totalorder %s45, 3
      %p294 = por %p292, %p293
      %p296 = scmp.ne.s32.totalorder %s281, %s295
      %p297 = scmp.eq.s32.totalorder %s45, 0
      %p298 = por %p296, %p297
      %s300 = sadd.s32 %s299, 1
      %p303 = scmp.eq.s32.totalorder %s39, 3
      %p304 = scmp.ne.s32.totalorder %s299, %s301
      %p305 = scmp.eq.s32.totalorder %s39, 0
      %p306 = por %p304, %p305
      %p307 = scmp.ne.s32.totalorder %s299, %s301
      %p308 = scmp.eq.s32.totalorder %s44, 3
      %p309 = por %p307, %p308
      %p310 = scmp.ne.s32.totalorder %s301, %s302
      %p311 = scmp.eq.s32.totalorder %s44, 0
      %p312 = por %p310, %p311
      %p313 = scmp.ne.s32.totalorder %s301, %s302
      %p314 = scmp.eq.s32.totalorder %s45, 3
      %p315 = por %p313, %p314
      %p317 = scmp.ne.s32.totalorder %s302, %s316
      %p318 = scmp.eq.s32.totalorder %s45, 0
      %p319 = por %p317, %p318
      %s321 = sadd.s32 %s320, 1
      %p324 = scmp.eq.s32.totalorder %s39, 3
      %p325 = scmp.ne.s32.totalorder %s320, %s322
      %p326 = scmp.eq.s32.totalorder %s39, 0
      %p327 = por %p325, %p326
      %p328 = scmp.ne.s32.totalorder %s320, %s322
      %p329 = scmp.eq.s32.totalorder %s44, 3
      %p330 = por %p328, %p329
      %p331 = scmp.ne.s32.totalorder %s322, %s323
      %p332 = scmp.eq.s32.totalorder %s44, 0
      %p333 = por %p331, %p332
      %p334 = scmp.ne.s32.totalorder %s322, %s323
      %p335 = scmp.eq.s32.totalorder %s45, 3
      %p336 = por %p334, %p335
      %p338 = scmp.ne.s32.totalorder %s323, %s337
      %p339 = scmp.eq.s32.totalorder %s45, 0
      %p340 = por %p338, %p339
      %s342 = sadd.s32 %s341, 1
      %p345 = scmp.eq.s32.totalorder %s39, 3
      %p346 = scmp.ne.s32.totalorder %s341, %s343
      %p347 = scmp.eq.s32.totalorder %s39, 0
      %p348 = por %p346, %p347
      %p349 = scmp.ne.s32.totalorder %s341, %s343
      %p350 = scmp.eq.s32.totalorder %s44, 3
      %p351 = por %p349, %p350
      %p352 = scmp.ne.s32.totalorder %s343, %s344
      %p353 = scmp.eq.s32.totalorder %s44, 0
      %p354 = por %p352, %p353
      %p355 = scmp.ne.s32.totalorder %s343, %s344
      %p356 = scmp.eq.s32.totalorder %s45, 3
      %p357 = por %p355, %p356
      %p359 = scmp.ne.s32.totalorder %s344, %s358
      %p360 = scmp.eq.s32.totalorder %s45, 0
      %p361 = por %p359, %p360
      %s363 = sadd.s32 %s362, 1
      %p366 = scmp.eq.s32.totalorder %s39, 3
      %p367 = scmp.ne.s32.totalorder %s362, %s364
      %p368 = scmp.eq.s32.totalorder %s39, 0
      %p369 = por %p367, %p368
      %p370 = scmp.ne.s32.totalorder %s362, %s364
      %p371 = scmp.eq.s32.totalorder %s44, 3
      %p372 = por %p370, %p371
      %p373 = scmp.ne.s32.totalorder %s364, %s365
      %p374 = scmp.eq.s32.totalorder %s44, 0
      %p375 = por %p373, %p374
      %p376 = scmp.ne.s32.totalorder %s364, %s365
      %p377 = scmp.eq.s32.totalorder %s45, 3
      %p378 = por %p376, %p377
      %p380 = scmp.ne.s32.totalorder %s365, %s379
      %p381 = scmp.eq.s32.totalorder %s45, 0
      %p382 = por %p380, %p381
      %s384 = sadd.s32 %s383, 1
      %p387 = scmp.eq.s32.totalorder %s39, 3
      %p388 = scmp.ne.s32.totalorder %s383, %s385
      %p389 = scmp.eq.s32.totalorder %s39, 0
      %p390 = por %p388, %p389
      %p391 = scmp.ne.s32.totalorder %s383, %s385
      %p392 = scmp.eq.s32.totalorder %s44, 3
      %p393 = por %p391, %p392
      %p394 = scmp.ne.s32.totalorder %s385, %s386
      %p395 = scmp.eq.s32.totalorder %s44, 0
      %p396 = por %p394, %p395
      %p397 = scmp.ne.s32.totalorder %s385, %s386
      %p398 = scmp.eq.s32.totalorder %s45, 3
      %p399 = por %p397, %p398
      %p401 = scmp.ne.s32.totalorder %s386, %s400
      %p402 = scmp.eq.s32.totalorder %s45, 0
      %p403 = por %p401, %p402
      %s405 = sadd.s32 %s404, 1
      %p408 = scmp.eq.s32.totalorder %s39, 3
      %p409 = scmp.ne.s32.totalorder %s404, %s406
      %p410 = scmp.eq.s32.totalorder %s39, 0
      %p411 = por %p409, %p410
      %p412 = scmp.ne.s32.totalorder %s404, %s406
      %p413 = scmp.eq.s32.totalorder %s44, 3
      %p414 = por %p412, %p413
      %p415 = scmp.ne.s32.totalorder %s406, %s407
      %p416 = scmp.eq.s32.totalorder %s44, 0
      %p417 = por %p415, %p416
      %p418 = scmp.ne.s32.totalorder %s406, %s407
      %p419 = scmp.eq.s32.totalorder %s45, 3
      %p420 = por %p418, %p419
      %p422 = scmp.ne.s32.totalorder %s407, %s421
      %p423 = scmp.eq.s32.totalorder %s45, 0
      %p424 = por %p422, %p423
      %s425 = ssub.s32 %s39, %s46
      %p426 = scmp.eq.s32.totalorder %s425, 0
      %s428 = sadd.s32 %s427, 1
      %s429 = scalar_select %p426, %s427, %s428
      %p432 = pneg %p426
      %p433 = scmp.eq.s32.totalorder %s39, 3
      %p434 = por %p432, %p433
      %p435 = scmp.ne.s32.totalorder %s427, %s430
      %p436 = scmp.eq.s32.totalorder %s39, 0
      %p437 = por %p435, %p436
      %p438 = scmp.ne.s32.totalorder %s427, %s430
      %p439 = scmp.eq.s32.totalorder %s44, 3
      %p440 = por %p438, %p439
      %p441 = scmp.ne.s32.totalorder %s430, %s431
      %p442 = scmp.eq.s32.totalorder %s44, 0
      %p443 = por %p441, %p442
      %p444 = scmp.ne.s32.totalorder %s430, %s431
      %p445 = scmp.eq.s32.totalorder %s45, 3
      %p446 = por %p444, %p445
      %p448 = scmp.ne.s32.totalorder %s431, %s447
      %p449 = scmp.eq.s32.totalorder %s45, 0
      %p450 = por %p448, %p449
      %s451 = ssub.s32 %s39, %s46
      %p452 = scmp.eq.s32.totalorder %s451, 0
      %s454 = sadd.s32 %s453, 1
      %s455 = scalar_select %p452, %s453, %s454
      %p458 = pneg %p452
      %p459 = scmp.eq.s32.totalorder %s39, 3
      %p460 = por %p458, %p459
      %p461 = scmp.ne.s32.totalorder %s453, %s456
      %p462 = scmp.eq.s32.totalorder %s39, 0
      %p463 = por %p461, %p462
      %p464 = scmp.ne.s32.totalorder %s453, %s456
      %p465 = scmp.eq.s32.totalorder %s44, 3
      %p466 = por %p464, %p465
      %p467 = scmp.ne.s32.totalorder %s456, %s457
      %p468 = scmp.eq.s32.totalorder %s44, 0
      %p469 = por %p467, %p468
      %p470 = scmp.ne.s32.totalorder %s456, %s457
      %p471 = scmp.eq.s32.totalorder %s45, 3
      %p472 = por %p470, %p471
      %p474 = scmp.ne.s32.totalorder %s457, %s473
      %p475 = scmp.eq.s32.totalorder %s45, 0
      %p476 = por %p474, %p475
      %s477 = ssub.s32 %s39, %s46
      %p478 = scmp.eq.s32.totalorder %s477, 0
      %s480 = sadd.s32 %s479, 1
      %s481 = scalar_select %p478, %s479, %s480
      %p484 = pneg %p478
      %p485 = scmp.eq.s32.totalorder %s39, 3
      %p486 = por %p484, %p485
      %p487 = scmp.ne.s32.totalorder %s479, %s482
      %p488 = scmp.eq.s32.totalorder %s39, 0
      %p489 = por %p487, %p488
      %p490 = scmp.ne.s32.totalorder %s479, %s482
      %p491 = scmp.eq.s32.totalorder %s44, 3
      %p492 = por %p490, %p491
      %p493 = scmp.ne.s32.totalorder %s482, %s483
      %p494 = scmp.eq.s32.totalorder %s44, 0
      %p495 = por %p493, %p494
      %p496 = scmp.ne.s32.totalorder %s482, %s483
      %p497 = scmp.eq.s32.totalorder %s45, 3
      %p498 = por %p496, %p497
      %p500 = scmp.ne.s32.totalorder %s483, %s499
      %p501 = scmp.eq.s32.totalorder %s45, 0
      %p502 = por %p500, %p501
      %s503 = ssub.s32 %s39, %s46
      %p504 = scmp.eq.s32.totalorder %s503, 0
      %s506 = sadd.s32 %s505, 1
      %s507 = scalar_select %p504, %s505, %s506
      %p510 = pneg %p504
      %p511 = scmp.eq.s32.totalorder %s39, 3
      %p512 = por %p510, %p511
      %p513 = scmp.ne.s32.totalorder %s505, %s508
      %p514 = scmp.eq.s32.totalorder %s39, 0
      %p515 = por %p513, %p514
      %p516 = scmp.ne.s32.totalorder %s505, %s508
      %p517 = scmp.eq.s32.totalorder %s44, 3
      %p518 = por %p516, %p517
      %p519 = scmp.ne.s32.totalorder %s508, %s509
      %p520 = scmp.eq.s32.totalorder %s44, 0
      %p521 = por %p519, %p520
      %p522 = scmp.ne.s32.totalorder %s508, %s509
      %p523 = scmp.eq.s32.totalorder %s45, 3
      %p524 = por %p522, %p523
      %p526 = scmp.ne.s32.totalorder %s509, %s525
      %p527 = scmp.eq.s32.totalorder %s45, 0
      %p528 = por %p526, %p527
      %s530 = sadd.s32 %s529, 1
      %p533 = scmp.eq.s32.totalorder %s39, 3
      %p534 = scmp.ne.s32.totalorder %s529, %s531
      %p535 = scmp.eq.s32.totalorder %s39, 0
      %p536 = por %p534, %p535
      %p537 = scmp.ne.s32.totalorder %s529, %s531
      %p538 = scmp.eq.s32.totalorder %s44, 3
      %p539 = por %p537, %p538
      %p540 = scmp.ne.s32.totalorder %s531, %s532
      %p541 = scmp.eq.s32.totalorder %s44, 0
      %p542 = por %p540, %p541
      %p543 = scmp.ne.s32.totalorder %s531, %s532
      %p544 = scmp.eq.s32.totalorder %s45, 3
      %p545 = por %p543, %p544
      %p547 = scmp.ne.s32.totalorder %s532, %s546
      %p548 = scmp.eq.s32.totalorder %s45, 0
      %p549 = por %p547, %p548
      %p550 = scmp.le.s32.totalorder 1, %s39
      %p551 = scmp.lt.s32.totalorder %s39, 5
      %p552 = pnand %p550, %p551
      %p553 = pneg %p552
      // Predicated region
      $region9: #{tpu_custom_call.1} parent=5 // pred_check
        _
      $region10: #{tpu_custom_call.1} parent=5 // pred_check_branch
        %555 = sbr.rel (%p552) target = $region12
      $region11: #{tpu_custom_call.1} parent=5 // pred_region
        %s556 = ssub.s32 %s39, 1
        // Predicated region
        $region13: #{tpu_custom_call.1} parent=11 // pred_check
          %p557 = pneg %p60
        $region14: #{tpu_custom_call.1} parent=11 // pred_check_branch
          %559 = sbr.rel (%p557) target = $region16
        $region15: #{tpu_custom_call.1} parent=11 // pred_region
          %s561 = ssub.s32 32, 32
          %562 = vsyncadd [#allocation6], %s561
          %s564 = sshll.u32 [#allocation5], 4
          %s565 = int_to_ptr.vmem [resolvable:$true] %s564
          %567 = dma.hbm_to_vmem [thread:$0]  %s0, 32, %s565, [#allocation6]
        $region16: #{tpu_custom_call.1} parent=11 // pred_fallthru
          _
        // Predicated region
        $region17: #{tpu_custom_call.1} parent=11 // pred_check
          %p568 = pneg %p81
        $region18: #{tpu_custom_call.1} parent=11 // pred_check_branch
          %570 = sbr.rel (%p568) target = $region20
        $region19: #{tpu_custom_call.1} parent=11 // pred_region
          %s572 = ssub.s32 128, 128
          %573 = vsyncadd [#allocation9], %s572
          %s575 = sshll.u32 [#allocation8], 4
          %s576 = int_to_ptr.vmem [resolvable:$true] %s575
          %578 = dma.hbm_to_vmem [thread:$0]  %s1, 128, %s576, [#allocation9]
        $region20: #{tpu_custom_call.1} parent=11 // pred_fallthru
          _
        // Predicated region
        $region21: #{tpu_custom_call.1} parent=11 // pred_check
          %p579 = pneg %p102
        $region22: #{tpu_custom_call.1} parent=11 // pred_check_branch
          %581 = sbr.rel (%p579) target = $region24
        $region23: #{tpu_custom_call.1} parent=11 // pred_region
          %s583 = ssub.s32 16, 16
          %584 = vsyncadd [#allocation9], %s583
          %s586 = sshll.u32 [#allocation10], 4
          %s587 = int_to_ptr.vmem [resolvable:$true] %s586
          %589 = dma.hbm_to_vmem [thread:$0]  %s2, 16, %s587, [#allocation9]
        $region24: #{tpu_custom_call.1} parent=11 // pred_fallthru
          _
        // Predicated region
        $region25: #{tpu_custom_call.1} parent=11 // pred_check
          %p590 = pneg %p123
        $region26: #{tpu_custom_call.1} parent=11 // pred_check_branch
          %592 = sbr.rel (%p590) target = $region28
        $region27: #{tpu_custom_call.1} parent=11 // pred_region
          %s594 = ssub.s32 16, 16
          %595 = vsyncadd [#allocation12], %s594
          %s597 = sshll.u32 [#allocation11], 4
          %s598 = int_to_ptr.vmem [resolvable:$true] %s597
          %600 = dma.hbm_to_vmem [thread:$0]  %s3, 16, %s598, [#allocation12]
        $region28: #{tpu_custom_call.1} parent=11 // pred_fallthru
          _
        // Predicated region
        $region29: #{tpu_custom_call.1} parent=11 // pred_check
          %p601 = pneg %p144
        $region30: #{tpu_custom_call.1} parent=11 // pred_check_branch
          %603 = sbr.rel (%p601) target = $region32
        $region31: #{tpu_custom_call.1} parent=11 // pred_region
          %s605 = ssub.s32 2048, 2048
          %606 = vsyncadd [#allocation12], %s605
          %s607 = sshll.u32 [#allocation13], 4
          %s608 = int_to_ptr.vmem [resolvable:$true] %s607
          %613 = dma.hbm_to_vmem [thread:$0]  %s4, 2048, %s608, [#allocation12], 128, 128, 8
        $region32: #{tpu_custom_call.1} parent=11 // pred_fallthru
          _
        // Predicated region
        $region33: #{tpu_custom_call.1} parent=11 // pred_check
          %p614 = pneg %p165
        $region34: #{tpu_custom_call.1} parent=11 // pred_check_branch
          %616 = sbr.rel (%p614) target = $region36
        $region35: #{tpu_custom_call.1} parent=11 // pred_region
          %s618 = ssub.s32 16, 16
          %619 = vsyncadd [#allocation15], %s618
          %s621 = sshll.u32 [#allocation14], 4
          %s622 = int_to_ptr.vmem [resolvable:$true] %s621
          %624 = dma.hbm_to_vmem [thread:$0]  %s5, 16, %s622, [#allocation15]
        $region36: #{tpu_custom_call.1} parent=11 // pred_fallthru
          _
        // Predicated region
        $region37: #{tpu_custom_call.1} parent=11 // pred_check
          %p625 = pneg %p186
        $region38: #{tpu_custom_call.1} parent=11 // pred_check_branch
          %627 = sbr.rel (%p625) target = $region40
        $region39: #{tpu_custom_call.1} parent=11 // pred_region
          %s629 = ssub.s32 16, 16
          %630 = vsyncadd [#allocation15], %s629
          %s632 = sshll.u32 [#allocation16], 4
          %s633 = int_to_ptr.vmem [resolvable:$true] %s632
          %635 = dma.hbm_to_vmem [thread:$0]  %s6, 16, %s633, [#allocation15]
        $region40: #{tpu_custom_call.1} parent=11 // pred_fallthru
          _
        // Predicated region
        $region41: #{tpu_custom_call.1} parent=11 // pred_check
          %p636 = pneg %p207
        $region42: #{tpu_custom_call.1} parent=11 // pred_check_branch
          %638 = sbr.rel (%p636) target = $region44
        $region43: #{tpu_custom_call.1} parent=11 // pred_region
          %s640 = ssub.s32 16, 16
          %641 = vsyncadd [#allocation18], %s640
          %s643 = sshll.u32 [#allocation17], 4
          %s644 = int_to_ptr.vmem [resolvable:$true] %s643
          %646 = dma.hbm_to_vmem [thread:$0]  %s7, 16, %s644, [#allocation18]
        $region44: #{tpu_custom_call.1} parent=11 // pred_fallthru
          _
        // Predicated region
        $region45: #{tpu_custom_call.1} parent=11 // pred_check
          %p647 = pneg %p228
        $region46: #{tpu_custom_call.1} parent=11 // pred_check_branch
          %649 = sbr.rel (%p647) target = $region48
        $region47: #{tpu_custom_call.1} parent=11 // pred_region
          %s651 = ssub.s32 8192, 8192
          %652 = vsyncadd [#allocation18], %s651
          %s653 = sshll.u32 [#allocation19], 4
          %s654 = int_to_ptr.vmem [resolvable:$true] %s653
          %659 = dma.hbm_to_vmem [thread:$0]  %s8, 8192, %s654, [#allocation18], 512, 512, 32
        $region48: #{tpu_custom_call.1} parent=11 // pred_fallthru
          _
        // Predicated region
        $region49: #{tpu_custom_call.1} parent=11 // pred_check
          %p660 = pneg %p249
        $region50: #{tpu_custom_call.1} parent=11 // pred_check_branch
          %662 = sbr.rel (%p660) target = $region52
        $region51: #{tpu_custom_call.1} parent=11 // pred_region
          %s664 = ssub.s32 64, 64
          %665 = vsyncadd [#allocation21], %s664
          %s667 = sshll.u32 [#allocation20], 4
          %s668 = int_to_ptr.vmem [resolvable:$true] %s667
          %670 = dma.hbm_to_vmem [thread:$0]  %s9, 64, %s668, [#allocation21]
        $region52: #{tpu_custom_call.1} parent=11 // pred_fallthru
          _
        // Predicated region
        $region53: #{tpu_custom_call.1} parent=11 // pred_check
          %p671 = pneg %p270
        $region54: #{tpu_custom_call.1} parent=11 // pred_check_branch
          %673 = sbr.rel (%p671) target = $region56
        $region55: #{tpu_custom_call.1} parent=11 // pred_region
          %s675 = ssub.s32 16, 16
          %676 = vsyncadd [#allocation21], %s675
          %s678 = sshll.u32 [#allocation22], 4
          %s679 = int_to_ptr.vmem [resolvable:$true] %s678
          %681 = dma.hbm_to_vmem [thread:$0]  %s10, 16, %s679, [#allocation21]
        $region56: #{tpu_custom_call.1} parent=11 // pred_fallthru
          _
        // Predicated region
        $region57: #{tpu_custom_call.1} parent=11 // pred_check
          %p682 = pneg %p291
        $region58: #{tpu_custom_call.1} parent=11 // pred_check_branch
          %684 = sbr.rel (%p682) target = $region60
        $region59: #{tpu_custom_call.1} parent=11 // pred_region
          %s686 = ssub.s32 16, 16
          %687 = vsyncadd [#allocation24], %s686
          %s689 = sshll.u32 [#allocation23], 4
          %s690 = int_to_ptr.vmem [resolvable:$true] %s689
          %692 = dma.hbm_to_vmem [thread:$0]  %s11, 16, %s690, [#allocation24]
        $region60: #{tpu_custom_call.1} parent=11 // pred_fallthru
          _
        // Predicated region
        $region61: #{tpu_custom_call.1} parent=11 // pred_check
          %p693 = pneg %p312
        $region62: #{tpu_custom_call.1} parent=11 // pred_check_branch
          %695 = sbr.rel (%p693) target = $region64
        $region63: #{tpu_custom_call.1} parent=11 // pred_region
          %s697 = ssub.s32 1024, 1024
          %698 = vsyncadd [#allocation24], %s697
          %s699 = sshll.u32 [#allocation25], 4
          %s700 = int_to_ptr.vmem [resolvable:$true] %s699
          %705 = dma.hbm_to_vmem [thread:$0]  %s12, 1024, %s700, [#allocation24], 128, 128, 8
        $region64: #{tpu_custom_call.1} parent=11 // pred_fallthru
          _
        // Predicated region
        $region65: #{tpu_custom_call.1} parent=11 // pred_check
          %p706 = pneg %p333
        $region66: #{tpu_custom_call.1} parent=11 // pred_check_branch
          %708 = sbr.rel (%p706) target = $region68
        $region67: #{tpu_custom_call.1} parent=11 // pred_region
          %s710 = ssub.s32 16, 16
          %711 = vsyncadd [#allocation27], %s710
          %s713 = sshll.u32 [#allocation26], 4
          %s714 = int_to_ptr.vmem [resolvable:$true] %s713
          %716 = dma.hbm_to_vmem [thread:$0]  %s13, 16, %s714, [#allocation27]
        $region68: #{tpu_custom_call.1} parent=11 // pred_fallthru
          _
        // Predicated region
        $region69: #{tpu_custom_call.1} parent=11 // pred_check
          %p717 = pneg %p354
        $region70: #{tpu_custom_call.1} parent=11 // pred_check_branch
          %719 = sbr.rel (%p717) target = $region72
        $region71: #{tpu_custom_call.1} parent=11 // pred_region
          %s721 = ssub.s32 16, 16
          %722 = vsyncadd [#allocation27], %s721
          %s724 = sshll.u32 [#allocation28], 4
          %s725 = int_to_ptr.vmem [resolvable:$true] %s724
          %727 = dma.hbm_to_vmem [thread:$0]  %s14, 16, %s725, [#allocation27]
        $region72: #{tpu_custom_call.1} parent=11 // pred_fallthru
          _
        // Predicated region
        $region73: #{tpu_custom_call.1} parent=11 // pred_check
          %p728 = pneg %p375
        $region74: #{tpu_custom_call.1} parent=11 // pred_check_branch
          %730 = sbr.rel (%p728) target = $region76
        $region75: #{tpu_custom_call.1} parent=11 // pred_region
          %s732 = ssub.s32 16, 16
          %733 = vsyncadd [#allocation30], %s732
          %s735 = sshll.u32 [#allocation29], 4
          %s736 = int_to_ptr.vmem [resolvable:$true] %s735
          %738 = dma.hbm_to_vmem [thread:$0]  %s15, 16, %s736, [#allocation30]
        $region76: #{tpu_custom_call.1} parent=11 // pred_fallthru
          _
        // Predicated region
        $region77: #{tpu_custom_call.1} parent=11 // pred_check
          %p739 = pneg %p396
        $region78: #{tpu_custom_call.1} parent=11 // pred_check_branch
          %741 = sbr.rel (%p739) target = $region80
        $region79: #{tpu_custom_call.1} parent=11 // pred_region
          %s743 = ssub.s32 2048, 2048
          %744 = vsyncadd [#allocation30], %s743
          %s745 = sshll.u32 [#allocation31], 4
          %s746 = int_to_ptr.vmem [resolvable:$true] %s745
          %751 = dma.hbm_to_vmem [thread:$0]  %s16, 2048, %s746, [#allocation30], 128, 128, 8
        $region80: #{tpu_custom_call.1} parent=11 // pred_fallthru
          _
        // Predicated region
        $region81: #{tpu_custom_call.1} parent=11 // pred_check
          %p752 = pneg %p417
        $region82: #{tpu_custom_call.1} parent=11 // pred_check_branch
          %754 = sbr.rel (%p752) target = $region84
        $region83: #{tpu_custom_call.1} parent=11 // pred_region
          %s756 = ssub.s32 16, 16
          %757 = vsyncadd [#allocation33], %s756
          %s759 = sshll.u32 [#allocation32], 4
          %s760 = int_to_ptr.vmem [resolvable:$true] %s759
          %762 = dma.hbm_to_vmem [thread:$0]  %s17, 16, %s760, [#allocation33]
        $region84: #{tpu_custom_call.1} parent=11 // pred_fallthru
          _
      $region12: #{tpu_custom_call.1} parent=5 // pred_fallthru
        _
      %p763 = scmp.lt.s32.totalorder %s39, 4
      // Predicated region
      $region85: #{tpu_custom_call.1} parent=5 // pred_check
        %p764 = pneg %p763
      $region86: #{tpu_custom_call.1} parent=5 // pred_check_branch
        %766 = sbr.rel (%p764) target = $region88
      $region87: #{tpu_custom_call.1} parent=5 // pred_region
        // Predicated region
        $region89: #{tpu_custom_call.1} parent=87 // pred_check
          %p767 = pneg %p437
        $region90: #{tpu_custom_call.1} parent=87 // pred_check_branch
          %769 = sbr.rel (%p767) target = $region92
        $region91: #{tpu_custom_call.1} parent=87 // pred_region
          %s770 = sand.u32 %s39, 1
          %s771 = scalar_lea.sflag [#allocation6], %s770
          %s772 = sand.u32 %s427, 1
          %s773 = smul.addr %s772, 8
          %s774 = scalar_lea.vmem [#allocation34], %s773
          %s776 = ssub.s32 128, 128
          %777 = vsyncadd %s771, %s776
          %s778 = smul.addr %s39, 128
          %s779 = scalar_lea.hbm %s18, %s778
          %s781 = sshll.u32 %s774, 4
          %s782 = int_to_ptr.vmem [resolvable:$true] %s781
          %784 = dma.hbm_to_vmem [thread:$0]  %s779, 128, %s782, %s771
        $region92: #{tpu_custom_call.1} parent=87 // pred_fallthru
          _
        // Predicated region
        $region93: #{tpu_custom_call.1} parent=87 // pred_check
          %p785 = pneg %p463
        $region94: #{tpu_custom_call.1} parent=87 // pred_check_branch
          %787 = sbr.rel (%p785) target = $region96
        $region95: #{tpu_custom_call.1} parent=87 // pred_region
          %s788 = sand.u32 %s39, 1
          %s789 = scalar_lea.sflag [#allocation6], %s788
          %s790 = sand.u32 %s453, 1
          %s791 = smul.addr %s790, 1024
          %s792 = scalar_lea.vmem [#allocation35], %s791
          %s794 = ssub.s32 16384, 16384
          %795 = vsyncadd %s789, %s794
          %s796 = smul.addr %s39, 128
          %s797 = smul.addr %s796, 128
          %s798 = scalar_lea.hbm %s19, %s797
          %s799 = sshll.u32 %s792, 4
          %s800 = int_to_ptr.vmem [resolvable:$true] %s799
          %805 = dma.hbm_to_vmem [thread:$0]  %s798, 16384, %s800, %s789, 1024, 1024, 64
        $region96: #{tpu_custom_call.1} parent=87 // pred_fallthru
          _
        // Predicated region
        $region97: #{tpu_custom_call.1} parent=87 // pred_check
          %p806 = pneg %p489
        $region98: #{tpu_custom_call.1} parent=87 // pred_check_branch
          %808 = sbr.rel (%p806) target = $region100
        $region99: #{tpu_custom_call.1} parent=87 // pred_region
          %s809 = sand.u32 %s39, 1
          %s810 = scalar_lea.sflag [#allocation6], %s809
          %s811 = sand.u32 %s479, 1
          %s812 = smul.addr %s811, 256
          %s813 = scalar_lea.vmem [#allocation36], %s812
          %s815 = ssub.s32 4096, 4096
          %816 = vsyncadd %s810, %s815
          %s817 = smul.addr %s39, 32
          %s818 = smul.addr %s817, 128
          %s819 = scalar_lea.hbm %s20, %s818
          %s820 = sshll.u32 %s813, 4
          %s821 = int_to_ptr.vmem [resolvable:$true] %s820
          %826 = dma.hbm_to_vmem [thread:$0]  %s819, 4096, %s821, %s810, 256, 256, 16
        $region100: #{tpu_custom_call.1} parent=87 // pred_fallthru
          _
        // Predicated region
        $region101: #{tpu_custom_call.1} parent=87 // pred_check
          %p827 = pneg %p515
        $region102: #{tpu_custom_call.1} parent=87 // pred_check_branch
          %829 = sbr.rel (%p827) target = $region104
        $region103: #{tpu_custom_call.1} parent=87 // pred_region
          %s830 = sand.u32 %s39, 1
          %s831 = scalar_lea.sflag [#allocation6], %s830
          %s832 = sand.u32 %s505, 1
          %s833 = smul.addr %s832, 256
          %s834 = scalar_lea.vmem [#allocation37], %s833
          %s836 = ssub.s32 4096, 4096
          %837 = vsyncadd %s831, %s836
          %s838 = smul.addr %s39, 32
          %s839 = smul.addr %s838, 128
          %s840 = scalar_lea.hbm %s21, %s839
          %s841 = sshll.u32 %s834, 4
          %s842 = int_to_ptr.vmem [resolvable:$true] %s841
          %847 = dma.hbm_to_vmem [thread:$0]  %s840, 4096, %s842, %s831, 128, 128, 8
        $region104: #{tpu_custom_call.1} parent=87 // pred_fallthru
          _
      $region88: #{tpu_custom_call.1} parent=5 // pred_fallthru
        _
      %p848 = scmp.le.s32.totalorder 1, %s39
      %p849 = scmp.lt.s32.totalorder %s39, 5
      %p850 = pnand %p848, %p849
      %p851 = pneg %p850
      // Predicated region
      $region105: #{tpu_custom_call.1} parent=5 // pred_check
        _
      $region106: #{tpu_custom_call.1} parent=5 // pred_check_branch
        %853 = sbr.rel (%p850) target = $region108
      $region107: #{tpu_custom_call.1} parent=5 // pred_region
        %s854 = ssub.s32 %s39, 1
        // Predicated region
        $region109: #{tpu_custom_call.1} parent=107 // pred_check
          %p855 = pneg %p60
        $region110: #{tpu_custom_call.1} parent=107 // pred_check_branch
          %857 = sbr.rel (%p855) target = $region112
        $region111: #{tpu_custom_call.1} parent=107 // pred_region
          %858 = dma.done [#allocation6], 32
        $region112: #{tpu_custom_call.1} parent=107 // pred_fallthru
          _
        // Predicated region
        $region113: #{tpu_custom_call.1} parent=107 // pred_check
          %p859 = pneg %p81
        $region114: #{tpu_custom_call.1} parent=107 // pred_check_branch
          %861 = sbr.rel (%p859) target = $region116
        $region115: #{tpu_custom_call.1} parent=107 // pred_region
          %862 = dma.done [#allocation9], 128
        $region116: #{tpu_custom_call.1} parent=107 // pred_fallthru
          _
        // Predicated region
        $region117: #{tpu_custom_call.1} parent=107 // pred_check
          %p863 = pneg %p102
        $region118: #{tpu_custom_call.1} parent=107 // pred_check_branch
          %865 = sbr.rel (%p863) target = $region120
        $region119: #{tpu_custom_call.1} parent=107 // pred_region
          %866 = dma.done [#allocation9], 16
        $region120: #{tpu_custom_call.1} parent=107 // pred_fallthru
          _
        // Predicated region
        $region121: #{tpu_custom_call.1} parent=107 // pred_check
          %p867 = pneg %p123
        $region122: #{tpu_custom_call.1} parent=107 // pred_check_branch
          %869 = sbr.rel (%p867) target = $region124
        $region123: #{tpu_custom_call.1} parent=107 // pred_region
          %870 = dma.done [#allocation12], 16
        $region124: #{tpu_custom_call.1} parent=107 // pred_fallthru
          _
        // Predicated region
        $region125: #{tpu_custom_call.1} parent=107 // pred_check
          %p871 = pneg %p144
        $region126: #{tpu_custom_call.1} parent=107 // pred_check_branch
          %873 = sbr.rel (%p871) target = $region128
        $region127: #{tpu_custom_call.1} parent=107 // pred_region
          %874 = dma.done [#allocation12], 2048
        $region128: #{tpu_custom_call.1} parent=107 // pred_fallthru
          _
        // Predicated region
        $region129: #{tpu_custom_call.1} parent=107 // pred_check
          %p875 = pneg %p165
        $region130: #{tpu_custom_call.1} parent=107 // pred_check_branch
          %877 = sbr.rel (%p875) target = $region132
        $region131: #{tpu_custom_call.1} parent=107 // pred_region
          %878 = dma.done [#allocation15], 16
        $region132: #{tpu_custom_call.1} parent=107 // pred_fallthru
          _
        // Predicated region
        $region133: #{tpu_custom_call.1} parent=107 // pred_check
          %p879 = pneg %p186
        $region134: #{tpu_custom_call.1} parent=107 // pred_check_branch
          %881 = sbr.rel (%p879) target = $region136
        $region135: #{tpu_custom_call.1} parent=107 // pred_region
          %882 = dma.done [#allocation15], 16
        $region136: #{tpu_custom_call.1} parent=107 // pred_fallthru
          _
        // Predicated region
        $region137: #{tpu_custom_call.1} parent=107 // pred_check
          %p883 = pneg %p207
        $region138: #{tpu_custom_call.1} parent=107 // pred_check_branch
          %885 = sbr.rel (%p883) target = $region140
        $region139: #{tpu_custom_call.1} parent=107 // pred_region
          %886 = dma.done [#allocation18], 16
        $region140: #{tpu_custom_call.1} parent=107 // pred_fallthru
          _
        // Predicated region
        $region141: #{tpu_custom_call.1} parent=107 // pred_check
          %p887 = pneg %p228
        $region142: #{tpu_custom_call.1} parent=107 // pred_check_branch
          %889 = sbr.rel (%p887) target = $region144
        $region143: #{tpu_custom_call.1} parent=107 // pred_region
          %890 = dma.done [#allocation18], 8192
        $region144: #{tpu_custom_call.1} parent=107 // pred_fallthru
          _
        // Predicated region
        $region145: #{tpu_custom_call.1} parent=107 // pred_check
          %p891 = pneg %p249
        $region146: #{tpu_custom_call.1} parent=107 // pred_check_branch
          %893 = sbr.rel (%p891) target = $region148
        $region147: #{tpu_custom_call.1} parent=107 // pred_region
          %894 = dma.done [#allocation21], 64
        $region148: #{tpu_custom_call.1} parent=107 // pred_fallthru
          _
        // Predicated region
        $region149: #{tpu_custom_call.1} parent=107 // pred_check
          %p895 = pneg %p270
        $region150: #{tpu_custom_call.1} parent=107 // pred_check_branch
          %897 = sbr.rel (%p895) target = $region152
        $region151: #{tpu_custom_call.1} parent=107 // pred_region
          %898 = dma.done [#allocation21], 16
        $region152: #{tpu_custom_call.1} parent=107 // pred_fallthru
          _
        // Predicated region
        $region153: #{tpu_custom_call.1} parent=107 // pred_check
          %p899 = pneg %p291
        $region154: #{tpu_custom_call.1} parent=107 // pred_check_branch
          %901 = sbr.rel (%p899) target = $region156
        $region155: #{tpu_custom_call.1} parent=107 // pred_region
          %902 = dma.done [#allocation24], 16
        $region156: #{tpu_custom_call.1} parent=107 // pred_fallthru
          _
        // Predicated region
        $region157: #{tpu_custom_call.1} parent=107 // pred_check
          %p903 = pneg %p312
        $region158: #{tpu_custom_call.1} parent=107 // pred_check_branch
          %905 = sbr.rel (%p903) target = $region160
        $region159: #{tpu_custom_call.1} parent=107 // pred_region
          %906 = dma.done [#allocation24], 1024
        $region160: #{tpu_custom_call.1} parent=107 // pred_fallthru
          _
        // Predicated region
        $region161: #{tpu_custom_call.1} parent=107 // pred_check
          %p907 = pneg %p333
        $region162: #{tpu_custom_call.1} parent=107 // pred_check_branch
          %909 = sbr.rel (%p907) target = $region164
        $region163: #{tpu_custom_call.1} parent=107 // pred_region
          %910 = dma.done [#allocation27], 16
        $region164: #{tpu_custom_call.1} parent=107 // pred_fallthru
          _
        // Predicated region
        $region165: #{tpu_custom_call.1} parent=107 // pred_check
          %p911 = pneg %p354
        $region166: #{tpu_custom_call.1} parent=107 // pred_check_branch
          %913 = sbr.rel (%p911) target = $region168
        $region167: #{tpu_custom_call.1} parent=107 // pred_region
          %914 = dma.done [#allocation27], 16
        $region168: #{tpu_custom_call.1} parent=107 // pred_fallthru
          _
        // Predicated region
        $region169: #{tpu_custom_call.1} parent=107 // pred_check
          %p915 = pneg %p375
        $region170: #{tpu_custom_call.1} parent=107 // pred_check_branch
          %917 = sbr.rel (%p915) target = $region172
        $region171: #{tpu_custom_call.1} parent=107 // pred_region
          %918 = dma.done [#allocation30], 16
        $region172: #{tpu_custom_call.1} parent=107 // pred_fallthru
          _
        // Predicated region
        $region173: #{tpu_custom_call.1} parent=107 // pred_check
          %p919 = pneg %p396
        $region174: #{tpu_custom_call.1} parent=107 // pred_check_branch
          %921 = sbr.rel (%p919) target = $region176
        $region175: #{tpu_custom_call.1} parent=107 // pred_region
          %922 = dma.done [#allocation30], 2048
        $region176: #{tpu_custom_call.1} parent=107 // pred_fallthru
          _
        // Predicated region
        $region177: #{tpu_custom_call.1} parent=107 // pred_check
          %p923 = pneg %p417
        $region178: #{tpu_custom_call.1} parent=107 // pred_check_branch
          %925 = sbr.rel (%p923) target = $region180
        $region179: #{tpu_custom_call.1} parent=107 // pred_region
          %926 = dma.done [#allocation33], 16
        $region180: #{tpu_custom_call.1} parent=107 // pred_fallthru
          _
        %s927 = sand.u32 %s44, 1
        %s928 = scalar_lea.sflag [#allocation6], %s927
        %s929 = sand.u32 %s430, 1
        %s930 = smul.addr %s929, 8
        %s931 = scalar_lea.vmem [#allocation34], %s930
        // Predicated region
        $region181: #{tpu_custom_call.1} parent=107 // pred_check
          %p932 = pneg %p443
        $region182: #{tpu_custom_call.1} parent=107 // pred_check_branch
          %934 = sbr.rel (%p932) target = $region184
        $region183: #{tpu_custom_call.1} parent=107 // pred_region
          %935 = dma.done %s928, 128
        $region184: #{tpu_custom_call.1} parent=107 // pred_fallthru
          _
        %s936 = sand.u32 %s44, 1
        %s937 = scalar_lea.sflag [#allocation6], %s936
        %s938 = sand.u32 %s456, 1
        %s939 = smul.addr %s938, 1024
        %s940 = scalar_lea.vmem [#allocation35], %s939
        // Predicated region
        $region185: #{tpu_custom_call.1} parent=107 // pred_check
          %p941 = pneg %p469
        $region186: #{tpu_custom_call.1} parent=107 // pred_check_branch
          %943 = sbr.rel (%p941) target = $region188
        $region187: #{tpu_custom_call.1} parent=107 // pred_region
          %944 = dma.done %s937, 16384
        $region188: #{tpu_custom_call.1} parent=107 // pred_fallthru
          _
        %s945 = sand.u32 %s44, 1
        %s946 = scalar_lea.sflag [#allocation6], %s945
        %s947 = sand.u32 %s482, 1
        %s948 = smul.addr %s947, 256
        %s949 = scalar_lea.vmem [#allocation36], %s948
        // Predicated region
        $region189: #{tpu_custom_call.1} parent=107 // pred_check
          %p950 = pneg %p495
        $region190: #{tpu_custom_call.1} parent=107 // pred_check_branch
          %952 = sbr.rel (%p950) target = $region192
        $region191: #{tpu_custom_call.1} parent=107 // pred_region
          %953 = dma.done %s946, 4096
        $region192: #{tpu_custom_call.1} parent=107 // pred_fallthru
          _
        %s954 = sand.u32 %s44, 1
        %s955 = scalar_lea.sflag [#allocation6], %s954
        %s956 = sand.u32 %s508, 1
        %s957 = smul.addr %s956, 256
        %s958 = scalar_lea.vmem [#allocation37], %s957
        // Predicated region
        $region193: #{tpu_custom_call.1} parent=107 // pred_check
          %p959 = pneg %p521
        $region194: #{tpu_custom_call.1} parent=107 // pred_check_branch
          %961 = sbr.rel (%p959) target = $region196
        $region195: #{tpu_custom_call.1} parent=107 // pred_region
          %962 = dma.done %s955, 4096
        $region196: #{tpu_custom_call.1} parent=107 // pred_fallthru
          _
        %p963 = pneg %p60
        %p964 = pneg %p57
        %p965 = pneg %p81
        %p966 = pneg %p78
        %p967 = pneg %p102
        %p968 = pneg %p99
        %p969 = pneg %p123
        %p970 = pneg %p120
        %p971 = pneg %p144
        %p972 = pneg %p141
        %p973 = pneg %p165
        %p974 = pneg %p162
        %p975 = pneg %p186
        %p976 = pneg %p183
        %p977 = pneg %p207
        %p978 = pneg %p204
        %p979 = pneg %p228
        %p980 = pneg %p225
        %p981 = pneg %p249
        %p982 = pneg %p246
        %p983 = pneg %p270
        %p984 = pneg %p267
        %p985 = pneg %p291
        %p986 = pneg %p288
        %p987 = pneg %p312
        %p988 = pneg %p309
        %p989 = pneg %p333
        %p990 = pneg %p330
        %p991 = pneg %p354
        %p992 = pneg %p351
        %p993 = pneg %p375
        %p994 = pneg %p372
        %p995 = pneg %p396
        %p996 = pneg %p393
        %p997 = pneg %p417
        %p998 = pneg %p414
        %s999 = sand.u32 %s44, 1
        %s1000 = scalar_lea.sflag [#allocation6], %s999
        %s1001 = sand.u32 %s430, 1
        %s1002 = smul.addr %s1001, 8
        %s1003 = scalar_lea.vmem [#allocation34], %s1002
        %p1004 = pneg %p443
        %p1005 = pneg %p440
        %s1006 = sand.u32 %s44, 1
        %s1007 = scalar_lea.sflag [#allocation6], %s1006
        %s1008 = sand.u32 %s456, 1
        %s1009 = smul.addr %s1008, 1024
        %s1010 = scalar_lea.vmem [#allocation35], %s1009
        %p1011 = pneg %p469
        %p1012 = pneg %p466
        %s1013 = sand.u32 %s44, 1
        %s1014 = scalar_lea.sflag [#allocation6], %s1013
        %s1015 = sand.u32 %s482, 1
        %s1016 = smul.addr %s1015, 256
        %s1017 = scalar_lea.vmem [#allocation36], %s1016
        %p1018 = pneg %p495
        %p1019 = pneg %p492
        %s1020 = sand.u32 %s44, 1
        %s1021 = scalar_lea.sflag [#allocation6], %s1020
        %s1022 = sand.u32 %s508, 1
        %s1023 = smul.addr %s1022, 256
        %s1024 = scalar_lea.vmem [#allocation37], %s1023
        %p1025 = pneg %p521
        %p1026 = pneg %p518
        %p1027 = pneg %p542
        %p1028 = pneg %p539
        %p1029 = scmp.eq.s32.totalorder %s44, 0
        // Predicated region
        $region197: #{tpu_custom_call.1} parent=107 // pred_check
          %p1030 = pneg %p1029
        $region198: #{tpu_custom_call.1} parent=107 // pred_check_branch
          %1032 = sbr.rel (%p1030) target = $region200
        $region199: #{tpu_custom_call.1} parent=107 // pred_region
          %v1033 = vld [vmem:[#allocation5] sm:$0x3]
          %v1034 = vld [vmem:[#allocation10] sm:$0x1]
          %v1035 = vld [vmem:[#allocation11] sm:$0x1]
          %vm1036 = vcmask 1041408
          %v1037 = vsel %vm1036, %v1033, 0.0
          %1038 = vadd.xlane.f32.xlu0 %v1037
          %v1039 = vpop.xlane.xlu0 %1038
          %v1040 = vrcp.pop 128.0
          %v1041 = vmul.f32 %v1039, %v1040
          %v1042 = vsub.f32 %v1033, %v1041
          %v1043 = vmul.f32 %v1042, %v1042
          %v1044 = vsel %vm1036, %v1043, 0.0
          %1045 = vadd.xlane.f32.xlu0 %v1044
          %v1046 = vpop.xlane.xlu0 %1045
          %v1047 = vmul.f32 %v1046, %v1040
          %v1048 = vadd.f32 %v1047, 1e-05
          %v1049 = vrsqrt.pop %v1048
          %v1050 = vmul.f32 %v1042, %v1049
          %v1052 = vlaneseq
          %v1053 = vshrl.u32 %v1052, 7
          %v1054 = vsub.s32 0, %v1053
          %v1055 = vrot.slane %v1034, %v1054
          %v1057 = vmul.f32 %v1050, %v1055
          %v1059 = vlaneseq
          %v1060 = vshrl.u32 %v1059, 7
          %v1061 = vsub.s32 0, %v1060
          %v1062 = vrot.slane %v1035, %v1061
          %v1064 = vadd.f32 %v1057, %v1062
          %v1065 = vld [vmem:[#allocation13] sm:$0xff]
          %v1066 = vld [vmem:[#allocation13 + $0x8] sm:$0xff]
          %v1067 = vld [vmem:[#allocation13 + $0x10] sm:$0xff]
          %v1068 = vld [vmem:[#allocation13 + $0x18] sm:$0xff]
          %v1069 = vld [vmem:[#allocation13 + $0x20] sm:$0xff]
          %v1070 = vld [vmem:[#allocation13 + $0x28] sm:$0xff]
          %v1071 = vld [vmem:[#allocation13 + $0x30] sm:$0xff]
          %v1072 = vld [vmem:[#allocation13 + $0x38] sm:$0xff]
          %v1073 = vld [vmem:[#allocation13 + $0x40] sm:$0xff]
          %v1074 = vld [vmem:[#allocation13 + $0x48] sm:$0xff]
          %v1075 = vld [vmem:[#allocation13 + $0x50] sm:$0xff]
          %v1076 = vld [vmem:[#allocation13 + $0x58] sm:$0xff]
          %v1077 = vld [vmem:[#allocation13 + $0x60] sm:$0xff]
          %v1078 = vld [vmem:[#allocation13 + $0x68] sm:$0xff]
          %v1079 = vld [vmem:[#allocation13 + $0x70] sm:$0xff]
          %v1080 = vld [vmem:[#allocation13 + $0x78] sm:$0xff]
          %v1081 = vld [vmem:[#allocation14] sm:$0x1]
          %v1083 = vlaneseq
          %v1084 = vshrl.u32 %v1083, 7
          %v1085 = vsub.s32 0, %v1084
          %v1086 = vrot.slane %v1081, %v1085
          %1088 = vmatprep.subr.mxu0 0.0
          %1089 = vmatpush1.msra.mxu0 %v1065
          %1090 = vmatprep.subr.mxu0 0.0
          %1091 = vmatpush1.msra.mxu0 %v1066
          %1092 = vmatprep.subr.mxu0 0.0
          %1093 = vmatpush1.msra.mxu0 %v1067
          %1094 = vmatprep.subr.mxu0 0.0
          %1095 = vmatpush1.msra.mxu0 %v1068
          %1096 = vmatprep.subr.mxu0 0.0
          %1097 = vmatpush1.msra.mxu0 %v1069
          %1098 = vmatprep.subr.mxu0 0.0
          %1099 = vmatpush1.msra.mxu0 %v1070
          %1100 = vmatprep.subr.mxu0 0.0
          %1101 = vmatpush1.msra.mxu0 %v1071
          %1102 = vmatprep.subr.mxu0 0.0
          %1103 = vmatpush1.msra.mxu0 %v1072
          %1104 = vmatprep.subr.mxu0 0.0
          %1105 = vmatpush1.msra.mxu0 %v1073
          %1106 = vmatprep.subr.mxu0 0.0
          %1107 = vmatpush1.msra.mxu0 %v1074
          %1108 = vmatprep.subr.mxu0 0.0
          %1109 = vmatpush1.msra.mxu0 %v1075
          %1110 = vmatprep.subr.mxu0 0.0
          %1111 = vmatpush1.msra.mxu0 %v1076
          %1112 = vmatprep.subr.mxu0 0.0
          %1113 = vmatpush1.msra.mxu0 %v1077
          %1114 = vmatprep.subr.mxu0 0.0
          %1115 = vmatpush1.msra.mxu0 %v1078
          %1116 = vmatprep.subr.mxu0 0.0
          %1117 = vmatpush1.msra.mxu0 %v1079
          %1118 = vmatprep.subr.mxu0 0.0
          %1119 = vmatpush1.msra.mxu0 %v1080
          %1120 = vmatprep.subr.mxu0 0.0
          %1121 = vmatpush1.msra.mxu0 0.0
          %1122 = vmatprep.subr.mxu0 0.0
          %1123 = vmatpush1.msra.mxu0 0.0
          %1124 = vmatprep.subr.mxu0 0.0
          %1125 = vmatpush1.msra.mxu0 0.0
          %1126 = vmatprep.subr.mxu0 0.0
          %1127 = vmatpush1.msra.mxu0 0.0
          %1128 = vmatprep.subr.mxu0 0.0
          %1129 = vmatpush1.msra.mxu0 0.0
          %1130 = vmatprep.subr.mxu0 0.0
          %1131 = vmatpush1.msra.mxu0 0.0
          %1132 = vmatprep.subr.mxu0 0.0
          %1133 = vmatpush1.msra.mxu0 0.0
          %1134 = vmatprep.subr.mxu0 0.0
          %1135 = vmatpush1.msra.mxu0 0.0
          %1136 = vmatprep.subr.mxu0 0.0
          %1137 = vmatpush1.msra.mxu0 0.0
          %1138 = vmatprep.subr.mxu0 0.0
          %1139 = vmatpush1.msra.mxu0 0.0
          %1140 = vmatprep.subr.mxu0 0.0
          %1141 = vmatpush1.msra.mxu0 0.0
          %1142 = vmatprep.subr.mxu0 0.0
          %1143 = vmatpush1.msra.mxu0 0.0
          %1144 = vmatprep.subr.mxu0 0.0
          %1145 = vmatpush1.msra.mxu0 0.0
          %1146 = vmatprep.subr.mxu0 0.0
          %1147 = vmatpush1.msra.mxu0 0.0
          %1148 = vmatprep.subr.mxu0 0.0
          %1149 = vmatpush1.msra.mxu0 0.0
          %1150 = vmatprep.subr.mxu0 0.0
          %1151 = vmatpush1.msra.mxu0 0.0
          %1152 = vmatprep.mubr.f32.mxu0 0.0
          %1153 = vmatmul.mubr.f32.gmra.mrb[0].mxu0 %v1064
          %v1154 = vpop.f32.mrb[0].mxu0
          %v1155 = vadd.f32 %v1086, %v1154
          %v1156 = vpop.f32.mrb[0].mxu0
          %1157 = vdwg.mxu0
          %v1158 = vmul.f32 %v1155, 0.5
          %v1159 = vmul.f32 %v1155, 0.70710677
          %vm1160 = vcmp.ge.f32.partialorder %v1159, 0.0
          %v1161 = vsel %vm1160, 1.0, -1.0
          %v1162 = vand.u32 2147483647, %v1159
          %v1163 = vmul.f32 %v1162, 0.3275911
          %v1164 = vadd.f32 %v1163, 1.0
          %v1165 = vrcp.pop %v1164
          %v1166 = vmul.f32 1.0, %v1165
          %v1167 = vmul.f32 %v1166, 1.0614054
          %v1168 = vadd.f32 %v1167, -1.4531521
          %v1169 = vmul.f32 %v1166, %v1168
          %v1170 = vadd.f32 %v1169, 1.4214138
          %v1171 = vmul.f32 %v1166, %v1170
          %v1172 = vadd.f32 %v1171, -0.28449672
          %v1173 = vmul.f32 %v1166, %v1172
          %v1174 = vadd.f32 %v1173, 0.2548296
          %v1175 = vmul.f32 %v1166, %v1174
          %v1176 = vsub.f32 0.0, %v1162
          %v1177 = vmul.f32 %v1176, %v1162
          %v1178 = vmul.f32 %v1177, 1.442695
          %v1179 = vpow.pop %v1178
          %v1180 = vmul.f32 %v1175, %v1179
          %v1181 = vsub.f32 1.0, %v1180
          %v1182 = vmul.f32 %v1161, %v1181
          %v1183 = vadd.f32 %v1182, 1.0
          %v1184 = vmul.f32 %v1158, %v1183
          %v1185 = vld [vmem:[#allocation16] sm:$0x1]
          %v1186 = vld [vmem:[#allocation17] sm:$0x1]
          %v1187 = vsel %vm1036, %v1184, 0.0
          %1188 = vadd.xlane.f32.xlu0 %v1187
          %v1189 = vpop.xlane.xlu0 %1188
          %v1190 = vmul.f32 %v1189, %v1040
          %v1191 = vsub.f32 %v1184, %v1190
          %v1192 = vmul.f32 %v1191, %v1191
          %v1193 = vsel %vm1036, %v1192, 0.0
          %1194 = vadd.xlane.f32.xlu0 %v1193
          %v1195 = vpop.xlane.xlu0 %1194
          %v1196 = vmul.f32 %v1195, %v1040
          %v1197 = vadd.f32 %v1196, 1e-05
          %v1198 = vrsqrt.pop %v1197
          %v1199 = vmul.f32 %v1191, %v1198
          %v1201 = vlaneseq
          %v1202 = vshrl.u32 %v1201, 7
          %v1203 = vsub.s32 0, %v1202
          %v1204 = vrot.slane %v1185, %v1203
          %v1206 = vmul.f32 %v1199, %v1204
          %v1208 = vlaneseq
          %v1209 = vshrl.u32 %v1208, 7
          %v1210 = vsub.s32 0, %v1209
          %v1211 = vrot.slane %v1186, %v1210
          %v1213 = vadd.f32 %v1206, %v1211
          %v1214 = vld [vmem:[#allocation19] sm:$0xff]
          %v1215 = vld [vmem:[#allocation19 + $0x20] sm:$0xff]
          %v1216 = vld [vmem:[#allocation19 + $0x40] sm:$0xff]
          %v1217 = vld [vmem:[#allocation19 + $0x60] sm:$0xff]
          %v1218 = vld [vmem:[#allocation19 + $0x80] sm:$0xff]
          %v1219 = vld [vmem:[#allocation19 + $0xa0] sm:$0xff]
          %v1220 = vld [vmem:[#allocation19 + $0xc0] sm:$0xff]
          %v1221 = vld [vmem:[#allocation19 + $0xe0] sm:$0xff]
          %v1222 = vld [vmem:[#allocation19 + $0x100] sm:$0xff]
          %v1223 = vld [vmem:[#allocation19 + $0x120] sm:$0xff]
          %v1224 = vld [vmem:[#allocation19 + $0x140] sm:$0xff]
          %v1225 = vld [vmem:[#allocation19 + $0x160] sm:$0xff]
          %v1226 = vld [vmem:[#allocation19 + $0x180] sm:$0xff]
          %v1227 = vld [vmem:[#allocation19 + $0x1a0] sm:$0xff]
          %v1228 = vld [vmem:[#allocation19 + $0x1c0] sm:$0xff]
          %v1229 = vld [vmem:[#allocation19 + $0x1e0] sm:$0xff]
          %v1230 = vld [vmem:[#allocation20] sm:$0x1]
          %v1232 = vlaneseq
          %v1233 = vshrl.u32 %v1232, 7
          %v1234 = vsub.s32 0, %v1233
          %v1235 = vrot.slane %v1230, %v1234
          %1237 = vmatprep.subr.mxu0 0.0
          %1238 = vmatpush1.msra.mxu0 %v1214
          %1239 = vmatprep.subr.mxu0 0.0
          %1240 = vmatpush1.msra.mxu0 %v1215
          %1241 = vmatprep.subr.mxu0 0.0
          %1242 = vmatpush1.msra.mxu0 %v1216
          %1243 = vmatprep.subr.mxu0 0.0
          %1244 = vmatpush1.msra.mxu0 %v1217
          %1245 = vmatprep.subr.mxu0 0.0
          %1246 = vmatpush1.msra.mxu0 %v1218
          %1247 = vmatprep.subr.mxu0 0.0
          %1248 = vmatpush1.msra.mxu0 %v1219
          %1249 = vmatprep.subr.mxu0 0.0
          %1250 = vmatpush1.msra.mxu0 %v1220
          %1251 = vmatprep.subr.mxu0 0.0
          %1252 = vmatpush1.msra.mxu0 %v1221
          %1253 = vmatprep.subr.mxu0 0.0
          %1254 = vmatpush1.msra.mxu0 %v1222
          %1255 = vmatprep.subr.mxu0 0.0
          %1256 = vmatpush1.msra.mxu0 %v1223
          %1257 = vmatprep.subr.mxu0 0.0
          %1258 = vmatpush1.msra.mxu0 %v1224
          %1259 = vmatprep.subr.mxu0 0.0
          %1260 = vmatpush1.msra.mxu0 %v1225
          %1261 = vmatprep.subr.mxu0 0.0
          %1262 = vmatpush1.msra.mxu0 %v1226
          %1263 = vmatprep.subr.mxu0 0.0
          %1264 = vmatpush1.msra.mxu0 %v1227
          %1265 = vmatprep.subr.mxu0 0.0
          %1266 = vmatpush1.msra.mxu0 %v1228
          %1267 = vmatprep.subr.mxu0 0.0
          %1268 = vmatpush1.msra.mxu0 %v1229
          %1269 = vmatprep.subr.mxu0 0.0
          %1270 = vmatpush1.msra.mxu0 0.0
          %1271 = vmatprep.subr.mxu0 0.0
          %1272 = vmatpush1.msra.mxu0 0.0
          %1273 = vmatprep.subr.mxu0 0.0
          %1274 = vmatpush1.msra.mxu0 0.0
          %1275 = vmatprep.subr.mxu0 0.0
          %1276 = vmatpush1.msra.mxu0 0.0
          %1277 = vmatprep.subr.mxu0 0.0
          %1278 = vmatpush1.msra.mxu0 0.0
          %1279 = vmatprep.subr.mxu0 0.0
          %1280 = vmatpush1.msra.mxu0 0.0
          %1281 = vmatprep.subr.mxu0 0.0
          %1282 = vmatpush1.msra.mxu0 0.0
          %1283 = vmatprep.subr.mxu0 0.0
          %1284 = vmatpush1.msra.mxu0 0.0
          %1285 = vmatprep.subr.mxu0 0.0
          %1286 = vmatpush1.msra.mxu0 0.0
          %1287 = vmatprep.subr.mxu0 0.0
          %1288 = vmatpush1.msra.mxu0 0.0
          %1289 = vmatprep.subr.mxu0 0.0
          %1290 = vmatpush1.msra.mxu0 0.0
          %1291 = vmatprep.subr.mxu0 0.0
          %1292 = vmatpush1.msra.mxu0 0.0
          %1293 = vmatprep.subr.mxu0 0.0
          %1294 = vmatpush1.msra.mxu0 0.0
          %1295 = vmatprep.subr.mxu0 0.0
          %1296 = vmatpush1.msra.mxu0 0.0
          %1297 = vmatprep.subr.mxu0 0.0
          %1298 = vmatpush1.msra.mxu0 0.0
          %1299 = vmatprep.subr.mxu0 0.0
          %1300 = vmatpush1.msra.mxu0 0.0
          %1301 = vmatprep.mubr.f32.mxu0 0.0
          %1302 = vmatmul.mubr.f32.gmra.mrb[0].mxu0 %v1213
          %v1303 = vpop.f32.mrb[0].mxu0
          %v1304 = vadd.f32 %v1235, %v1303
          %v1305 = vpop.f32.mrb[0].mxu0
          %1306 = vdwg.mxu0
          %v1307 = vmul.f32 %v1304, 0.5
          %v1308 = vmul.f32 %v1304, 0.70710677
          %vm1309 = vcmp.ge.f32.partialorder %v1308, 0.0
          %v1310 = vsel %vm1309, 1.0, -1.0
          %v1311 = vand.u32 2147483647, %v1308
          %v1312 = vmul.f32 %v1311, 0.3275911
          %v1313 = vadd.f32 %v1312, 1.0
          %v1314 = vrcp.pop %v1313
          %v1315 = vmul.f32 1.0, %v1314
          %v1316 = vmul.f32 %v1315, 1.0614054
          %v1317 = vadd.f32 %v1316, -1.4531521
          %v1318 = vmul.f32 %v1315, %v1317
          %v1319 = vadd.f32 %v1318, 1.4214138
          %v1320 = vmul.f32 %v1315, %v1319
          %v1321 = vadd.f32 %v1320, -0.28449672
          %v1322 = vmul.f32 %v1315, %v1321
          %v1323 = vadd.f32 %v1322, 0.2548296
          %v1324 = vmul.f32 %v1315, %v1323
          %v1325 = vsub.f32 0.0, %v1311
          %v1326 = vmul.f32 %v1325, %v1311
          %v1327 = vmul.f32 %v1326, 1.442695
          %v1328 = vpow.pop %v1327
          %v1329 = vmul.f32 %v1324, %v1328
          %v1330 = vsub.f32 1.0, %v1329
          %v1331 = vmul.f32 %v1310, %v1330
          %v1332 = vadd.f32 %v1331, 1.0
          %v1333 = vmul.f32 %v1307, %v1332
          %1334 = vst [vmem:[#allocation3] sm:$0x1] %v1333
          %1335 = vst [vmem:[#allocation4 - $0x1] sm:$0x2] %v1333
          %v1336 = vld [vmem:[#allocation19 + $0x8] sm:$0xff]
          %v1337 = vld [vmem:[#allocation19 + $0x28] sm:$0xff]
          %v1338 = vld [vmem:[#allocation19 + $0x48] sm:$0xff]
          %v1339 = vld [vmem:[#allocation19 + $0x68] sm:$0xff]
          %v1340 = vld [vmem:[#allocation19 + $0x88] sm:$0xff]
          %v1341 = vld [vmem:[#allocation19 + $0xa8] sm:$0xff]
          %v1342 = vld [vmem:[#allocation19 + $0xc8] sm:$0xff]
          %v1343 = vld [vmem:[#allocation19 + $0xe8] sm:$0xff]
          %v1344 = vld [vmem:[#allocation19 + $0x108] sm:$0xff]
          %v1345 = vld [vmem:[#allocation19 + $0x128] sm:$0xff]
          %v1346 = vld [vmem:[#allocation19 + $0x148] sm:$0xff]
          %v1347 = vld [vmem:[#allocation19 + $0x168] sm:$0xff]
          %v1348 = vld [vmem:[#allocation19 + $0x188] sm:$0xff]
          %v1349 = vld [vmem:[#allocation19 + $0x1a8] sm:$0xff]
          %v1350 = vld [vmem:[#allocation19 + $0x1c8] sm:$0xff]
          %v1351 = vld [vmem:[#allocation19 + $0x1e8] sm:$0xff]
          %v1352 = vld [vmem:[#allocation20 + $0x1] sm:$0x1]
          %v1354 = vlaneseq
          %v1355 = vshrl.u32 %v1354, 7
          %v1356 = vsub.s32 0, %v1355
          %v1357 = vrot.slane %v1352, %v1356
          %1359 = vmatprep.subr.mxu0 0.0
          %1360 = vmatpush1.msra.mxu0 %v1336
          %1361 = vmatprep.subr.mxu0 0.0
          %1362 = vmatpush1.msra.mxu0 %v1337
          %1363 = vmatprep.subr.mxu0 0.0
          %1364 = vmatpush1.msra.mxu0 %v1338
          %1365 = vmatprep.subr.mxu0 0.0
          %1366 = vmatpush1.msra.mxu0 %v1339
          %1367 = vmatprep.subr.mxu0 0.0
          %1368 = vmatpush1.msra.mxu0 %v1340
          %1369 = vmatprep.subr.mxu0 0.0
          %1370 = vmatpush1.msra.mxu0 %v1341
          %1371 = vmatprep.subr.mxu0 0.0
          %1372 = vmatpush1.msra.mxu0 %v1342
          %1373 = vmatprep.subr.mxu0 0.0
          %1374 = vmatpush1.msra.mxu0 %v1343
          %1375 = vmatprep.subr.mxu0 0.0
          %1376 = vmatpush1.msra.mxu0 %v1344
          %1377 = vmatprep.subr.mxu0 0.0
          %1378 = vmatpush1.msra.mxu0 %v1345
          %1379 = vmatprep.subr.mxu0 0.0
          %1380 = vmatpush1.msra.mxu0 %v1346
          %1381 = vmatprep.subr.mxu0 0.0
          %1382 = vmatpush1.msra.mxu0 %v1347
          %1383 = vmatprep.subr.mxu0 0.0
          %1384 = vmatpush1.msra.mxu0 %v1348
          %1385 = vmatprep.subr.mxu0 0.0
          %1386 = vmatpush1.msra.mxu0 %v1349
          %1387 = vmatprep.subr.mxu0 0.0
          %1388 = vmatpush1.msra.mxu0 %v1350
          %1389 = vmatprep.subr.mxu0 0.0
          %1390 = vmatpush1.msra.mxu0 %v1351
          %1391 = vmatprep.subr.mxu0 0.0
          %1392 = vmatpush1.msra.mxu0 0.0
          %1393 = vmatprep.subr.mxu0 0.0
          %1394 = vmatpush1.msra.mxu0 0.0
          %1395 = vmatprep.subr.mxu0 0.0
          %1396 = vmatpush1.msra.mxu0 0.0
          %1397 = vmatprep.subr.mxu0 0.0
          %1398 = vmatpush1.msra.mxu0 0.0
          %1399 = vmatprep.subr.mxu0 0.0
          %1400 = vmatpush1.msra.mxu0 0.0
          %1401 = vmatprep.subr.mxu0 0.0
          %1402 = vmatpush1.msra.mxu0 0.0
          %1403 = vmatprep.subr.mxu0 0.0
          %1404 = vmatpush1.msra.mxu0 0.0
          %1405 = vmatprep.subr.mxu0 0.0
          %1406 = vmatpush1.msra.mxu0 0.0
          %1407 = vmatprep.subr.mxu0 0.0
          %1408 = vmatpush1.msra.mxu0 0.0
          %1409 = vmatprep.subr.mxu0 0.0
          %1410 = vmatpush1.msra.mxu0 0.0
          %1411 = vmatprep.subr.mxu0 0.0
          %1412 = vmatpush1.msra.mxu0 0.0
          %1413 = vmatprep.subr.mxu0 0.0
          %1414 = vmatpush1.msra.mxu0 0.0
          %1415 = vmatprep.subr.mxu0 0.0
          %1416 = vmatpush1.msra.mxu0 0.0
          %1417 = vmatprep.subr.mxu0 0.0
          %1418 = vmatpush1.msra.mxu0 0.0
          %1419 = vmatprep.subr.mxu0 0.0
          %1420 = vmatpush1.msra.mxu0 0.0
          %1421 = vmatprep.subr.mxu0 0.0
          %1422 = vmatpush1.msra.mxu0 0.0
          %1423 = vmatprep.mubr.f32.mxu0 0.0
          %1424 = vmatmul.mubr.f32.gmra.mrb[0].mxu0 %v1213
          %v1425 = vpop.f32.mrb[0].mxu0
          %v1426 = vadd.f32 %v1357, %v1425
          %v1427 = vpop.f32.mrb[0].mxu0
          %1428 = vdwg.mxu0
          %v1429 = vmul.f32 %v1426, 0.5
          %v1430 = vmul.f32 %v1426, 0.70710677
          %vm1431 = vcmp.ge.f32.partialorder %v1430, 0.0
          %v1432 = vsel %vm1431, 1.0, -1.0
          %v1433 = vand.u32 2147483647, %v1430
          %v1434 = vmul.f32 %v1433, 0.3275911
          %v1435 = vadd.f32 %v1434, 1.0
          %v1436 = vrcp.pop %v1435
          %v1437 = vmul.f32 1.0, %v1436
          %v1438 = vmul.f32 %v1437, 1.0614054
          %v1439 = vadd.f32 %v1438, -1.4531521
          %v1440 = vmul.f32 %v1437, %v1439
          %v1441 = vadd.f32 %v1440, 1.4214138
          %v1442 = vmul.f32 %v1437, %v1441
          %v1443 = vadd.f32 %v1442, -0.28449672
          %v1444 = vmul.f32 %v1437, %v1443
          %v1445 = vadd.f32 %v1444, 0.2548296
          %v1446 = vmul.f32 %v1437, %v1445
          %v1447 = vsub.f32 0.0, %v1433
          %v1448 = vmul.f32 %v1447, %v1433
          %v1449 = vmul.f32 %v1448, 1.442695
          %v1450 = vpow.pop %v1449
          %v1451 = vmul.f32 %v1446, %v1450
          %v1452 = vsub.f32 1.0, %v1451
          %v1453 = vmul.f32 %v1432, %v1452
          %v1454 = vadd.f32 %v1453, 1.0
          %v1455 = vmul.f32 %v1429, %v1454
          %1456 = vst [vmem:[#allocation3 + $0x1] sm:$0x1] %v1455
          %1457 = vst [vmem:[#allocation4] sm:$0x2] %v1455
          %v1458 = vld [vmem:[#allocation19 + $0x10] sm:$0xff]
          %v1459 = vld [vmem:[#allocation19 + $0x30] sm:$0xff]
          %v1460 = vld [vmem:[#allocation19 + $0x50] sm:$0xff]
          %v1461 = vld [vmem:[#allocation19 + $0x70] sm:$0xff]
          %v1462 = vld [vmem:[#allocation19 + $0x90] sm:$0xff]
          %v1463 = vld [vmem:[#allocation19 + $0xb0] sm:$0xff]
          %v1464 = vld [vmem:[#allocation19 + $0xd0] sm:$0xff]
          %v1465 = vld [vmem:[#allocation19 + $0xf0] sm:$0xff]
          %v1466 = vld [vmem:[#allocation19 + $0x110] sm:$0xff]
          %v1467 = vld [vmem:[#allocation19 + $0x130] sm:$0xff]
          %v1468 = vld [vmem:[#allocation19 + $0x150] sm:$0xff]
          %v1469 = vld [vmem:[#allocation19 + $0x170] sm:$0xff]
          %v1470 = vld [vmem:[#allocation19 + $0x190] sm:$0xff]
          %v1471 = vld [vmem:[#allocation19 + $0x1b0] sm:$0xff]
          %v1472 = vld [vmem:[#allocation19 + $0x1d0] sm:$0xff]
          %v1473 = vld [vmem:[#allocation19 + $0x1f0] sm:$0xff]
          %v1474 = vld [vmem:[#allocation20 + $0x2] sm:$0x1]
          %v1476 = vlaneseq
          %v1477 = vshrl.u32 %v1476, 7
          %v1478 = vsub.s32 0, %v1477
          %v1479 = vrot.slane %v1474, %v1478
          %1481 = vmatprep.subr.mxu0 0.0
          %1482 = vmatpush1.msra.mxu0 %v1458
          %1483 = vmatprep.subr.mxu0 0.0
          %1484 = vmatpush1.msra.mxu0 %v1459
          %1485 = vmatprep.subr.mxu0 0.0
          %1486 = vmatpush1.msra.mxu0 %v1460
          %1487 = vmatprep.subr.mxu0 0.0
          %1488 = vmatpush1.msra.mxu0 %v1461
          %1489 = vmatprep.subr.mxu0 0.0
          %1490 = vmatpush1.msra.mxu0 %v1462
          %1491 = vmatprep.subr.mxu0 0.0
          %1492 = vmatpush1.msra.mxu0 %v1463
          %1493 = vmatprep.subr.mxu0 0.0
          %1494 = vmatpush1.msra.mxu0 %v1464
          %1495 = vmatprep.subr.mxu0 0.0
          %1496 = vmatpush1.msra.mxu0 %v1465
          %1497 = vmatprep.subr.mxu0 0.0
          %1498 = vmatpush1.msra.mxu0 %v1466
          %1499 = vmatprep.subr.mxu0 0.0
          %1500 = vmatpush1.msra.mxu0 %v1467
          %1501 = vmatprep.subr.mxu0 0.0
          %1502 = vmatpush1.msra.mxu0 %v1468
          %1503 = vmatprep.subr.mxu0 0.0
          %1504 = vmatpush1.msra.mxu0 %v1469
          %1505 = vmatprep.subr.mxu0 0.0
          %1506 = vmatpush1.msra.mxu0 %v1470
          %1507 = vmatprep.subr.mxu0 0.0
          %1508 = vmatpush1.msra.mxu0 %v1471
          %1509 = vmatprep.subr.mxu0 0.0
          %1510 = vmatpush1.msra.mxu0 %v1472
          %1511 = vmatprep.subr.mxu0 0.0
          %1512 = vmatpush1.msra.mxu0 %v1473
          %1513 = vmatprep.subr.mxu0 0.0
          %1514 = vmatpush1.msra.mxu0 0.0
          %1515 = vmatprep.subr.mxu0 0.0
          %1516 = vmatpush1.msra.mxu0 0.0
          %1517 = vmatprep.subr.mxu0 0.0
          %1518 = vmatpush1.msra.mxu0 0.0
          %1519 = vmatprep.subr.mxu0 0.0
          %1520 = vmatpush1.msra.mxu0 0.0
          %1521 = vmatprep.subr.mxu0 0.0
          %1522 = vmatpush1.msra.mxu0 0.0
          %1523 = vmatprep.subr.mxu0 0.0
          %1524 = vmatpush1.msra.mxu0 0.0
          %1525 = vmatprep.subr.mxu0 0.0
          %1526 = vmatpush1.msra.mxu0 0.0
          %1527 = vmatprep.subr.mxu0 0.0
          %1528 = vmatpush1.msra.mxu0 0.0
          %1529 = vmatprep.subr.mxu0 0.0
          %1530 = vmatpush1.msra.mxu0 0.0
          %1531 = vmatprep.subr.mxu0 0.0
          %1532 = vmatpush1.msra.mxu0 0.0
          %1533 = vmatprep.subr.mxu0 0.0
          %1534 = vmatpush1.msra.mxu0 0.0
          %1535 = vmatprep.subr.mxu0 0.0
          %1536 = vmatpush1.msra.mxu0 0.0
          %1537 = vmatprep.subr.mxu0 0.0
          %1538 = vmatpush1.msra.mxu0 0.0
          %1539 = vmatprep.subr.mxu0 0.0
          %1540 = vmatpush1.msra.mxu0 0.0
          %1541 = vmatprep.subr.mxu0 0.0
          %1542 = vmatpush1.msra.mxu0 0.0
          %1543 = vmatprep.subr.mxu0 0.0
          %1544 = vmatpush1.msra.mxu0 0.0
          %1545 = vmatprep.mubr.f32.mxu0 0.0
          %1546 = vmatmul.mubr.f32.gmra.mrb[0].mxu0 %v1213
          %v1547 = vpop.f32.mrb[0].mxu0
          %v1548 = vadd.f32 %v1479, %v1547
          %v1549 = vpop.f32.mrb[0].mxu0
          %1550 = vdwg.mxu0
          %v1551 = vmul.f32 %v1548, 0.5
          %v1552 = vmul.f32 %v1548, 0.70710677
          %vm1553 = vcmp.ge.f32.partialorder %v1552, 0.0
          %v1554 = vsel %vm1553, 1.0, -1.0
          %v1555 = vand.u32 2147483647, %v1552
          %v1556 = vmul.f32 %v1555, 0.3275911
          %v1557 = vadd.f32 %v1556, 1.0
          %v1558 = vrcp.pop %v1557
          %v1559 = vmul.f32 1.0, %v1558
          %v1560 = vmul.f32 %v1559, 1.0614054
          %v1561 = vadd.f32 %v1560, -1.4531521
          %v1562 = vmul.f32 %v1559, %v1561
          %v1563 = vadd.f32 %v1562, 1.4214138
          %v1564 = vmul.f32 %v1559, %v1563
          %v1565 = vadd.f32 %v1564, -0.28449672
          %v1566 = vmul.f32 %v1559, %v1565
          %v1567 = vadd.f32 %v1566, 0.2548296
          %v1568 = vmul.f32 %v1559, %v1567
          %v1569 = vsub.f32 0.0, %v1555
          %v1570 = vmul.f32 %v1569, %v1555
          %v1571 = vmul.f32 %v1570, 1.442695
          %v1572 = vpow.pop %v1571
          %v1573 = vmul.f32 %v1568, %v1572
          %v1574 = vsub.f32 1.0, %v1573
          %v1575 = vmul.f32 %v1554, %v1574
          %v1576 = vadd.f32 %v1575, 1.0
          %v1577 = vmul.f32 %v1551, %v1576
          %1578 = vst [vmem:[#allocation3 + $0x2] sm:$0x1] %v1577
          %1579 = vst [vmem:[#allocation4 + $0x1] sm:$0x2] %v1577
          %v1580 = vld [vmem:[#allocation19 + $0x18] sm:$0xff]
          %v1581 = vld [vmem:[#allocation19 + $0x38] sm:$0xff]
          %v1582 = vld [vmem:[#allocation19 + $0x58] sm:$0xff]
          %v1583 = vld [vmem:[#allocation19 + $0x78] sm:$0xff]
          %v1584 = vld [vmem:[#allocation19 + $0x98] sm:$0xff]
          %v1585 = vld [vmem:[#allocation19 + $0xb8] sm:$0xff]
          %v1586 = vld [vmem:[#allocation19 + $0xd8] sm:$0xff]
          %v1587 = vld [vmem:[#allocation19 + $0xf8] sm:$0xff]
          %v1588 = vld [vmem:[#allocation19 + $0x118] sm:$0xff]
          %v1589 = vld [vmem:[#allocation19 + $0x138] sm:$0xff]
          %v1590 = vld [vmem:[#allocation19 + $0x158] sm:$0xff]
          %v1591 = vld [vmem:[#allocation19 + $0x178] sm:$0xff]
          %v1592 = vld [vmem:[#allocation19 + $0x198] sm:$0xff]
          %v1593 = vld [vmem:[#allocation19 + $0x1b8] sm:$0xff]
          %v1594 = vld [vmem:[#allocation19 + $0x1d8] sm:$0xff]
          %v1595 = vld [vmem:[#allocation19 + $0x1f8] sm:$0xff]
          %v1596 = vld [vmem:[#allocation20 + $0x3] sm:$0x1]
          %v1598 = vlaneseq
          %v1599 = vshrl.u32 %v1598, 7
          %v1600 = vsub.s32 0, %v1599
          %v1601 = vrot.slane %v1596, %v1600
          %1603 = vmatprep.subr.mxu0 0.0
          %1604 = vmatpush1.msra.mxu0 %v1580
          %1605 = vmatprep.subr.mxu0 0.0
          %1606 = vmatpush1.msra.mxu0 %v1581
          %1607 = vmatprep.subr.mxu0 0.0
          %1608 = vmatpush1.msra.mxu0 %v1582
          %1609 = vmatprep.subr.mxu0 0.0
          %1610 = vmatpush1.msra.mxu0 %v1583
          %1611 = vmatprep.subr.mxu0 0.0
          %1612 = vmatpush1.msra.mxu0 %v1584
          %1613 = vmatprep.subr.mxu0 0.0
          %1614 = vmatpush1.msra.mxu0 %v1585
          %1615 = vmatprep.subr.mxu0 0.0
          %1616 = vmatpush1.msra.mxu0 %v1586
          %1617 = vmatprep.subr.mxu0 0.0
          %1618 = vmatpush1.msra.mxu0 %v1587
          %1619 = vmatprep.subr.mxu0 0.0
          %1620 = vmatpush1.msra.mxu0 %v1588
          %1621 = vmatprep.subr.mxu0 0.0
          %1622 = vmatpush1.msra.mxu0 %v1589
          %1623 = vmatprep.subr.mxu0 0.0
          %1624 = vmatpush1.msra.mxu0 %v1590
          %1625 = vmatprep.subr.mxu0 0.0
          %1626 = vmatpush1.msra.mxu0 %v1591
          %1627 = vmatprep.subr.mxu0 0.0
          %1628 = vmatpush1.msra.mxu0 %v1592
          %1629 = vmatprep.subr.mxu0 0.0
          %1630 = vmatpush1.msra.mxu0 %v1593
          %1631 = vmatprep.subr.mxu0 0.0
          %1632 = vmatpush1.msra.mxu0 %v1594
          %1633 = vmatprep.subr.mxu0 0.0
          %1634 = vmatpush1.msra.mxu0 %v1595
          %1635 = vmatprep.subr.mxu0 0.0
          %1636 = vmatpush1.msra.mxu0 0.0
          %1637 = vmatprep.subr.mxu0 0.0
          %1638 = vmatpush1.msra.mxu0 0.0
          %1639 = vmatprep.subr.mxu0 0.0
          %1640 = vmatpush1.msra.mxu0 0.0
          %1641 = vmatprep.subr.mxu0 0.0
          %1642 = vmatpush1.msra.mxu0 0.0
          %1643 = vmatprep.subr.mxu0 0.0
          %1644 = vmatpush1.msra.mxu0 0.0
          %1645 = vmatprep.subr.mxu0 0.0
          %1646 = vmatpush1.msra.mxu0 0.0
          %1647 = vmatprep.subr.mxu0 0.0
          %1648 = vmatpush1.msra.mxu0 0.0
          %1649 = vmatprep.subr.mxu0 0.0
          %1650 = vmatpush1.msra.mxu0 0.0
          %1651 = vmatprep.subr.mxu0 0.0
          %1652 = vmatpush1.msra.mxu0 0.0
          %1653 = vmatprep.subr.mxu0 0.0
          %1654 = vmatpush1.msra.mxu0 0.0
          %1655 = vmatprep.subr.mxu0 0.0
          %1656 = vmatpush1.msra.mxu0 0.0
          %1657 = vmatprep.subr.mxu0 0.0
          %1658 = vmatpush1.msra.mxu0 0.0
          %1659 = vmatprep.subr.mxu0 0.0
          %1660 = vmatpush1.msra.mxu0 0.0
          %1661 = vmatprep.subr.mxu0 0.0
          %1662 = vmatpush1.msra.mxu0 0.0
          %1663 = vmatprep.subr.mxu0 0.0
          %1664 = vmatpush1.msra.mxu0 0.0
          %1665 = vmatprep.subr.mxu0 0.0
          %1666 = vmatpush1.msra.mxu0 0.0
          %1667 = vmatprep.mubr.f32.mxu0 0.0
          %1668 = vmatmul.mubr.f32.gmra.mrb[0].mxu0 %v1213
          %v1669 = vpop.f32.mrb[0].mxu0
          %v1670 = vadd.f32 %v1601, %v1669
          %v1671 = vpop.f32.mrb[0].mxu0
          %1672 = vdwg.mxu0
          %v1673 = vmul.f32 %v1670, 0.5
          %v1674 = vmul.f32 %v1670, 0.70710677
          %vm1675 = vcmp.ge.f32.partialorder %v1674, 0.0
          %v1676 = vsel %vm1675, 1.0, -1.0
          %v1677 = vand.u32 2147483647, %v1674
          %v1678 = vmul.f32 %v1677, 0.3275911
          %v1679 = vadd.f32 %v1678, 1.0
          %v1680 = vrcp.pop %v1679
          %v1681 = vmul.f32 1.0, %v1680
          %v1682 = vmul.f32 %v1681, 1.0614054
          %v1683 = vadd.f32 %v1682, -1.4531521
          %v1684 = vmul.f32 %v1681, %v1683
          %v1685 = vadd.f32 %v1684, 1.4214138
          %v1686 = vmul.f32 %v1681, %v1685
          %v1687 = vadd.f32 %v1686, -0.28449672
          %v1688 = vmul.f32 %v1681, %v1687
          %v1689 = vadd.f32 %v1688, 0.2548296
          %v1690 = vmul.f32 %v1681, %v1689
          %v1691 = vsub.f32 0.0, %v1677
          %v1692 = vmul.f32 %v1691, %v1677
          %v1693 = vmul.f32 %v1692, 1.442695
          %v1694 = vpow.pop %v1693
          %v1695 = vmul.f32 %v1690, %v1694
          %v1696 = vsub.f32 1.0, %v1695
          %v1697 = vmul.f32 %v1676, %v1696
          %v1698 = vadd.f32 %v1697, 1.0
          %v1699 = vmul.f32 %v1673, %v1698
          %1700 = vst [vmem:[#allocation3 + $0x3] sm:$0x1] %v1699
          %1701 = vst [vmem:[#allocation4 + $0x2] sm:$0x2] %v1699
          %v1702 = vld [vmem:[#allocation8] sm:$0xff]
          %v1703 = vld [vmem:[#allocation22] sm:$0x1]
          %v1704 = vld [vmem:[#allocation23] sm:$0x1]
          %vm1705 = vcmask 523264
          %v1706 = vsel %vm1705, %v1702, 0.0
          %1707 = vadd.xlane.f32.xlu0 %v1706
          %v1708 = vpop.xlane.xlu0 %1707
          %v1709 = vrcp.pop 64.0
          %v1710 = vmul.f32 %v1708, %v1709
          %v1711 = vsub.f32 %v1702, %v1710
          %v1712 = vmul.f32 %v1711, %v1711
          %v1713 = vsel %vm1705, %v1712, 0.0
          %1714 = vadd.xlane.f32.xlu0 %v1713
          %v1715 = vpop.xlane.xlu0 %1714
          %v1716 = vmul.f32 %v1715, %v1709
          %v1717 = vadd.f32 %v1716, 1e-05
          %v1718 = vrsqrt.pop %v1717
          %v1719 = vmul.f32 %v1711, %v1718
          %v1721 = vlaneseq
          %v1722 = vshrl.u32 %v1721, 7
          %v1723 = vsub.s32 0, %v1722
          %v1724 = vrot.slane %v1703, %v1723
          %v1726 = vmul.f32 %v1719, %v1724
          %v1728 = vlaneseq
          %v1729 = vshrl.u32 %v1728, 7
          %v1730 = vsub.s32 0, %v1729
          %v1731 = vrot.slane %v1704, %v1730
          %v1733 = vadd.f32 %v1726, %v1731
          %v1734 = vld [vmem:[#allocation25] sm:$0xff]
          %v1735 = vld [vmem:[#allocation25 + $0x8] sm:$0xff]
          %v1736 = vld [vmem:[#allocation25 + $0x10] sm:$0xff]
          %v1737 = vld [vmem:[#allocation25 + $0x18] sm:$0xff]
          %v1738 = vld [vmem:[#allocation25 + $0x20] sm:$0xff]
          %v1739 = vld [vmem:[#allocation25 + $0x28] sm:$0xff]
          %v1740 = vld [vmem:[#allocation25 + $0x30] sm:$0xff]
          %v1741 = vld [vmem:[#allocation25 + $0x38] sm:$0xff]
          %v1742 = vld [vmem:[#allocation26] sm:$0x1]
          %v1744 = vlaneseq
          %v1745 = vshrl.u32 %v1744, 7
          %v1746 = vsub.s32 0, %v1745
          %v1747 = vrot.slane %v1742, %v1746
          %v1750 = vsel %vm1705, %v1733, 0
          %1752 = vmatprep.subr.mxu0 0.0
          %1753 = vmatpush1.msra.mxu0 %v1734
          %1754 = vmatprep.subr.mxu0 0.0
          %1755 = vmatpush1.msra.mxu0 %v1735
          %1756 = vmatprep.subr.mxu0 0.0
          %1757 = vmatpush1.msra.mxu0 %v1736
          %1758 = vmatprep.subr.mxu0 0.0
          %1759 = vmatpush1.msra.mxu0 %v1737
          %1760 = vmatprep.subr.mxu0 0.0
          %1761 = vmatpush1.msra.mxu0 %v1738
          %1762 = vmatprep.subr.mxu0 0.0
          %1763 = vmatpush1.msra.mxu0 %v1739
          %1764 = vmatprep.subr.mxu0 0.0
          %1765 = vmatpush1.msra.mxu0 %v1740
          %1766 = vmatprep.subr.mxu0 0.0
          %1767 = vmatpush1.msra.mxu0 %v1741
          %1768 = vmatprep.subr.mxu0 0.0
          %1769 = vmatpush1.msra.mxu0 0.0
          %1770 = vmatprep.subr.mxu0 0.0
          %1771 = vmatpush1.msra.mxu0 0.0
          %1772 = vmatprep.subr.mxu0 0.0
          %1773 = vmatpush1.msra.mxu0 0.0
          %1774 = vmatprep.subr.mxu0 0.0
          %1775 = vmatpush1.msra.mxu0 0.0
          %1776 = vmatprep.subr.mxu0 0.0
          %1777 = vmatpush1.msra.mxu0 0.0
          %1778 = vmatprep.subr.mxu0 0.0
          %1779 = vmatpush1.msra.mxu0 0.0
          %1780 = vmatprep.subr.mxu0 0.0
          %1781 = vmatpush1.msra.mxu0 0.0
          %1782 = vmatprep.subr.mxu0 0.0
          %1783 = vmatpush1.msra.mxu0 0.0
          %1784 = vmatprep.subr.mxu0 0.0
          %1785 = vmatpush1.msra.mxu0 0.0
          %1786 = vmatprep.subr.mxu0 0.0
          %1787 = vmatpush1.msra.mxu0 0.0
          %1788 = vmatprep.subr.mxu0 0.0
          %1789 = vmatpush1.msra.mxu0 0.0
          %1790 = vmatprep.subr.mxu0 0.0
          %1791 = vmatpush1.msra.mxu0 0.0
          %1792 = vmatprep.subr.mxu0 0.0
          %1793 = vmatpush1.msra.mxu0 0.0
          %1794 = vmatprep.subr.mxu0 0.0
          %1795 = vmatpush1.msra.mxu0 0.0
          %1796 = vmatprep.subr.mxu0 0.0
          %1797 = vmatpush1.msra.mxu0 0.0
          %1798 = vmatprep.subr.mxu0 0.0
          %1799 = vmatpush1.msra.mxu0 0.0
          %1800 = vmatprep.subr.mxu0 0.0
          %1801 = vmatpush1.msra.mxu0 0.0
          %1802 = vmatprep.subr.mxu0 0.0
          %1803 = vmatpush1.msra.mxu0 0.0
          %1804 = vmatprep.subr.mxu0 0.0
          %1805 = vmatpush1.msra.mxu0 0.0
          %1806 = vmatprep.subr.mxu0 0.0
          %1807 = vmatpush1.msra.mxu0 0.0
          %1808 = vmatprep.subr.mxu0 0.0
          %1809 = vmatpush1.msra.mxu0 0.0
          %1810 = vmatprep.subr.mxu0 0.0
          %1811 = vmatpush1.msra.mxu0 0.0
          %1812 = vmatprep.subr.mxu0 0.0
          %1813 = vmatpush1.msra.mxu0 0.0
          %1814 = vmatprep.subr.mxu0 0.0
          %1815 = vmatpush1.msra.mxu0 0.0
          %1816 = vmatprep.mubr.f32.mxu0 0.0
          %1817 = vmatmul.mubr.f32.gmra.mrb[0].mxu0 %v1750
          %v1818 = vpop.f32.mrb[0].mxu0
          %v1819 = vadd.f32 %v1747, %v1818
          %v1820 = vpop.f32.mrb[0].mxu0
          %1821 = vdwg.mxu0
          %1822 = vst [vmem:[#allocation2] sm:$0xff] %v1819
        $region200: #{tpu_custom_call.1} parent=107 // pred_fallthru
          _
        %v1823 = vld [vmem:[#allocation2] sm:$0xff]
        %p1824 = scmp.ge.s32.totalorder %s44, 2
        %s1825 = scalar_select %p1824, 1, 0
        %s1826 = scvt.s32.f32 %s1825
        %v1827 = vld [vmem:[#allocation3] sm:$0xf]
        %s1828 = ssub.f32 1.0, %s1826
        %v1829 = vstv %s1828
        %v1830 = vmul.f32 %v1827, %v1829
        %v1831 = vld [vmem:[#allocation4] sm:$0xf]
        %v1832 = vstv %s1826
        %v1833 = vmul.f32 %v1831, %v1832
        %v1834 = vadd.f32 %v1830, %v1833
        %v1835 = vld [vmem:[%s931] sm:$0xff]
        %vm1836 = vcmask 1043456
        %v1837 = vsel %vm1836, %v1834, 0.0
        %1838 = vadd.xlane.f32.xlu0 %v1837
        %v1839 = vpop.xlane.xlu0 %1838
        %v1840 = vrcp.pop 128.0
        %v1841 = vmul.f32 %v1839, %v1840
        %v1842 = vsub.f32 %v1834, %v1841
        %v1843 = vmul.f32 %v1842, %v1842
        %v1844 = vsel %vm1836, %v1843, 0.0
        %1845 = vadd.xlane.f32.xlu0 %v1844
        %v1846 = vpop.xlane.xlu0 %1845
        %v1847 = vmul.f32 %v1846, %v1840
        %v1848 = vadd.f32 %v1847, 1e-05
        %v1849 = vrsqrt.pop %v1848
        %v1850 = vmul.f32 %v1842, %v1849
        %v1851 = vlaneseq
        %v1852 = vshrl.u32 %v1851, 7
        %v1853 = vsub.s32 0, %v1852
        %v1854 = vrot.slane %v1835, %v1853
        %v1855 = vmul.f32 %v1850, %v1854
        %v1856 = vlaneseq
        %v1857 = vshrl.u32 %v1856, 7
        %v1858 = vsub.s32 1, %v1857
        %v1859 = vrot.slane %v1835, %v1858
        %v1860 = vadd.f32 %v1855, %v1859
        %1861 = vadd.xlane.f32.xlu0 %v1823
        %v1862 = vpop.xlane.xlu0 %1861
        %v1863 = vmul.f32 %v1862, %v1840
        %v1864 = vsub.f32 %v1823, %v1863
        %v1865 = vmul.f32 %v1864, %v1864
        %1866 = vadd.xlane.f32.xlu0 %v1865
        %v1867 = vpop.xlane.xlu0 %1866
        %v1868 = vmul.f32 %v1867, %v1840
        %v1869 = vadd.f32 %v1868, 1e-05
        %v1870 = vrsqrt.pop %v1869
        %v1871 = vmul.f32 %v1864, %v1870
        %v1872 = vlaneseq
        %v1873 = vshrl.u32 %v1872, 7
        %v1874 = vsub.s32 2, %v1873
        %v1875 = vrot.slane %v1835, %v1874
        %v1876 = vmul.f32 %v1871, %v1875
        %v1877 = vlaneseq
        %v1878 = vshrl.u32 %v1877, 7
        %v1879 = vsub.s32 3, %v1878
        %v1880 = vrot.slane %v1835, %v1879
        %v1881 = vadd.f32 %v1876, %v1880
        %v1882 = vld [vmem:[%s940] sm:$0xff]
        %v1883 = vld [vmem:[%s940 + $0x40] sm:$0xff]
        %v1884 = vld [vmem:[%s940 + $0x80] sm:$0xff]
        %v1885 = vld [vmem:[%s940 + $0xc0] sm:$0xff]
        %v1886 = vld [vmem:[%s940 + $0x100] sm:$0xff]
        %v1887 = vld [vmem:[%s940 + $0x140] sm:$0xff]
        %v1888 = vld [vmem:[%s940 + $0x180] sm:$0xff]
        %v1889 = vld [vmem:[%s940 + $0x1c0] sm:$0xff]
        %v1890 = vld [vmem:[%s940 + $0x200] sm:$0xff]
        %v1891 = vld [vmem:[%s940 + $0x240] sm:$0xff]
        %v1892 = vld [vmem:[%s940 + $0x280] sm:$0xff]
        %v1893 = vld [vmem:[%s940 + $0x2c0] sm:$0xff]
        %v1894 = vld [vmem:[%s940 + $0x300] sm:$0xff]
        %v1895 = vld [vmem:[%s940 + $0x340] sm:$0xff]
        %v1896 = vld [vmem:[%s940 + $0x380] sm:$0xff]
        %v1897 = vld [vmem:[%s940 + $0x3c0] sm:$0xff]
        %1898 = vmatprep.subr.mxu0 0.0
        %1899 = vmatpush1.msra.mxu0 %v1882
        %1900 = vmatprep.subr.mxu0 0.0
        %1901 = vmatpush1.msra.mxu0 %v1883
        %1902 = vmatprep.subr.mxu0 0.0
        %1903 = vmatpush1.msra.mxu0 %v1884
        %1904 = vmatprep.subr.mxu0 0.0
        %1905 = vmatpush1.msra.mxu0 %v1885
        %1906 = vmatprep.subr.mxu0 0.0
        %1907 = vmatpush1.msra.mxu0 %v1886
        %1908 = vmatprep.subr.mxu0 0.0
        %1909 = vmatpush1.msra.mxu0 %v1887
        %1910 = vmatprep.subr.mxu0 0.0
        %1911 = vmatpush1.msra.mxu0 %v1888
        %1912 = vmatprep.subr.mxu0 0.0
        %1913 = vmatpush1.msra.mxu0 %v1889
        %1914 = vmatprep.subr.mxu0 0.0
        %1915 = vmatpush1.msra.mxu0 %v1890
        %1916 = vmatprep.subr.mxu0 0.0
        %1917 = vmatpush1.msra.mxu0 %v1891
        %1918 = vmatprep.subr.mxu0 0.0
        %1919 = vmatpush1.msra.mxu0 %v1892
        %1920 = vmatprep.subr.mxu0 0.0
        %1921 = vmatpush1.msra.mxu0 %v1893
        %1922 = vmatprep.subr.mxu0 0.0
        %1923 = vmatpush1.msra.mxu0 %v1894
        %1924 = vmatprep.subr.mxu0 0.0
        %1925 = vmatpush1.msra.mxu0 %v1895
        %1926 = vmatprep.subr.mxu0 0.0
        %1927 = vmatpush1.msra.mxu0 %v1896
        %1928 = vmatprep.subr.mxu0 0.0
        %1929 = vmatpush1.msra.mxu0 %v1897
        %1930 = vmatprep.subr.mxu0 0.0
        %1931 = vmatpush1.msra.mxu0 0.0
        %1932 = vmatprep.subr.mxu0 0.0
        %1933 = vmatpush1.msra.mxu0 0.0
        %1934 = vmatprep.subr.mxu0 0.0
        %1935 = vmatpush1.msra.mxu0 0.0
        %1936 = vmatprep.subr.mxu0 0.0
        %1937 = vmatpush1.msra.mxu0 0.0
        %1938 = vmatprep.subr.mxu0 0.0
        %1939 = vmatpush1.msra.mxu0 0.0
        %1940 = vmatprep.subr.mxu0 0.0
        %1941 = vmatpush1.msra.mxu0 0.0
        %1942 = vmatprep.subr.mxu0 0.0
        %1943 = vmatpush1.msra.mxu0 0.0
        %1944 = vmatprep.subr.mxu0 0.0
        %1945 = vmatpush1.msra.mxu0 0.0
        %1946 = vmatprep.subr.mxu0 0.0
        %1947 = vmatpush1.msra.mxu0 0.0
        %1948 = vmatprep.subr.mxu0 0.0
        %1949 = vmatpush1.msra.mxu0 0.0
        %1950 = vmatprep.subr.mxu0 0.0
        %1951 = vmatpush1.msra.mxu0 0.0
        %1952 = vmatprep.subr.mxu0 0.0
        %1953 = vmatpush1.msra.mxu0 0.0
        %1954 = vmatprep.subr.mxu0 0.0
        %1955 = vmatpush1.msra.mxu0 0.0
        %1956 = vmatprep.subr.mxu0 0.0
        %1957 = vmatpush1.msra.mxu0 0.0
        %1958 = vmatprep.subr.mxu0 0.0
        %1959 = vmatpush1.msra.mxu0 0.0
        %1960 = vmatprep.subr.mxu0 0.0
        %1961 = vmatpush1.msra.mxu0 0.0
        %1962 = vmatprep.mubr.f32.mxu0 0.0
        %1963 = vmatmul.mubr.f32.gmra.mrb[0].mxu0 %v1881
        %v1964 = vpop.f32.mrb[0].mxu0
        %v1965 = vadd.f32 0.0, %v1964
        %v1966 = vpop.f32.mrb[0].mxu0
        %1967 = vdwg.mxu0
        %v1969 = vrot.slane %v1881, 4
        %v1971 = vsel %vm1836, %v1860, %v1969
        %v1972 = vld [vmem:[%s940 + $0x8] sm:$0xff]
        %v1973 = vld [vmem:[%s940 + $0x10] sm:$0xff]
        %v1974 = vld [vmem:[%s940 + $0x48] sm:$0xff]
        %v1975 = vld [vmem:[%s940 + $0x50] sm:$0xff]
        %v1976 = vld [vmem:[%s940 + $0x88] sm:$0xff]
        %v1977 = vld [vmem:[%s940 + $0x90] sm:$0xff]
        %v1978 = vld [vmem:[%s940 + $0xc8] sm:$0xff]
        %v1979 = vld [vmem:[%s940 + $0xd0] sm:$0xff]
        %v1980 = vld [vmem:[%s940 + $0x108] sm:$0xff]
        %v1981 = vld [vmem:[%s940 + $0x110] sm:$0xff]
        %v1982 = vld [vmem:[%s940 + $0x148] sm:$0xff]
        %v1983 = vld [vmem:[%s940 + $0x150] sm:$0xff]
        %v1984 = vld [vmem:[%s940 + $0x188] sm:$0xff]
        %v1985 = vld [vmem:[%s940 + $0x190] sm:$0xff]
        %v1986 = vld [vmem:[%s940 + $0x1c8] sm:$0xff]
        %v1987 = vld [vmem:[%s940 + $0x1d0] sm:$0xff]
        %v1988 = vld [vmem:[%s940 + $0x208] sm:$0xff]
        %v1989 = vld [vmem:[%s940 + $0x210] sm:$0xff]
        %v1990 = vld [vmem:[%s940 + $0x248] sm:$0xff]
        %v1991 = vld [vmem:[%s940 + $0x250] sm:$0xff]
        %v1992 = vld [vmem:[%s940 + $0x288] sm:$0xff]
        %v1993 = vld [vmem:[%s940 + $0x290] sm:$0xff]
        %v1994 = vld [vmem:[%s940 + $0x2c8] sm:$0xff]
        %v1995 = vld [vmem:[%s940 + $0x2d0] sm:$0xff]
        %v1996 = vld [vmem:[%s940 + $0x308] sm:$0xff]
        %v1997 = vld [vmem:[%s940 + $0x310] sm:$0xff]
        %v1998 = vld [vmem:[%s940 + $0x348] sm:$0xff]
        %v1999 = vld [vmem:[%s940 + $0x350] sm:$0xff]
        %v2000 = vld [vmem:[%s940 + $0x388] sm:$0xff]
        %v2001 = vld [vmem:[%s940 + $0x390] sm:$0xff]
        %v2002 = vld [vmem:[%s940 + $0x3c8] sm:$0xff]
        %v2003 = vld [vmem:[%s940 + $0x3d0] sm:$0xff]
        %2004 = vmatprep.subr.mxu0 %v1973
        %2005 = vmatpush1.msra.mxu0 %v1972
        %2006 = vmatprep.subr.mxu0 %v1975
        %2007 = vmatpush1.msra.mxu0 %v1974
        %2008 = vmatprep.subr.mxu0 %v1977
        %2009 = vmatpush1.msra.mxu0 %v1976
        %2010 = vmatprep.subr.mxu0 %v1979
        %2011 = vmatpush1.msra.mxu0 %v1978
        %2012 = vmatprep.subr.mxu0 %v1981
        %2013 = vmatpush1.msra.mxu0 %v1980
        %2014 = vmatprep.subr.mxu0 %v1983
        %2015 = vmatpush1.msra.mxu0 %v1982
        %2016 = vmatprep.subr.mxu0 %v1985
        %2017 = vmatpush1.msra.mxu0 %v1984
        %2018 = vmatprep.subr.mxu0 %v1987
        %2019 = vmatpush1.msra.mxu0 %v1986
        %2020 = vmatprep.subr.mxu0 %v1989
        %2021 = vmatpush1.msra.mxu0 %v1988
        %2022 = vmatprep.subr.mxu0 %v1991
        %2023 = vmatpush1.msra.mxu0 %v1990
        %2024 = vmatprep.subr.mxu0 %v1993
        %2025 = vmatpush1.msra.mxu0 %v1992
        %2026 = vmatprep.subr.mxu0 %v1995
        %2027 = vmatpush1.msra.mxu0 %v1994
        %2028 = vmatprep.subr.mxu0 %v1997
        %2029 = vmatpush1.msra.mxu0 %v1996
        %2030 = vmatprep.subr.mxu0 %v1999
        %2031 = vmatpush1.msra.mxu0 %v1998
        %2032 = vmatprep.subr.mxu0 %v2001
        %2033 = vmatpush1.msra.mxu0 %v2000
        %2034 = vmatprep.subr.mxu0 %v2003
        %2035 = vmatpush1.msra.mxu0 %v2002
        %2036 = vmatprep.subr.mxu0 0.0
        %2037 = vmatpush1.msra.mxu0 0.0
        %2038 = vmatprep.subr.mxu0 0.0
        %2039 = vmatpush1.msra.mxu0 0.0
        %2040 = vmatprep.subr.mxu0 0.0
        %2041 = vmatpush1.msra.mxu0 0.0
        %2042 = vmatprep.subr.mxu0 0.0
        %2043 = vmatpush1.msra.mxu0 0.0
        %2044 = vmatprep.subr.mxu0 0.0
        %2045 = vmatpush1.msra.mxu0 0.0
        %2046 = vmatprep.subr.mxu0 0.0
        %2047 = vmatpush1.msra.mxu0 0.0
        %2048 = vmatprep.subr.mxu0 0.0
        %2049 = vmatpush1.msra.mxu0 0.0
        %2050 = vmatprep.subr.mxu0 0.0
        %2051 = vmatpush1.msra.mxu0 0.0
        %2052 = vmatprep.subr.mxu0 0.0
        %2053 = vmatpush1.msra.mxu0 0.0
        %2054 = vmatprep.subr.mxu0 0.0
        %2055 = vmatpush1.msra.mxu0 0.0
        %2056 = vmatprep.subr.mxu0 0.0
        %2057 = vmatpush1.msra.mxu0 0.0
        %2058 = vmatprep.subr.mxu0 0.0
        %2059 = vmatpush1.msra.mxu0 0.0
        %2060 = vmatprep.subr.mxu0 0.0
        %2061 = vmatpush1.msra.mxu0 0.0
        %2062 = vmatprep.subr.mxu0 0.0
        %2063 = vmatpush1.msra.mxu0 0.0
        %2064 = vmatprep.subr.mxu0 0.0
        %2065 = vmatpush1.msra.mxu0 0.0
        %2066 = vmatprep.subr.mxu0 0.0
        %2067 = vmatpush1.msra.mxu0 0.0
        %2068 = vmatprep.mubr.f32.mxu0 0.0
        %2069 = vmatmul.mubr.f32.gmra.mrb[0].mxu0 %v1971
        %v2070 = vpop.f32.mrb[0].mxu0
        %v2071 = vadd.f32 0.0, %v2070
        %v2072 = vpop.f32.mrb[0].mxu0
        %v2073 = vadd.f32 0.0, %v2072
        %2074 = vmatprep.mubr.f32.mxu0 0.0
        %2075 = vmatmul.mubr.f32.gmra.mrb[0].mxu0 %v1969
        %v2076 = vpop.f32.mrb[0].mxu0
        %v2077 = vadd.f32 0.0, %v2076
        %v2078 = vpop.f32.mrb[0].mxu0
        %v2079 = vadd.f32 0.0, %v2078
        %2080 = vdwg.mxu0
        %v2081 = vmul.f32 %v1965, 0.17677669
        %vm2082 = vcmask 261120
        %v2084 = vsel %vm2082, %v2081, 0
        %v2087 = vsel %vm2082, %v2071, 0
        %v2090 = vsel %vm2082, %v2077, 0
        %2092 = vmatprep.subr.mxu0 0.0
        %2093 = vmatpush1.xpose.msra.mxu0 %v2087
        %2094 = vmatprep.subr.mxu0 0.0
        %2095 = vmatpush1.xpose.msra.mxu0 %v2090
        %2096 = vmatprep.subr.mxu0 0.0
        %2097 = vmatpush1.xpose.msra.mxu0 0.0
        %2098 = vmatprep.subr.mxu0 0.0
        %2099 = vmatpush1.xpose.msra.mxu0 0.0
        %2100 = vmatprep.subr.mxu0 0.0
        %2101 = vmatpush1.xpose.msra.mxu0 0.0
        %2102 = vmatprep.subr.mxu0 0.0
        %2103 = vmatpush1.xpose.msra.mxu0 0.0
        %2104 = vmatprep.subr.mxu0 0.0
        %2105 = vmatpush1.xpose.msra.mxu0 0.0
        %2106 = vmatprep.subr.mxu0 0.0
        %2107 = vmatpush1.xpose.msra.mxu0 0.0
        %2108 = vmatprep.subr.mxu0 0.0
        %2109 = vmatpush1.xpose.msra.mxu0 0.0
        %2110 = vmatprep.subr.mxu0 0.0
        %2111 = vmatpush1.xpose.msra.mxu0 0.0
        %2112 = vmatprep.subr.mxu0 0.0
        %2113 = vmatpush1.xpose.msra.mxu0 0.0
        %2114 = vmatprep.subr.mxu0 0.0
        %2115 = vmatpush1.xpose.msra.mxu0 0.0
        %2116 = vmatprep.subr.mxu0 0.0
        %2117 = vmatpush1.xpose.msra.mxu0 0.0
        %2118 = vmatprep.subr.mxu0 0.0
        %2119 = vmatpush1.xpose.msra.mxu0 0.0
        %2120 = vmatprep.subr.mxu0 0.0
        %2121 = vmatpush1.xpose.msra.mxu0 0.0
        %2122 = vmatprep.subr.mxu0 0.0
        %2123 = vmatpush1.xpose.msra.mxu0 0.0
        %2124 = vmatprep.subr.mxu0 0.0
        %2125 = vmatpush1.xpose.msra.mxu0 0.0
        %2126 = vmatprep.subr.mxu0 0.0
        %2127 = vmatpush1.xpose.msra.mxu0 0.0
        %2128 = vmatprep.subr.mxu0 0.0
        %2129 = vmatpush1.xpose.msra.mxu0 0.0
        %2130 = vmatprep.subr.mxu0 0.0
        %2131 = vmatpush1.xpose.msra.mxu0 0.0
        %2132 = vmatprep.subr.mxu0 0.0
        %2133 = vmatpush1.xpose.msra.mxu0 0.0
        %2134 = vmatprep.subr.mxu0 0.0
        %2135 = vmatpush1.xpose.msra.mxu0 0.0
        %2136 = vmatprep.subr.mxu0 0.0
        %2137 = vmatpush1.xpose.msra.mxu0 0.0
        %2138 = vmatprep.subr.mxu0 0.0
        %2139 = vmatpush1.xpose.msra.mxu0 0.0
        %2140 = vmatprep.subr.mxu0 0.0
        %2141 = vmatpush1.xpose.msra.mxu0 0.0
        %2142 = vmatprep.subr.mxu0 0.0
        %2143 = vmatpush1.xpose.msra.mxu0 0.0
        %2144 = vmatprep.subr.mxu0 0.0
        %2145 = vmatpush1.xpose.msra.mxu0 0.0
        %2146 = vmatprep.subr.mxu0 0.0
        %2147 = vmatpush1.xpose.msra.mxu0 0.0
        %2148 = vmatprep.subr.mxu0 0.0
        %2149 = vmatpush1.xpose.msra.mxu0 0.0
        %2150 = vmatprep.subr.mxu0 0.0
        %2151 = vmatpush1.xpose.msra.mxu0 0.0
        %2152 = vmatprep.subr.mxu0 0.0
        %2153 = vmatpush1.xpose.msra.mxu0 0.0
        %2154 = vmatprep.subr.mxu0 0.0
        %2155 = vmatpush1.xpose.msra.mxu0 0.0
        %2156 = vmatprep.mubr.f32.mxu0 0.0
        %2157 = vmatmul.mubr.f32.gmra.mrb[0].mxu0 %v2084
        %v2158 = vpop.f32.mrb[0].mxu0
        %v2159 = vadd.f32 0.0, %v2158
        %v2160 = vpop.f32.mrb[0].mxu0
        %2161 = vdwg.mxu0
        %vm2162 = vcmask 97280
        %v2163 = vsel %vm2162, %v2159, -inf
        %2164 = vmax.xlane.f32.xlu0 %v2163
        %v2165 = vpop.xlane.xlu0 %2164
        %v2166 = vsub.f32 %v2159, %v2165
        %v2167 = vmul.f32 %v2166, 1.442695
        %v2168 = vpow.pop %v2167
        %v2169 = vsel %vm2162, %v2168, 0.0
        %2170 = vadd.xlane.f32.xlu0 %v2169
        %v2171 = vpop.xlane.xlu0 %2170
        %v2172 = vrcp.pop %v2171
        %v2173 = vmul.f32 %v2168, %v2172
        %v2175 = vsel %vm2162, %v2173, 0
        %v2178 = vsel %vm1836, %v2079, 0
        %2180 = vmatprep.subr.mxu0 0.0
        %2181 = vmatpush1.msra.mxu0 %v2073
        %2182 = vmatprep.subr.mxu0 0.0
        %2183 = vmatpush1.msra.mxu0 %v2178
        %2184 = vmatprep.subr.mxu0 0.0
        %2185 = vmatpush1.msra.mxu0 0.0
        %2186 = vmatprep.subr.mxu0 0.0
        %2187 = vmatpush1.msra.mxu0 0.0
        %2188 = vmatprep.subr.mxu0 0.0
        %2189 = vmatpush1.msra.mxu0 0.0
        %2190 = vmatprep.subr.mxu0 0.0
        %2191 = vmatpush1.msra.mxu0 0.0
        %2192 = vmatprep.subr.mxu0 0.0
        %2193 = vmatpush1.msra.mxu0 0.0
        %2194 = vmatprep.subr.mxu0 0.0
        %2195 = vmatpush1.msra.mxu0 0.0
        %2196 = vmatprep.subr.mxu0 0.0
        %2197 = vmatpush1.msra.mxu0 0.0
        %2198 = vmatprep.subr.mxu0 0.0
        %2199 = vmatpush1.msra.mxu0 0.0
        %2200 = vmatprep.subr.mxu0 0.0
        %2201 = vmatpush1.msra.mxu0 0.0
        %2202 = vmatprep.subr.mxu0 0.0
        %2203 = vmatpush1.msra.mxu0 0.0
        %2204 = vmatprep.subr.mxu0 0.0
        %2205 = vmatpush1.msra.mxu0 0.0
        %2206 = vmatprep.subr.mxu0 0.0
        %2207 = vmatpush1.msra.mxu0 0.0
        %2208 = vmatprep.subr.mxu0 0.0
        %2209 = vmatpush1.msra.mxu0 0.0
        %2210 = vmatprep.subr.mxu0 0.0
        %2211 = vmatpush1.msra.mxu0 0.0
        %2212 = vmatprep.subr.mxu0 0.0
        %2213 = vmatpush1.msra.mxu0 0.0
        %2214 = vmatprep.subr.mxu0 0.0
        %2215 = vmatpush1.msra.mxu0 0.0
        %2216 = vmatprep.subr.mxu0 0.0
        %2217 = vmatpush1.msra.mxu0 0.0
        %2218 = vmatprep.subr.mxu0 0.0
        %2219 = vmatpush1.msra.mxu0 0.0
        %2220 = vmatprep.subr.mxu0 0.0
        %2221 = vmatpush1.msra.mxu0 0.0
        %2222 = vmatprep.subr.mxu0 0.0
        %2223 = vmatpush1.msra.mxu0 0.0
        %2224 = vmatprep.subr.mxu0 0.0
        %2225 = vmatpush1.msra.mxu0 0.0
        %2226 = vmatprep.subr.mxu0 0.0
        %2227 = vmatpush1.msra.mxu0 0.0
        %2228 = vmatprep.subr.mxu0 0.0
        %2229 = vmatpush1.msra.mxu0 0.0
        %2230 = vmatprep.subr.mxu0 0.0
        %2231 = vmatpush1.msra.mxu0 0.0
        %2232 = vmatprep.subr.mxu0 0.0
        %2233 = vmatpush1.msra.mxu0 0.0
        %2234 = vmatprep.subr.mxu0 0.0
        %2235 = vmatpush1.msra.mxu0 0.0
        %2236 = vmatprep.subr.mxu0 0.0
        %2237 = vmatpush1.msra.mxu0 0.0
        %2238 = vmatprep.subr.mxu0 0.0
        %2239 = vmatpush1.msra.mxu0 0.0
        %2240 = vmatprep.subr.mxu0 0.0
        %2241 = vmatpush1.msra.mxu0 0.0
        %2242 = vmatprep.subr.mxu0 0.0
        %2243 = vmatpush1.msra.mxu0 0.0
        %2244 = vmatprep.mubr.f32.mxu0 0.0
        %2245 = vmatmul.mubr.f32.gmra.mrb[0].mxu0 %v2175
        %v2246 = vpop.f32.mrb[0].mxu0
        %v2247 = vadd.f32 0.0, %v2246
        %v2248 = vpop.f32.mrb[0].mxu0
        %2249 = vdwg.mxu0
        %2250 = vrot.lane.b32.xlu0 %v2081, 96
        %v2251 = vpop.permute.xlu0 %2250
        %2252 = vrot.lane.b32.xlu0 %v2071, 96
        %v2253 = vpop.permute.xlu0 %2252
        %2254 = vrot.lane.b32.xlu0 %v2077, 96
        %v2255 = vpop.permute.xlu0 %2254
        %v2256 = vsel %vm2082, %v2251, 0
        %v2258 = vsel %vm2082, %v2253, 0
        %v2260 = vsel %vm2082, %v2255, 0
        %2262 = vmatprep.subr.mxu0 0.0
        %2263 = vmatpush1.xpose.msra.mxu0 %v2258
        %2264 = vmatprep.subr.mxu0 0.0
        %2265 = vmatpush1.xpose.msra.mxu0 %v2260
        %2266 = vmatprep.subr.mxu0 0.0
        %2267 = vmatpush1.xpose.msra.mxu0 0.0
        %2268 = vmatprep.subr.mxu0 0.0
        %2269 = vmatpush1.xpose.msra.mxu0 0.0
        %2270 = vmatprep.subr.mxu0 0.0
        %2271 = vmatpush1.xpose.msra.mxu0 0.0
        %2272 = vmatprep.subr.mxu0 0.0
        %2273 = vmatpush1.xpose.msra.mxu0 0.0
        %2274 = vmatprep.subr.mxu0 0.0
        %2275 = vmatpush1.xpose.msra.mxu0 0.0
        %2276 = vmatprep.subr.mxu0 0.0
        %2277 = vmatpush1.xpose.msra.mxu0 0.0
        %2278 = vmatprep.subr.mxu0 0.0
        %2279 = vmatpush1.xpose.msra.mxu0 0.0
        %2280 = vmatprep.subr.mxu0 0.0
        %2281 = vmatpush1.xpose.msra.mxu0 0.0
        %2282 = vmatprep.subr.mxu0 0.0
        %2283 = vmatpush1.xpose.msra.mxu0 0.0
        %2284 = vmatprep.subr.mxu0 0.0
        %2285 = vmatpush1.xpose.msra.mxu0 0.0
        %2286 = vmatprep.subr.mxu0 0.0
        %2287 = vmatpush1.xpose.msra.mxu0 0.0
        %2288 = vmatprep.subr.mxu0 0.0
        %2289 = vmatpush1.xpose.msra.mxu0 0.0
        %2290 = vmatprep.subr.mxu0 0.0
        %2291 = vmatpush1.xpose.msra.mxu0 0.0
        %2292 = vmatprep.subr.mxu0 0.0
        %2293 = vmatpush1.xpose.msra.mxu0 0.0
        %2294 = vmatprep.subr.mxu0 0.0
        %2295 = vmatpush1.xpose.msra.mxu0 0.0
        %2296 = vmatprep.subr.mxu0 0.0
        %2297 = vmatpush1.xpose.msra.mxu0 0.0
        %2298 = vmatprep.subr.mxu0 0.0
        %2299 = vmatpush1.xpose.msra.mxu0 0.0
        %2300 = vmatprep.subr.mxu0 0.0
        %2301 = vmatpush1.xpose.msra.mxu0 0.0
        %2302 = vmatprep.subr.mxu0 0.0
        %2303 = vmatpush1.xpose.msra.mxu0 0.0
        %2304 = vmatprep.subr.mxu0 0.0
        %2305 = vmatpush1.xpose.msra.mxu0 0.0
        %2306 = vmatprep.subr.mxu0 0.0
        %2307 = vmatpush1.xpose.msra.mxu0 0.0
        %2308 = vmatprep.subr.mxu0 0.0
        %2309 = vmatpush1.xpose.msra.mxu0 0.0
        %2310 = vmatprep.subr.mxu0 0.0
        %2311 = vmatpush1.xpose.msra.mxu0 0.0
        %2312 = vmatprep.subr.mxu0 0.0
        %2313 = vmatpush1.xpose.msra.mxu0 0.0
        %2314 = vmatprep.subr.mxu0 0.0
        %2315 = vmatpush1.xpose.msra.mxu0 0.0
        %2316 = vmatprep.subr.mxu0 0.0
        %2317 = vmatpush1.xpose.msra.mxu0 0.0
        %2318 = vmatprep.subr.mxu0 0.0
        %2319 = vmatpush1.xpose.msra.mxu0 0.0
        %2320 = vmatprep.subr.mxu0 0.0
        %2321 = vmatpush1.xpose.msra.mxu0 0.0
        %2322 = vmatprep.subr.mxu0 0.0
        %2323 = vmatpush1.xpose.msra.mxu0 0.0
        %2324 = vmatprep.subr.mxu0 0.0
        %2325 = vmatpush1.xpose.msra.mxu0 0.0
        %2326 = vmatprep.mubr.f32.mxu0 0.0
        %2327 = vmatmul.mubr.f32.gmra.mrb[0].mxu0 %v2256
        %v2328 = vpop.f32.mrb[0].mxu0
        %v2329 = vadd.f32 0.0, %v2328
        %v2330 = vpop.f32.mrb[0].mxu0
        %2331 = vdwg.mxu0
        %v2332 = vsel %vm2162, %v2329, -inf
        %2333 = vmax.xlane.f32.xlu0 %v2332
        %v2334 = vpop.xlane.xlu0 %2333
        %v2335 = vsub.f32 %v2329, %v2334
        %v2336 = vmul.f32 %v2335, 1.442695
        %v2337 = vpow.pop %v2336
        %v2338 = vsel %vm2162, %v2337, 0.0
        %2339 = vadd.xlane.f32.xlu0 %v2338
        %v2340 = vpop.xlane.xlu0 %2339
        %v2341 = vrcp.pop %v2340
        %v2342 = vmul.f32 %v2337, %v2341
        %2344 = vrot.lane.b32.xlu0 %v2073, 96
        %v2345 = vpop.permute.xlu0 %2344
        %2346 = vrot.lane.b32.xlu0 %v2079, 96
        %v2347 = vpop.permute.xlu0 %2346
        %v2350 = vsel %vm2162, %v2342, 0
        %v2352 = vsel %vm1836, %v2347, 0
        %2354 = vmatprep.subr.mxu0 0.0
        %2355 = vmatpush1.msra.mxu0 %v2345
        %2356 = vmatprep.subr.mxu0 0.0
        %2357 = vmatpush1.msra.mxu0 %v2352
        %2358 = vmatprep.subr.mxu0 0.0
        %2359 = vmatpush1.msra.mxu0 0.0
        %2360 = vmatprep.subr.mxu0 0.0
        %2361 = vmatpush1.msra.mxu0 0.0
        %2362 = vmatprep.subr.mxu0 0.0
        %2363 = vmatpush1.msra.mxu0 0.0
        %2364 = vmatprep.subr.mxu0 0.0
        %2365 = vmatpush1.msra.mxu0 0.0
        %2366 = vmatprep.subr.mxu0 0.0
        %2367 = vmatpush1.msra.mxu0 0.0
        %2368 = vmatprep.subr.mxu0 0.0
        %2369 = vmatpush1.msra.mxu0 0.0
        %2370 = vmatprep.subr.mxu0 0.0
        %2371 = vmatpush1.msra.mxu0 0.0
        %2372 = vmatprep.subr.mxu0 0.0
        %2373 = vmatpush1.msra.mxu0 0.0
        %2374 = vmatprep.subr.mxu0 0.0
        %2375 = vmatpush1.msra.mxu0 0.0
        %2376 = vmatprep.subr.mxu0 0.0
        %2377 = vmatpush1.msra.mxu0 0.0
        %2378 = vmatprep.subr.mxu0 0.0
        %2379 = vmatpush1.msra.mxu0 0.0
        %2380 = vmatprep.subr.mxu0 0.0
        %2381 = vmatpush1.msra.mxu0 0.0
        %2382 = vmatprep.subr.mxu0 0.0
        %2383 = vmatpush1.msra.mxu0 0.0
        %2384 = vmatprep.subr.mxu0 0.0
        %2385 = vmatpush1.msra.mxu0 0.0
        %2386 = vmatprep.subr.mxu0 0.0
        %2387 = vmatpush1.msra.mxu0 0.0
        %2388 = vmatprep.subr.mxu0 0.0
        %2389 = vmatpush1.msra.mxu0 0.0
        %2390 = vmatprep.subr.mxu0 0.0
        %2391 = vmatpush1.msra.mxu0 0.0
        %2392 = vmatprep.subr.mxu0 0.0
        %2393 = vmatpush1.msra.mxu0 0.0
        %2394 = vmatprep.subr.mxu0 0.0
        %2395 = vmatpush1.msra.mxu0 0.0
        %2396 = vmatprep.subr.mxu0 0.0
        %2397 = vmatpush1.msra.mxu0 0.0
        %2398 = vmatprep.subr.mxu0 0.0
        %2399 = vmatpush1.msra.mxu0 0.0
        %2400 = vmatprep.subr.mxu0 0.0
        %2401 = vmatpush1.msra.mxu0 0.0
        %2402 = vmatprep.subr.mxu0 0.0
        %2403 = vmatpush1.msra.mxu0 0.0
        %2404 = vmatprep.subr.mxu0 0.0
        %2405 = vmatpush1.msra.mxu0 0.0
        %2406 = vmatprep.subr.mxu0 0.0
        %2407 = vmatpush1.msra.mxu0 0.0
        %2408 = vmatprep.subr.mxu0 0.0
        %2409 = vmatpush1.msra.mxu0 0.0
        %2410 = vmatprep.subr.mxu0 0.0
        %2411 = vmatpush1.msra.mxu0 0.0
        %2412 = vmatprep.subr.mxu0 0.0
        %2413 = vmatpush1.msra.mxu0 0.0
        %2414 = vmatprep.subr.mxu0 0.0
        %2415 = vmatpush1.msra.mxu0 0.0
        %2416 = vmatprep.subr.mxu0 0.0
        %2417 = vmatpush1.msra.mxu0 0.0
        %2418 = vmatprep.mubr.f32.mxu0 0.0
        %2419 = vmatmul.mubr.f32.gmra.mrb[0].mxu0 %v2350
        %v2420 = vpop.f32.mrb[0].mxu0
        %v2421 = vadd.f32 0.0, %v2420
        %v2422 = vpop.f32.mrb[0].mxu0
        %2423 = vdwg.mxu0
        %2424 = vrot.lane.b32.xlu0 %v2081, 64
        %v2425 = vpop.permute.xlu0 %2424
        %2426 = vrot.lane.b32.xlu0 %v2071, 64
        %v2427 = vpop.permute.xlu0 %2426
        %2428 = vrot.lane.b32.xlu0 %v2077, 64
        %v2429 = vpop.permute.xlu0 %2428
        %v2430 = vsel %vm2082, %v2425, 0
        %v2432 = vsel %vm2082, %v2427, 0
        %v2434 = vsel %vm2082, %v2429, 0
        %2436 = vmatprep.subr.mxu0 0.0
        %2437 = vmatpush1.xpose.msra.mxu0 %v2432
        %2438 = vmatprep.subr.mxu0 0.0
        %2439 = vmatpush1.xpose.msra.mxu0 %v2434
        %2440 = vmatprep.subr.mxu0 0.0
        %2441 = vmatpush1.xpose.msra.mxu0 0.0
        %2442 = vmatprep.subr.mxu0 0.0
        %2443 = vmatpush1.xpose.msra.mxu0 0.0
        %2444 = vmatprep.subr.mxu0 0.0
        %2445 = vmatpush1.xpose.msra.mxu0 0.0
        %2446 = vmatprep.subr.mxu0 0.0
        %2447 = vmatpush1.xpose.msra.mxu0 0.0
        %2448 = vmatprep.subr.mxu0 0.0
        %2449 = vmatpush1.xpose.msra.mxu0 0.0
        %2450 = vmatprep.subr.mxu0 0.0
        %2451 = vmatpush1.xpose.msra.mxu0 0.0
        %2452 = vmatprep.subr.mxu0 0.0
        %2453 = vmatpush1.xpose.msra.mxu0 0.0
        %2454 = vmatprep.subr.mxu0 0.0
        %2455 = vmatpush1.xpose.msra.mxu0 0.0
        %2456 = vmatprep.subr.mxu0 0.0
        %2457 = vmatpush1.xpose.msra.mxu0 0.0
        %2458 = vmatprep.subr.mxu0 0.0
        %2459 = vmatpush1.xpose.msra.mxu0 0.0
        %2460 = vmatprep.subr.mxu0 0.0
        %2461 = vmatpush1.xpose.msra.mxu0 0.0
        %2462 = vmatprep.subr.mxu0 0.0
        %2463 = vmatpush1.xpose.msra.mxu0 0.0
        %2464 = vmatprep.subr.mxu0 0.0
        %2465 = vmatpush1.xpose.msra.mxu0 0.0
        %2466 = vmatprep.subr.mxu0 0.0
        %2467 = vmatpush1.xpose.msra.mxu0 0.0
        %2468 = vmatprep.subr.mxu0 0.0
        %2469 = vmatpush1.xpose.msra.mxu0 0.0
        %2470 = vmatprep.subr.mxu0 0.0
        %2471 = vmatpush1.xpose.msra.mxu0 0.0
        %2472 = vmatprep.subr.mxu0 0.0
        %2473 = vmatpush1.xpose.msra.mxu0 0.0
        %2474 = vmatprep.subr.mxu0 0.0
        %2475 = vmatpush1.xpose.msra.mxu0 0.0
        %2476 = vmatprep.subr.mxu0 0.0
        %2477 = vmatpush1.xpose.msra.mxu0 0.0
        %2478 = vmatprep.subr.mxu0 0.0
        %2479 = vmatpush1.xpose.msra.mxu0 0.0
        %2480 = vmatprep.subr.mxu0 0.0
        %2481 = vmatpush1.xpose.msra.mxu0 0.0
        %2482 = vmatprep.subr.mxu0 0.0
        %2483 = vmatpush1.xpose.msra.mxu0 0.0
        %2484 = vmatprep.subr.mxu0 0.0
        %2485 = vmatpush1.xpose.msra.mxu0 0.0
        %2486 = vmatprep.subr.mxu0 0.0
        %2487 = vmatpush1.xpose.msra.mxu0 0.0
        %2488 = vmatprep.subr.mxu0 0.0
        %2489 = vmatpush1.xpose.msra.mxu0 0.0
        %2490 = vmatprep.subr.mxu0 0.0
        %2491 = vmatpush1.xpose.msra.mxu0 0.0
        %2492 = vmatprep.subr.mxu0 0.0
        %2493 = vmatpush1.xpose.msra.mxu0 0.0
        %2494 = vmatprep.subr.mxu0 0.0
        %2495 = vmatpush1.xpose.msra.mxu0 0.0
        %2496 = vmatprep.subr.mxu0 0.0
        %2497 = vmatpush1.xpose.msra.mxu0 0.0
        %2498 = vmatprep.subr.mxu0 0.0
        %2499 = vmatpush1.xpose.msra.mxu0 0.0
        %2500 = vmatprep.mubr.f32.mxu0 0.0
        %2501 = vmatmul.mubr.f32.gmra.mrb[0].mxu0 %v2430
        %v2502 = vpop.f32.mrb[0].mxu0
        %v2503 = vadd.f32 0.0, %v2502
        %v2504 = vpop.f32.mrb[0].mxu0
        %2505 = vdwg.mxu0
        %v2506 = vsel %vm2162, %v2503, -inf
        %2507 = vmax.xlane.f32.xlu0 %v2506
        %v2508 = vpop.xlane.xlu0 %2507
        %v2509 = vsub.f32 %v2503, %v2508
        %v2510 = vmul.f32 %v2509, 1.442695
        %v2511 = vpow.pop %v2510
        %v2512 = vsel %vm2162, %v2511, 0.0
        %2513 = vadd.xlane.f32.xlu0 %v2512
        %v2514 = vpop.xlane.xlu0 %2513
        %v2515 = vrcp.pop %v2514
        %v2516 = vmul.f32 %v2511, %v2515
        %2517 = vrot.lane.b32.xlu0 %v2073, 64
        %v2518 = vpop.permute.xlu0 %2517
        %2519 = vrot.lane.b32.xlu0 %v2079, 64
        %v2520 = vpop.permute.xlu0 %2519
        %v2523 = vsel %vm2162, %v2516, 0
        %v2525 = vsel %vm1836, %v2520, 0
        %2527 = vmatprep.subr.mxu0 0.0
        %2528 = vmatpush1.msra.mxu0 %v2518
        %2529 = vmatprep.subr.mxu0 0.0
        %2530 = vmatpush1.msra.mxu0 %v2525
        %2531 = vmatprep.subr.mxu0 0.0
        %2532 = vmatpush1.msra.mxu0 0.0
        %2533 = vmatprep.subr.mxu0 0.0
        %2534 = vmatpush1.msra.mxu0 0.0
        %2535 = vmatprep.subr.mxu0 0.0
        %2536 = vmatpush1.msra.mxu0 0.0
        %2537 = vmatprep.subr.mxu0 0.0
        %2538 = vmatpush1.msra.mxu0 0.0
        %2539 = vmatprep.subr.mxu0 0.0
        %2540 = vmatpush1.msra.mxu0 0.0
        %2541 = vmatprep.subr.mxu0 0.0
        %2542 = vmatpush1.msra.mxu0 0.0
        %2543 = vmatprep.subr.mxu0 0.0
        %2544 = vmatpush1.msra.mxu0 0.0
        %2545 = vmatprep.subr.mxu0 0.0
        %2546 = vmatpush1.msra.mxu0 0.0
        %2547 = vmatprep.subr.mxu0 0.0
        %2548 = vmatpush1.msra.mxu0 0.0
        %2549 = vmatprep.subr.mxu0 0.0
        %2550 = vmatpush1.msra.mxu0 0.0
        %2551 = vmatprep.subr.mxu0 0.0
        %2552 = vmatpush1.msra.mxu0 0.0
        %2553 = vmatprep.subr.mxu0 0.0
        %2554 = vmatpush1.msra.mxu0 0.0
        %2555 = vmatprep.subr.mxu0 0.0
        %2556 = vmatpush1.msra.mxu0 0.0
        %2557 = vmatprep.subr.mxu0 0.0
        %2558 = vmatpush1.msra.mxu0 0.0
        %2559 = vmatprep.subr.mxu0 0.0
        %2560 = vmatpush1.msra.mxu0 0.0
        %2561 = vmatprep.subr.mxu0 0.0
        %2562 = vmatpush1.msra.mxu0 0.0
        %2563 = vmatprep.subr.mxu0 0.0
        %2564 = vmatpush1.msra.mxu0 0.0
        %2565 = vmatprep.subr.mxu0 0.0
        %2566 = vmatpush1.msra.mxu0 0.0
        %2567 = vmatprep.subr.mxu0 0.0
        %2568 = vmatpush1.msra.mxu0 0.0
        %2569 = vmatprep.subr.mxu0 0.0
        %2570 = vmatpush1.msra.mxu0 0.0
        %2571 = vmatprep.subr.mxu0 0.0
        %2572 = vmatpush1.msra.mxu0 0.0
        %2573 = vmatprep.subr.mxu0 0.0
        %2574 = vmatpush1.msra.mxu0 0.0
        %2575 = vmatprep.subr.mxu0 0.0
        %2576 = vmatpush1.msra.mxu0 0.0
        %2577 = vmatprep.subr.mxu0 0.0
        %2578 = vmatpush1.msra.mxu0 0.0
        %2579 = vmatprep.subr.mxu0 0.0
        %2580 = vmatpush1.msra.mxu0 0.0
        %2581 = vmatprep.subr.mxu0 0.0
        %2582 = vmatpush1.msra.mxu0 0.0
        %2583 = vmatprep.subr.mxu0 0.0
        %2584 = vmatpush1.msra.mxu0 0.0
        %2585 = vmatprep.subr.mxu0 0.0
        %2586 = vmatpush1.msra.mxu0 0.0
        %2587 = vmatprep.subr.mxu0 0.0
        %2588 = vmatpush1.msra.mxu0 0.0
        %2589 = vmatprep.subr.mxu0 0.0
        %2590 = vmatpush1.msra.mxu0 0.0
        %2591 = vmatprep.mubr.f32.mxu0 0.0
        %2592 = vmatmul.mubr.f32.gmra.mrb[0].mxu0 %v2523
        %v2593 = vpop.f32.mrb[0].mxu0
        %v2594 = vadd.f32 0.0, %v2593
        %v2595 = vpop.f32.mrb[0].mxu0
        %2596 = vdwg.mxu0
        %2597 = vrot.lane.b32.xlu0 %v2081, 32
        %v2598 = vpop.permute.xlu0 %2597
        %2599 = vrot.lane.b32.xlu0 %v2071, 32
        %v2600 = vpop.permute.xlu0 %2599
        %2601 = vrot.lane.b32.xlu0 %v2077, 32
        %v2602 = vpop.permute.xlu0 %2601
        %v2603 = vsel %vm2082, %v2598, 0
        %v2605 = vsel %vm2082, %v2600, 0
        %v2607 = vsel %vm2082, %v2602, 0
        %2609 = vmatprep.subr.mxu0 0.0
        %2610 = vmatpush1.xpose.msra.mxu0 %v2605
        %2611 = vmatprep.subr.mxu0 0.0
        %2612 = vmatpush1.xpose.msra.mxu0 %v2607
        %2613 = vmatprep.subr.mxu0 0.0
        %2614 = vmatpush1.xpose.msra.mxu0 0.0
        %2615 = vmatprep.subr.mxu0 0.0
        %2616 = vmatpush1.xpose.msra.mxu0 0.0
        %2617 = vmatprep.subr.mxu0 0.0
        %2618 = vmatpush1.xpose.msra.mxu0 0.0
        %2619 = vmatprep.subr.mxu0 0.0
        %2620 = vmatpush1.xpose.msra.mxu0 0.0
        %2621 = vmatprep.subr.mxu0 0.0
        %2622 = vmatpush1.xpose.msra.mxu0 0.0
        %2623 = vmatprep.subr.mxu0 0.0
        %2624 = vmatpush1.xpose.msra.mxu0 0.0
        %2625 = vmatprep.subr.mxu0 0.0
        %2626 = vmatpush1.xpose.msra.mxu0 0.0
        %2627 = vmatprep.subr.mxu0 0.0
        %2628 = vmatpush1.xpose.msra.mxu0 0.0
        %2629 = vmatprep.subr.mxu0 0.0
        %2630 = vmatpush1.xpose.msra.mxu0 0.0
        %2631 = vmatprep.subr.mxu0 0.0
        %2632 = vmatpush1.xpose.msra.mxu0 0.0
        %2633 = vmatprep.subr.mxu0 0.0
        %2634 = vmatpush1.xpose.msra.mxu0 0.0
        %2635 = vmatprep.subr.mxu0 0.0
        %2636 = vmatpush1.xpose.msra.mxu0 0.0
        %2637 = vmatprep.subr.mxu0 0.0
        %2638 = vmatpush1.xpose.msra.mxu0 0.0
        %2639 = vmatprep.subr.mxu0 0.0
        %2640 = vmatpush1.xpose.msra.mxu0 0.0
        %2641 = vmatprep.subr.mxu0 0.0
        %2642 = vmatpush1.xpose.msra.mxu0 0.0
        %2643 = vmatprep.subr.mxu0 0.0
        %2644 = vmatpush1.xpose.msra.mxu0 0.0
        %2645 = vmatprep.subr.mxu0 0.0
        %2646 = vmatpush1.xpose.msra.mxu0 0.0
        %2647 = vmatprep.subr.mxu0 0.0
        %2648 = vmatpush1.xpose.msra.mxu0 0.0
        %2649 = vmatprep.subr.mxu0 0.0
        %2650 = vmatpush1.xpose.msra.mxu0 0.0
        %2651 = vmatprep.subr.mxu0 0.0
        %2652 = vmatpush1.xpose.msra.mxu0 0.0
        %2653 = vmatprep.subr.mxu0 0.0
        %2654 = vmatpush1.xpose.msra.mxu0 0.0
        %2655 = vmatprep.subr.mxu0 0.0
        %2656 = vmatpush1.xpose.msra.mxu0 0.0
        %2657 = vmatprep.subr.mxu0 0.0
        %2658 = vmatpush1.xpose.msra.mxu0 0.0
        %2659 = vmatprep.subr.mxu0 0.0
        %2660 = vmatpush1.xpose.msra.mxu0 0.0
        %2661 = vmatprep.subr.mxu0 0.0
        %2662 = vmatpush1.xpose.msra.mxu0 0.0
        %2663 = vmatprep.subr.mxu0 0.0
        %2664 = vmatpush1.xpose.msra.mxu0 0.0
        %2665 = vmatprep.subr.mxu0 0.0
        %2666 = vmatpush1.xpose.msra.mxu0 0.0
        %2667 = vmatprep.subr.mxu0 0.0
        %2668 = vmatpush1.xpose.msra.mxu0 0.0
        %2669 = vmatprep.subr.mxu0 0.0
        %2670 = vmatpush1.xpose.msra.mxu0 0.0
        %2671 = vmatprep.subr.mxu0 0.0
        %2672 = vmatpush1.xpose.msra.mxu0 0.0
        %2673 = vmatprep.mubr.f32.mxu0 0.0
        %2674 = vmatmul.mubr.f32.gmra.mrb[0].mxu0 %v2603
        %v2675 = vpop.f32.mrb[0].mxu0
        %v2676 = vadd.f32 0.0, %v2675
        %v2677 = vpop.f32.mrb[0].mxu0
        %2678 = vdwg.mxu0
        %v2679 = vsel %vm2162, %v2676, -inf
        %2680 = vmax.xlane.f32.xlu0 %v2679
        %v2681 = vpop.xlane.xlu0 %2680
        %v2682 = vsub.f32 %v2676, %v2681
        %v2683 = vmul.f32 %v2682, 1.442695
        %v2684 = vpow.pop %v2683
        %v2685 = vsel %vm2162, %v2684, 0.0
        %2686 = vadd.xlane.f32.xlu0 %v2685
        %v2687 = vpop.xlane.xlu0 %2686
        %v2688 = vrcp.pop %v2687
        %v2689 = vmul.f32 %v2684, %v2688
        %2690 = vrot.lane.b32.xlu0 %v2073, 32
        %v2691 = vpop.permute.xlu0 %2690
        %2692 = vrot.lane.b32.xlu0 %v2079, 32
        %v2693 = vpop.permute.xlu0 %2692
        %v2696 = vsel %vm2162, %v2689, 0
        %v2698 = vsel %vm1836, %v2693, 0
        %2700 = vmatprep.subr.mxu0 0.0
        %2701 = vmatpush1.msra.mxu0 %v2691
        %2702 = vmatprep.subr.mxu0 0.0
        %2703 = vmatpush1.msra.mxu0 %v2698
        %2704 = vmatprep.subr.mxu0 0.0
        %2705 = vmatpush1.msra.mxu0 0.0
        %2706 = vmatprep.subr.mxu0 0.0
        %2707 = vmatpush1.msra.mxu0 0.0
        %2708 = vmatprep.subr.mxu0 0.0
        %2709 = vmatpush1.msra.mxu0 0.0
        %2710 = vmatprep.subr.mxu0 0.0
        %2711 = vmatpush1.msra.mxu0 0.0
        %2712 = vmatprep.subr.mxu0 0.0
        %2713 = vmatpush1.msra.mxu0 0.0
        %2714 = vmatprep.subr.mxu0 0.0
        %2715 = vmatpush1.msra.mxu0 0.0
        %2716 = vmatprep.subr.mxu0 0.0
        %2717 = vmatpush1.msra.mxu0 0.0
        %2718 = vmatprep.subr.mxu0 0.0
        %2719 = vmatpush1.msra.mxu0 0.0
        %2720 = vmatprep.subr.mxu0 0.0
        %2721 = vmatpush1.msra.mxu0 0.0
        %2722 = vmatprep.subr.mxu0 0.0
        %2723 = vmatpush1.msra.mxu0 0.0
        %2724 = vmatprep.subr.mxu0 0.0
        %2725 = vmatpush1.msra.mxu0 0.0
        %2726 = vmatprep.subr.mxu0 0.0
        %2727 = vmatpush1.msra.mxu0 0.0
        %2728 = vmatprep.subr.mxu0 0.0
        %2729 = vmatpush1.msra.mxu0 0.0
        %2730 = vmatprep.subr.mxu0 0.0
        %2731 = vmatpush1.msra.mxu0 0.0
        %2732 = vmatprep.subr.mxu0 0.0
        %2733 = vmatpush1.msra.mxu0 0.0
        %2734 = vmatprep.subr.mxu0 0.0
        %2735 = vmatpush1.msra.mxu0 0.0
        %2736 = vmatprep.subr.mxu0 0.0
        %2737 = vmatpush1.msra.mxu0 0.0
        %2738 = vmatprep.subr.mxu0 0.0
        %2739 = vmatpush1.msra.mxu0 0.0
        %2740 = vmatprep.subr.mxu0 0.0
        %2741 = vmatpush1.msra.mxu0 0.0
        %2742 = vmatprep.subr.mxu0 0.0
        %2743 = vmatpush1.msra.mxu0 0.0
        %2744 = vmatprep.subr.mxu0 0.0
        %2745 = vmatpush1.msra.mxu0 0.0
        %2746 = vmatprep.subr.mxu0 0.0
        %2747 = vmatpush1.msra.mxu0 0.0
        %2748 = vmatprep.subr.mxu0 0.0
        %2749 = vmatpush1.msra.mxu0 0.0
        %2750 = vmatprep.subr.mxu0 0.0
        %2751 = vmatpush1.msra.mxu0 0.0
        %2752 = vmatprep.subr.mxu0 0.0
        %2753 = vmatpush1.msra.mxu0 0.0
        %2754 = vmatprep.subr.mxu0 0.0
        %2755 = vmatpush1.msra.mxu0 0.0
        %2756 = vmatprep.subr.mxu0 0.0
        %2757 = vmatpush1.msra.mxu0 0.0
        %2758 = vmatprep.subr.mxu0 0.0
        %2759 = vmatpush1.msra.mxu0 0.0
        %2760 = vmatprep.subr.mxu0 0.0
        %2761 = vmatpush1.msra.mxu0 0.0
        %2762 = vmatprep.subr.mxu0 0.0
        %2763 = vmatpush1.msra.mxu0 0.0
        %2764 = vmatprep.mubr.f32.mxu0 0.0
        %2765 = vmatmul.mubr.f32.gmra.mrb[0].mxu0 %v2696
        %v2766 = vpop.f32.mrb[0].mxu0
        %v2767 = vadd.f32 0.0, %v2766
        %v2768 = vpop.f32.mrb[0].mxu0
        %2769 = vdwg.mxu0
        %2771 = vrot.lane.b32.xlu0 %v2421, 32
        %v2772 = vpop.permute.xlu0 %2771
        %2775 = vrot.lane.b32.xlu0 %v2594, 64
        %v2776 = vpop.permute.xlu0 %2775
        %2779 = vrot.lane.b32.xlu0 %v2767, 96
        %v2780 = vpop.permute.xlu0 %2779
        %v2782 = vsel %vm2082, %v2247, %v2772
        %vm2783 = vcmask 523264
        %v2784 = vsel %vm2783, %v2782, %v2776
        %vm2785 = vcmask 785408
        %v2786 = vsel %vm2785, %v2784, %v2780
        %v2787 = vld [vmem:[%s949] sm:$0xff]
        %v2788 = vld [vmem:[%s949 + $0x10] sm:$0xff]
        %v2789 = vld [vmem:[%s949 + $0x20] sm:$0xff]
        %v2790 = vld [vmem:[%s949 + $0x30] sm:$0xff]
        %v2791 = vld [vmem:[%s949 + $0x40] sm:$0xff]
        %v2792 = vld [vmem:[%s949 + $0x50] sm:$0xff]
        %v2793 = vld [vmem:[%s949 + $0x60] sm:$0xff]
        %v2794 = vld [vmem:[%s949 + $0x70] sm:$0xff]
        %v2795 = vld [vmem:[%s949 + $0x80] sm:$0xff]
        %v2796 = vld [vmem:[%s949 + $0x90] sm:$0xff]
        %v2797 = vld [vmem:[%s949 + $0xa0] sm:$0xff]
        %v2798 = vld [vmem:[%s949 + $0xb0] sm:$0xff]
        %v2799 = vld [vmem:[%s949 + $0xc0] sm:$0xff]
        %v2800 = vld [vmem:[%s949 + $0xd0] sm:$0xff]
        %v2801 = vld [vmem:[%s949 + $0xe0] sm:$0xff]
        %v2802 = vld [vmem:[%s949 + $0xf0] sm:$0xff]
        %2803 = vmatprep.subr.mxu0 0.0
        %2804 = vmatpush1.msra.mxu0 %v2787
        %2805 = vmatprep.subr.mxu0 0.0
        %2806 = vmatpush1.msra.mxu0 %v2788
        %2807 = vmatprep.subr.mxu0 0.0
        %2808 = vmatpush1.msra.mxu0 %v2789
        %2809 = vmatprep.subr.mxu0 0.0
        %2810 = vmatpush1.msra.mxu0 %v2790
        %2811 = vmatprep.subr.mxu0 0.0
        %2812 = vmatpush1.msra.mxu0 %v2791
        %2813 = vmatprep.subr.mxu0 0.0
        %2814 = vmatpush1.msra.mxu0 %v2792
        %2815 = vmatprep.subr.mxu0 0.0
        %2816 = vmatpush1.msra.mxu0 %v2793
        %2817 = vmatprep.subr.mxu0 0.0
        %2818 = vmatpush1.msra.mxu0 %v2794
        %2819 = vmatprep.subr.mxu0 0.0
        %2820 = vmatpush1.msra.mxu0 %v2795
        %2821 = vmatprep.subr.mxu0 0.0
        %2822 = vmatpush1.msra.mxu0 %v2796
        %2823 = vmatprep.subr.mxu0 0.0
        %2824 = vmatpush1.msra.mxu0 %v2797
        %2825 = vmatprep.subr.mxu0 0.0
        %2826 = vmatpush1.msra.mxu0 %v2798
        %2827 = vmatprep.subr.mxu0 0.0
        %2828 = vmatpush1.msra.mxu0 %v2799
        %2829 = vmatprep.subr.mxu0 0.0
        %2830 = vmatpush1.msra.mxu0 %v2800
        %2831 = vmatprep.subr.mxu0 0.0
        %2832 = vmatpush1.msra.mxu0 %v2801
        %2833 = vmatprep.subr.mxu0 0.0
        %2834 = vmatpush1.msra.mxu0 %v2802
        %2835 = vmatprep.subr.mxu0 0.0
        %2836 = vmatpush1.msra.mxu0 0.0
        %2837 = vmatprep.subr.mxu0 0.0
        %2838 = vmatpush1.msra.mxu0 0.0
        %2839 = vmatprep.subr.mxu0 0.0
        %2840 = vmatpush1.msra.mxu0 0.0
        %2841 = vmatprep.subr.mxu0 0.0
        %2842 = vmatpush1.msra.mxu0 0.0
        %2843 = vmatprep.subr.mxu0 0.0
        %2844 = vmatpush1.msra.mxu0 0.0
        %2845 = vmatprep.subr.mxu0 0.0
        %2846 = vmatpush1.msra.mxu0 0.0
        %2847 = vmatprep.subr.mxu0 0.0
        %2848 = vmatpush1.msra.mxu0 0.0
        %2849 = vmatprep.subr.mxu0 0.0
        %2850 = vmatpush1.msra.mxu0 0.0
        %2851 = vmatprep.subr.mxu0 0.0
        %2852 = vmatpush1.msra.mxu0 0.0
        %2853 = vmatprep.subr.mxu0 0.0
        %2854 = vmatpush1.msra.mxu0 0.0
        %2855 = vmatprep.subr.mxu0 0.0
        %2856 = vmatpush1.msra.mxu0 0.0
        %2857 = vmatprep.subr.mxu0 0.0
        %2858 = vmatpush1.msra.mxu0 0.0
        %2859 = vmatprep.subr.mxu0 0.0
        %2860 = vmatpush1.msra.mxu0 0.0
        %2861 = vmatprep.subr.mxu0 0.0
        %2862 = vmatpush1.msra.mxu0 0.0
        %2863 = vmatprep.subr.mxu0 0.0
        %2864 = vmatpush1.msra.mxu0 0.0
        %2865 = vmatprep.subr.mxu0 0.0
        %2866 = vmatpush1.msra.mxu0 0.0
        %2867 = vmatprep.mubr.f32.mxu0 0.0
        %2868 = vmatmul.mubr.f32.gmra.mrb[0].mxu0 %v2786
        %v2869 = vpop.f32.mrb[0].mxu0
        %v2870 = vadd.f32 %v1823, %v2869
        %v2871 = vpop.f32.mrb[0].mxu0
        %2872 = vdwg.mxu0
        %2873 = vadd.xlane.f32.xlu0 %v2870
        %v2874 = vpop.xlane.xlu0 %2873
        %v2875 = vmul.f32 %v2874, %v1840
        %v2876 = vsub.f32 %v2870, %v2875
        %v2877 = vmul.f32 %v2876, %v2876
        %2878 = vadd.xlane.f32.xlu0 %v2877
        %v2879 = vpop.xlane.xlu0 %2878
        %v2880 = vmul.f32 %v2879, %v1840
        %v2881 = vadd.f32 %v2880, 1e-05
        %v2882 = vrsqrt.pop %v2881
        %v2883 = vmul.f32 %v2876, %v2882
        %v2884 = vlaneseq
        %v2885 = vshrl.u32 %v2884, 7
        %v2886 = vsub.s32 4, %v2885
        %v2887 = vrot.slane %v1835, %v2886
        %v2888 = vmul.f32 %v2883, %v2887
        %v2889 = vlaneseq
        %v2890 = vshrl.u32 %v2889, 7
        %v2891 = vsub.s32 5, %v2890
        %v2892 = vrot.slane %v1835, %v2891
        %v2893 = vadd.f32 %v2888, %v2892
        %v2894 = vld [vmem:[%s940 + $0x18] sm:$0xff]
        %v2895 = vld [vmem:[%s940 + $0x58] sm:$0xff]
        %v2896 = vld [vmem:[%s940 + $0x98] sm:$0xff]
        %v2897 = vld [vmem:[%s940 + $0xd8] sm:$0xff]
        %v2898 = vld [vmem:[%s940 + $0x118] sm:$0xff]
        %v2899 = vld [vmem:[%s940 + $0x158] sm:$0xff]
        %v2900 = vld [vmem:[%s940 + $0x198] sm:$0xff]
        %v2901 = vld [vmem:[%s940 + $0x1d8] sm:$0xff]
        %v2902 = vld [vmem:[%s940 + $0x218] sm:$0xff]
        %v2903 = vld [vmem:[%s940 + $0x258] sm:$0xff]
        %v2904 = vld [vmem:[%s940 + $0x298] sm:$0xff]
        %v2905 = vld [vmem:[%s940 + $0x2d8] sm:$0xff]
        %v2906 = vld [vmem:[%s940 + $0x318] sm:$0xff]
        %v2907 = vld [vmem:[%s940 + $0x358] sm:$0xff]
        %v2908 = vld [vmem:[%s940 + $0x398] sm:$0xff]
        %v2909 = vld [vmem:[%s940 + $0x3d8] sm:$0xff]
        %2910 = vmatprep.subr.mxu0 0.0
        %2911 = vmatpush1.msra.mxu0 %v2894
        %2912 = vmatprep.subr.mxu0 0.0
        %2913 = vmatpush1.msra.mxu0 %v2895
        %2914 = vmatprep.subr.mxu0 0.0
        %2915 = vmatpush1.msra.mxu0 %v2896
        %2916 = vmatprep.subr.mxu0 0.0
        %2917 = vmatpush1.msra.mxu0 %v2897
        %2918 = vmatprep.subr.mxu0 0.0
        %2919 = vmatpush1.msra.mxu0 %v2898
        %2920 = vmatprep.subr.mxu0 0.0
        %2921 = vmatpush1.msra.mxu0 %v2899
        %2922 = vmatprep.subr.mxu0 0.0
        %2923 = vmatpush1.msra.mxu0 %v2900
        %2924 = vmatprep.subr.mxu0 0.0
        %2925 = vmatpush1.msra.mxu0 %v2901
        %2926 = vmatprep.subr.mxu0 0.0
        %2927 = vmatpush1.msra.mxu0 %v2902
        %2928 = vmatprep.subr.mxu0 0.0
        %2929 = vmatpush1.msra.mxu0 %v2903
        %2930 = vmatprep.subr.mxu0 0.0
        %2931 = vmatpush1.msra.mxu0 %v2904
        %2932 = vmatprep.subr.mxu0 0.0
        %2933 = vmatpush1.msra.mxu0 %v2905
        %2934 = vmatprep.subr.mxu0 0.0
        %2935 = vmatpush1.msra.mxu0 %v2906
        %2936 = vmatprep.subr.mxu0 0.0
        %2937 = vmatpush1.msra.mxu0 %v2907
        %2938 = vmatprep.subr.mxu0 0.0
        %2939 = vmatpush1.msra.mxu0 %v2908
        %2940 = vmatprep.subr.mxu0 0.0
        %2941 = vmatpush1.msra.mxu0 %v2909
        %2942 = vmatprep.subr.mxu0 0.0
        %2943 = vmatpush1.msra.mxu0 0.0
        %2944 = vmatprep.subr.mxu0 0.0
        %2945 = vmatpush1.msra.mxu0 0.0
        %2946 = vmatprep.subr.mxu0 0.0
        %2947 = vmatpush1.msra.mxu0 0.0
        %2948 = vmatprep.subr.mxu0 0.0
        %2949 = vmatpush1.msra.mxu0 0.0
        %2950 = vmatprep.subr.mxu0 0.0
        %2951 = vmatpush1.msra.mxu0 0.0
        %2952 = vmatprep.subr.mxu0 0.0
        %2953 = vmatpush1.msra.mxu0 0.0
        %2954 = vmatprep.subr.mxu0 0.0
        %2955 = vmatpush1.msra.mxu0 0.0
        %2956 = vmatprep.subr.mxu0 0.0
        %2957 = vmatpush1.msra.mxu0 0.0
        %2958 = vmatprep.subr.mxu0 0.0
        %2959 = vmatpush1.msra.mxu0 0.0
        %2960 = vmatprep.subr.mxu0 0.0
        %2961 = vmatpush1.msra.mxu0 0.0
        %2962 = vmatprep.subr.mxu0 0.0
        %2963 = vmatpush1.msra.mxu0 0.0
        %2964 = vmatprep.subr.mxu0 0.0
        %2965 = vmatpush1.msra.mxu0 0.0
        %2966 = vmatprep.subr.mxu0 0.0
        %2967 = vmatpush1.msra.mxu0 0.0
        %2968 = vmatprep.subr.mxu0 0.0
        %2969 = vmatpush1.msra.mxu0 0.0
        %2970 = vmatprep.subr.mxu0 0.0
        %2971 = vmatpush1.msra.mxu0 0.0
        %2972 = vmatprep.subr.mxu0 0.0
        %2973 = vmatpush1.msra.mxu0 0.0
        %2974 = vmatprep.mubr.f32.mxu0 0.0
        %2975 = vmatmul.mubr.f32.gmra.mrb[0].mxu0 %v2893
        %v2976 = vpop.f32.mrb[0].mxu0
        %v2977 = vadd.f32 0.0, %v2976
        %v2978 = vpop.f32.mrb[0].mxu0
        %2979 = vdwg.mxu0
        %v2980 = vld [vmem:[%s940 + $0x20] sm:$0xff]
        %v2981 = vld [vmem:[%s940 + $0x28] sm:$0xff]
        %v2982 = vld [vmem:[%s940 + $0x60] sm:$0xff]
        %v2983 = vld [vmem:[%s940 + $0x68] sm:$0xff]
        %v2984 = vld [vmem:[%s940 + $0xa0] sm:$0xff]
        %v2985 = vld [vmem:[%s940 + $0xa8] sm:$0xff]
        %v2986 = vld [vmem:[%s940 + $0xe0] sm:$0xff]
        %v2987 = vld [vmem:[%s940 + $0xe8] sm:$0xff]
        %v2988 = vld [vmem:[%s940 + $0x120] sm:$0xff]
        %v2989 = vld [vmem:[%s940 + $0x128] sm:$0xff]
        %v2990 = vld [vmem:[%s940 + $0x160] sm:$0xff]
        %v2991 = vld [vmem:[%s940 + $0x168] sm:$0xff]
        %v2992 = vld [vmem:[%s940 + $0x1a0] sm:$0xff]
        %v2993 = vld [vmem:[%s940 + $0x1a8] sm:$0xff]
        %v2994 = vld [vmem:[%s940 + $0x1e0] sm:$0xff]
        %v2995 = vld [vmem:[%s940 + $0x1e8] sm:$0xff]
        %v2996 = vld [vmem:[%s940 + $0x220] sm:$0xff]
        %v2997 = vld [vmem:[%s940 + $0x228] sm:$0xff]
        %v2998 = vld [vmem:[%s940 + $0x260] sm:$0xff]
        %v2999 = vld [vmem:[%s940 + $0x268] sm:$0xff]
        %v3000 = vld [vmem:[%s940 + $0x2a0] sm:$0xff]
        %v3001 = vld [vmem:[%s940 + $0x2a8] sm:$0xff]
        %v3002 = vld [vmem:[%s940 + $0x2e0] sm:$0xff]
        %v3003 = vld [vmem:[%s940 + $0x2e8] sm:$0xff]
        %v3004 = vld [vmem:[%s940 + $0x320] sm:$0xff]
        %v3005 = vld [vmem:[%s940 + $0x328] sm:$0xff]
        %v3006 = vld [vmem:[%s940 + $0x360] sm:$0xff]
        %v3007 = vld [vmem:[%s940 + $0x368] sm:$0xff]
        %v3008 = vld [vmem:[%s940 + $0x3a0] sm:$0xff]
        %v3009 = vld [vmem:[%s940 + $0x3a8] sm:$0xff]
        %v3010 = vld [vmem:[%s940 + $0x3e0] sm:$0xff]
        %v3011 = vld [vmem:[%s940 + $0x3e8] sm:$0xff]
        %3012 = vmatprep.subr.mxu0 %v2981
        %3013 = vmatpush1.msra.mxu0 %v2980
        %3014 = vmatprep.subr.mxu0 %v2983
        %3015 = vmatpush1.msra.mxu0 %v2982
        %3016 = vmatprep.subr.mxu0 %v2985
        %3017 = vmatpush1.msra.mxu0 %v2984
        %3018 = vmatprep.subr.mxu0 %v2987
        %3019 = vmatpush1.msra.mxu0 %v2986
        %3020 = vmatprep.subr.mxu0 %v2989
        %3021 = vmatpush1.msra.mxu0 %v2988
        %3022 = vmatprep.subr.mxu0 %v2991
        %3023 = vmatpush1.msra.mxu0 %v2990
        %3024 = vmatprep.subr.mxu0 %v2993
        %3025 = vmatpush1.msra.mxu0 %v2992
        %3026 = vmatprep.subr.mxu0 %v2995
        %3027 = vmatpush1.msra.mxu0 %v2994
        %3028 = vmatprep.subr.mxu0 %v2997
        %3029 = vmatpush1.msra.mxu0 %v2996
        %3030 = vmatprep.subr.mxu0 %v2999
        %3031 = vmatpush1.msra.mxu0 %v2998
        %3032 = vmatprep.subr.mxu0 %v3001
        %3033 = vmatpush1.msra.mxu0 %v3000
        %3034 = vmatprep.subr.mxu0 %v3003
        %3035 = vmatpush1.msra.mxu0 %v3002
        %3036 = vmatprep.subr.mxu0 %v3005
        %3037 = vmatpush1.msra.mxu0 %v3004
        %3038 = vmatprep.subr.mxu0 %v3007
        %3039 = vmatpush1.msra.mxu0 %v3006
        %3040 = vmatprep.subr.mxu0 %v3009
        %3041 = vmatpush1.msra.mxu0 %v3008
        %3042 = vmatprep.subr.mxu0 %v3011
        %3043 = vmatpush1.msra.mxu0 %v3010
        %3044 = vmatprep.subr.mxu0 0.0
        %3045 = vmatpush1.msra.mxu0 0.0
        %3046 = vmatprep.subr.mxu0 0.0
        %3047 = vmatpush1.msra.mxu0 0.0
        %3048 = vmatprep.subr.mxu0 0.0
        %3049 = vmatpush1.msra.mxu0 0.0
        %3050 = vmatprep.subr.mxu0 0.0
        %3051 = vmatpush1.msra.mxu0 0.0
        %3052 = vmatprep.subr.mxu0 0.0
        %3053 = vmatpush1.msra.mxu0 0.0
        %3054 = vmatprep.subr.mxu0 0.0
        %3055 = vmatpush1.msra.mxu0 0.0
        %3056 = vmatprep.subr.mxu0 0.0
        %3057 = vmatpush1.msra.mxu0 0.0
        %3058 = vmatprep.subr.mxu0 0.0
        %3059 = vmatpush1.msra.mxu0 0.0
        %3060 = vmatprep.subr.mxu0 0.0
        %3061 = vmatpush1.msra.mxu0 0.0
        %3062 = vmatprep.subr.mxu0 0.0
        %3063 = vmatpush1.msra.mxu0 0.0
        %3064 = vmatprep.subr.mxu0 0.0
        %3065 = vmatpush1.msra.mxu0 0.0
        %3066 = vmatprep.subr.mxu0 0.0
        %3067 = vmatpush1.msra.mxu0 0.0
        %3068 = vmatprep.subr.mxu0 0.0
        %3069 = vmatpush1.msra.mxu0 0.0
        %3070 = vmatprep.subr.mxu0 0.0
        %3071 = vmatpush1.msra.mxu0 0.0
        %3072 = vmatprep.subr.mxu0 0.0
        %3073 = vmatpush1.msra.mxu0 0.0
        %3074 = vmatprep.subr.mxu0 0.0
        %3075 = vmatpush1.msra.mxu0 0.0
        %3076 = vmatprep.mubr.f32.mxu0 0.0
        %3077 = vmatmul.mubr.f32.gmra.mrb[0].mxu0 %v2893
        %v3078 = vpop.f32.mrb[0].mxu0
        %v3079 = vadd.f32 0.0, %v3078
        %v3080 = vpop.f32.mrb[0].mxu0
        %v3081 = vadd.f32 0.0, %v3080
        %3082 = vdwg.mxu0
        %v3083 = vmul.f32 %v2977, 0.17677669
        %v3085 = vsel %vm2082, %v3083, 0
        %v3088 = vsel %vm2082, %v3079, 0
        %3090 = vmatprep.subr.mxu0 0.0
        %3091 = vmatpush1.xpose.msra.mxu0 %v3088
        %3092 = vmatprep.subr.mxu0 0.0
        %3093 = vmatpush1.xpose.msra.mxu0 0.0
        %3094 = vmatprep.subr.mxu0 0.0
        %3095 = vmatpush1.xpose.msra.mxu0 0.0
        %3096 = vmatprep.subr.mxu0 0.0
        %3097 = vmatpush1.xpose.msra.mxu0 0.0
        %3098 = vmatprep.subr.mxu0 0.0
        %3099 = vmatpush1.xpose.msra.mxu0 0.0
        %3100 = vmatprep.subr.mxu0 0.0
        %3101 = vmatpush1.xpose.msra.mxu0 0.0
        %3102 = vmatprep.subr.mxu0 0.0
        %3103 = vmatpush1.xpose.msra.mxu0 0.0
        %3104 = vmatprep.subr.mxu0 0.0
        %3105 = vmatpush1.xpose.msra.mxu0 0.0
        %3106 = vmatprep.subr.mxu0 0.0
        %3107 = vmatpush1.xpose.msra.mxu0 0.0
        %3108 = vmatprep.subr.mxu0 0.0
        %3109 = vmatpush1.xpose.msra.mxu0 0.0
        %3110 = vmatprep.subr.mxu0 0.0
        %3111 = vmatpush1.xpose.msra.mxu0 0.0
        %3112 = vmatprep.subr.mxu0 0.0
        %3113 = vmatpush1.xpose.msra.mxu0 0.0
        %3114 = vmatprep.subr.mxu0 0.0
        %3115 = vmatpush1.xpose.msra.mxu0 0.0
        %3116 = vmatprep.subr.mxu0 0.0
        %3117 = vmatpush1.xpose.msra.mxu0 0.0
        %3118 = vmatprep.subr.mxu0 0.0
        %3119 = vmatpush1.xpose.msra.mxu0 0.0
        %3120 = vmatprep.subr.mxu0 0.0
        %3121 = vmatpush1.xpose.msra.mxu0 0.0
        %3122 = vmatprep.subr.mxu0 0.0
        %3123 = vmatpush1.xpose.msra.mxu0 0.0
        %3124 = vmatprep.subr.mxu0 0.0
        %3125 = vmatpush1.xpose.msra.mxu0 0.0
        %3126 = vmatprep.subr.mxu0 0.0
        %3127 = vmatpush1.xpose.msra.mxu0 0.0
        %3128 = vmatprep.subr.mxu0 0.0
        %3129 = vmatpush1.xpose.msra.mxu0 0.0
        %3130 = vmatprep.subr.mxu0 0.0
        %3131 = vmatpush1.xpose.msra.mxu0 0.0
        %3132 = vmatprep.subr.mxu0 0.0
        %3133 = vmatpush1.xpose.msra.mxu0 0.0
        %3134 = vmatprep.subr.mxu0 0.0
        %3135 = vmatpush1.xpose.msra.mxu0 0.0
        %3136 = vmatprep.subr.mxu0 0.0
        %3137 = vmatpush1.xpose.msra.mxu0 0.0
        %3138 = vmatprep.subr.mxu0 0.0
        %3139 = vmatpush1.xpose.msra.mxu0 0.0
        %3140 = vmatprep.subr.mxu0 0.0
        %3141 = vmatpush1.xpose.msra.mxu0 0.0
        %3142 = vmatprep.subr.mxu0 0.0
        %3143 = vmatpush1.xpose.msra.mxu0 0.0
        %3144 = vmatprep.subr.mxu0 0.0
        %3145 = vmatpush1.xpose.msra.mxu0 0.0
        %3146 = vmatprep.subr.mxu0 0.0
        %3147 = vmatpush1.xpose.msra.mxu0 0.0
        %3148 = vmatprep.subr.mxu0 0.0
        %3149 = vmatpush1.xpose.msra.mxu0 0.0
        %3150 = vmatprep.subr.mxu0 0.0
        %3151 = vmatpush1.xpose.msra.mxu0 0.0
        %3152 = vmatprep.subr.mxu0 0.0
        %3153 = vmatpush1.xpose.msra.mxu0 0.0
        %3154 = vmatprep.mubr.f32.mxu0 0.0
        %3155 = vmatmul.mubr.f32.gmra.mrb[0].mxu0 %v3085
        %v3156 = vpop.f32.mrb[0].mxu0
        %v3157 = vadd.f32 0.0, %v3156
        %v3158 = vpop.f32.mrb[0].mxu0
        %3159 = vdwg.mxu0
        %vm3160 = vcmask 64512
        %v3161 = vsel %vm3160, %v3157, -inf
        %3162 = vmax.xlane.f32.xlu0 %v3161
        %v3163 = vpop.xlane.xlu0 %3162
        %v3164 = vsub.f32 %v3157, %v3163
        %v3165 = vmul.f32 %v3164, 1.442695
        %v3166 = vpow.pop %v3165
        %v3167 = vsel %vm3160, %v3166, 0.0
        %3168 = vadd.xlane.f32.xlu0 %v3167
        %v3169 = vpop.xlane.xlu0 %3168
        %v3170 = vrcp.pop %v3169
        %v3171 = vmul.f32 %v3166, %v3170
        %v3173 = vsel %vm3160, %v3171, 0
        %3175 = vmatprep.subr.mxu0 0.0
        %3176 = vmatpush1.msra.mxu0 %v3081
        %3177 = vmatprep.subr.mxu0 0.0
        %3178 = vmatpush1.msra.mxu0 0.0
        %3179 = vmatprep.subr.mxu0 0.0
        %3180 = vmatpush1.msra.mxu0 0.0
        %3181 = vmatprep.subr.mxu0 0.0
        %3182 = vmatpush1.msra.mxu0 0.0
        %3183 = vmatprep.subr.mxu0 0.0
        %3184 = vmatpush1.msra.mxu0 0.0
        %3185 = vmatprep.subr.mxu0 0.0
        %3186 = vmatpush1.msra.mxu0 0.0
        %3187 = vmatprep.subr.mxu0 0.0
        %3188 = vmatpush1.msra.mxu0 0.0
        %3189 = vmatprep.subr.mxu0 0.0
        %3190 = vmatpush1.msra.mxu0 0.0
        %3191 = vmatprep.subr.mxu0 0.0
        %3192 = vmatpush1.msra.mxu0 0.0
        %3193 = vmatprep.subr.mxu0 0.0
        %3194 = vmatpush1.msra.mxu0 0.0
        %3195 = vmatprep.subr.mxu0 0.0
        %3196 = vmatpush1.msra.mxu0 0.0
        %3197 = vmatprep.subr.mxu0 0.0
        %3198 = vmatpush1.msra.mxu0 0.0
        %3199 = vmatprep.subr.mxu0 0.0
        %3200 = vmatpush1.msra.mxu0 0.0
        %3201 = vmatprep.subr.mxu0 0.0
        %3202 = vmatpush1.msra.mxu0 0.0
        %3203 = vmatprep.subr.mxu0 0.0
        %3204 = vmatpush1.msra.mxu0 0.0
        %3205 = vmatprep.subr.mxu0 0.0
        %3206 = vmatpush1.msra.mxu0 0.0
        %3207 = vmatprep.subr.mxu0 0.0
        %3208 = vmatpush1.msra.mxu0 0.0
        %3209 = vmatprep.subr.mxu0 0.0
        %3210 = vmatpush1.msra.mxu0 0.0
        %3211 = vmatprep.subr.mxu0 0.0
        %3212 = vmatpush1.msra.mxu0 0.0
        %3213 = vmatprep.subr.mxu0 0.0
        %3214 = vmatpush1.msra.mxu0 0.0
        %3215 = vmatprep.subr.mxu0 0.0
        %3216 = vmatpush1.msra.mxu0 0.0
        %3217 = vmatprep.subr.mxu0 0.0
        %3218 = vmatpush1.msra.mxu0 0.0
        %3219 = vmatprep.subr.mxu0 0.0
        %3220 = vmatpush1.msra.mxu0 0.0
        %3221 = vmatprep.subr.mxu0 0.0
        %3222 = vmatpush1.msra.mxu0 0.0
        %3223 = vmatprep.subr.mxu0 0.0
        %3224 = vmatpush1.msra.mxu0 0.0
        %3225 = vmatprep.subr.mxu0 0.0
        %3226 = vmatpush1.msra.mxu0 0.0
        %3227 = vmatprep.subr.mxu0 0.0
        %3228 = vmatpush1.msra.mxu0 0.0
        %3229 = vmatprep.subr.mxu0 0.0
        %3230 = vmatpush1.msra.mxu0 0.0
        %3231 = vmatprep.subr.mxu0 0.0
        %3232 = vmatpush1.msra.mxu0 0.0
        %3233 = vmatprep.subr.mxu0 0.0
        %3234 = vmatpush1.msra.mxu0 0.0
        %3235 = vmatprep.subr.mxu0 0.0
        %3236 = vmatpush1.msra.mxu0 0.0
        %3237 = vmatprep.subr.mxu0 0.0
        %3238 = vmatpush1.msra.mxu0 0.0
        %3239 = vmatprep.mubr.f32.mxu0 0.0
        %3240 = vmatmul.mubr.f32.gmra.mrb[0].mxu0 %v3173
        %v3241 = vpop.f32.mrb[0].mxu0
        %v3242 = vadd.f32 0.0, %v3241
        %v3243 = vpop.f32.mrb[0].mxu0
        %3244 = vdwg.mxu0
        %3245 = vrot.lane.b32.xlu0 %v3083, 96
        %v3246 = vpop.permute.xlu0 %3245
        %3247 = vrot.lane.b32.xlu0 %v3079, 96
        %v3248 = vpop.permute.xlu0 %3247
        %v3249 = vsel %vm2082, %v3246, 0
        %v3251 = vsel %vm2082, %v3248, 0
        %3253 = vmatprep.subr.mxu0 0.0
        %3254 = vmatpush1.xpose.msra.mxu0 %v3251
        %3255 = vmatprep.subr.mxu0 0.0
        %3256 = vmatpush1.xpose.msra.mxu0 0.0
        %3257 = vmatprep.subr.mxu0 0.0
        %3258 = vmatpush1.xpose.msra.mxu0 0.0
        %3259 = vmatprep.subr.mxu0 0.0
        %3260 = vmatpush1.xpose.msra.mxu0 0.0
        %3261 = vmatprep.subr.mxu0 0.0
        %3262 = vmatpush1.xpose.msra.mxu0 0.0
        %3263 = vmatprep.subr.mxu0 0.0
        %3264 = vmatpush1.xpose.msra.mxu0 0.0
        %3265 = vmatprep.subr.mxu0 0.0
        %3266 = vmatpush1.xpose.msra.mxu0 0.0
        %3267 = vmatprep.subr.mxu0 0.0
        %3268 = vmatpush1.xpose.msra.mxu0 0.0
        %3269 = vmatprep.subr.mxu0 0.0
        %3270 = vmatpush1.xpose.msra.mxu0 0.0
        %3271 = vmatprep.subr.mxu0 0.0
        %3272 = vmatpush1.xpose.msra.mxu0 0.0
        %3273 = vmatprep.subr.mxu0 0.0
        %3274 = vmatpush1.xpose.msra.mxu0 0.0
        %3275 = vmatprep.subr.mxu0 0.0
        %3276 = vmatpush1.xpose.msra.mxu0 0.0
        %3277 = vmatprep.subr.mxu0 0.0
        %3278 = vmatpush1.xpose.msra.mxu0 0.0
        %3279 = vmatprep.subr.mxu0 0.0
        %3280 = vmatpush1.xpose.msra.mxu0 0.0
        %3281 = vmatprep.subr.mxu0 0.0
        %3282 = vmatpush1.xpose.msra.mxu0 0.0
        %3283 = vmatprep.subr.mxu0 0.0
        %3284 = vmatpush1.xpose.msra.mxu0 0.0
        %3285 = vmatprep.subr.mxu0 0.0
        %3286 = vmatpush1.xpose.msra.mxu0 0.0
        %3287 = vmatprep.subr.mxu0 0.0
        %3288 = vmatpush1.xpose.msra.mxu0 0.0
        %3289 = vmatprep.subr.mxu0 0.0
        %3290 = vmatpush1.xpose.msra.mxu0 0.0
        %3291 = vmatprep.subr.mxu0 0.0
        %3292 = vmatpush1.xpose.msra.mxu0 0.0
        %3293 = vmatprep.subr.mxu0 0.0
        %3294 = vmatpush1.xpose.msra.mxu0 0.0
        %3295 = vmatprep.subr.mxu0 0.0
        %3296 = vmatpush1.xpose.msra.mxu0 0.0
        %3297 = vmatprep.subr.mxu0 0.0
        %3298 = vmatpush1.xpose.msra.mxu0 0.0
        %3299 = vmatprep.subr.mxu0 0.0
        %3300 = vmatpush1.xpose.msra.mxu0 0.0
        %3301 = vmatprep.subr.mxu0 0.0
        %3302 = vmatpush1.xpose.msra.mxu0 0.0
        %3303 = vmatprep.subr.mxu0 0.0
        %3304 = vmatpush1.xpose.msra.mxu0 0.0
        %3305 = vmatprep.subr.mxu0 0.0
        %3306 = vmatpush1.xpose.msra.mxu0 0.0
        %3307 = vmatprep.subr.mxu0 0.0
        %3308 = vmatpush1.xpose.msra.mxu0 0.0
        %3309 = vmatprep.subr.mxu0 0.0
        %3310 = vmatpush1.xpose.msra.mxu0 0.0
        %3311 = vmatprep.subr.mxu0 0.0
        %3312 = vmatpush1.xpose.msra.mxu0 0.0
        %3313 = vmatprep.subr.mxu0 0.0
        %3314 = vmatpush1.xpose.msra.mxu0 0.0
        %3315 = vmatprep.subr.mxu0 0.0
        %3316 = vmatpush1.xpose.msra.mxu0 0.0
        %3317 = vmatprep.mubr.f32.mxu0 0.0
        %3318 = vmatmul.mubr.f32.gmra.mrb[0].mxu0 %v3249
        %v3319 = vpop.f32.mrb[0].mxu0
        %v3320 = vadd.f32 0.0, %v3319
        %v3321 = vpop.f32.mrb[0].mxu0
        %3322 = vdwg.mxu0
        %v3323 = vsel %vm3160, %v3320, -inf
        %3324 = vmax.xlane.f32.xlu0 %v3323
        %v3325 = vpop.xlane.xlu0 %3324
        %v3326 = vsub.f32 %v3320, %v3325
        %v3327 = vmul.f32 %v3326, 1.442695
        %v3328 = vpow.pop %v3327
        %v3329 = vsel %vm3160, %v3328, 0.0
        %3330 = vadd.xlane.f32.xlu0 %v3329
        %v3331 = vpop.xlane.xlu0 %3330
        %v3332 = vrcp.pop %v3331
        %v3333 = vmul.f32 %v3328, %v3332
        %3335 = vrot.lane.b32.xlu0 %v3081, 96
        %v3336 = vpop.permute.xlu0 %3335
        %v3339 = vsel %vm3160, %v3333, 0
        %3341 = vmatprep.subr.mxu0 0.0
        %3342 = vmatpush1.msra.mxu0 %v3336
        %3343 = vmatprep.subr.mxu0 0.0
        %3344 = vmatpush1.msra.mxu0 0.0
        %3345 = vmatprep.subr.mxu0 0.0
        %3346 = vmatpush1.msra.mxu0 0.0
        %3347 = vmatprep.subr.mxu0 0.0
        %3348 = vmatpush1.msra.mxu0 0.0
        %3349 = vmatprep.subr.mxu0 0.0
        %3350 = vmatpush1.msra.mxu0 0.0
        %3351 = vmatprep.subr.mxu0 0.0
        %3352 = vmatpush1.msra.mxu0 0.0
        %3353 = vmatprep.subr.mxu0 0.0
        %3354 = vmatpush1.msra.mxu0 0.0
        %3355 = vmatprep.subr.mxu0 0.0
        %3356 = vmatpush1.msra.mxu0 0.0
        %3357 = vmatprep.subr.mxu0 0.0
        %3358 = vmatpush1.msra.mxu0 0.0
        %3359 = vmatprep.subr.mxu0 0.0
        %3360 = vmatpush1.msra.mxu0 0.0
        %3361 = vmatprep.subr.mxu0 0.0
        %3362 = vmatpush1.msra.mxu0 0.0
        %3363 = vmatprep.subr.mxu0 0.0
        %3364 = vmatpush1.msra.mxu0 0.0
        %3365 = vmatprep.subr.mxu0 0.0
        %3366 = vmatpush1.msra.mxu0 0.0
        %3367 = vmatprep.subr.mxu0 0.0
        %3368 = vmatpush1.msra.mxu0 0.0
        %3369 = vmatprep.subr.mxu0 0.0
        %3370 = vmatpush1.msra.mxu0 0.0
        %3371 = vmatprep.subr.mxu0 0.0
        %3372 = vmatpush1.msra.mxu0 0.0
        %3373 = vmatprep.subr.mxu0 0.0
        %3374 = vmatpush1.msra.mxu0 0.0
        %3375 = vmatprep.subr.mxu0 0.0
        %3376 = vmatpush1.msra.mxu0 0.0
        %3377 = vmatprep.subr.mxu0 0.0
        %3378 = vmatpush1.msra.mxu0 0.0
        %3379 = vmatprep.subr.mxu0 0.0
        %3380 = vmatpush1.msra.mxu0 0.0
        %3381 = vmatprep.subr.mxu0 0.0
        %3382 = vmatpush1.msra.mxu0 0.0
        %3383 = vmatprep.subr.mxu0 0.0
        %3384 = vmatpush1.msra.mxu0 0.0
        %3385 = vmatprep.subr.mxu0 0.0
        %3386 = vmatpush1.msra.mxu0 0.0
        %3387 = vmatprep.subr.mxu0 0.0
        %3388 = vmatpush1.msra.mxu0 0.0
        %3389 = vmatprep.subr.mxu0 0.0
        %3390 = vmatpush1.msra.mxu0 0.0
        %3391 = vmatprep.subr.mxu0 0.0
        %3392 = vmatpush1.msra.mxu0 0.0
        %3393 = vmatprep.subr.mxu0 0.0
        %3394 = vmatpush1.msra.mxu0 0.0
        %3395 = vmatprep.subr.mxu0 0.0
        %3396 = vmatpush1.msra.mxu0 0.0
        %3397 = vmatprep.subr.mxu0 0.0
        %3398 = vmatpush1.msra.mxu0 0.0
        %3399 = vmatprep.subr.mxu0 0.0
        %3400 = vmatpush1.msra.mxu0 0.0
        %3401 = vmatprep.subr.mxu0 0.0
        %3402 = vmatpush1.msra.mxu0 0.0
        %3403 = vmatprep.subr.mxu0 0.0
        %3404 = vmatpush1.msra.mxu0 0.0
        %3405 = vmatprep.mubr.f32.mxu0 0.0
        %3406 = vmatmul.mubr.f32.gmra.mrb[0].mxu0 %v3339
        %v3407 = vpop.f32.mrb[0].mxu0
        %v3408 = vadd.f32 0.0, %v3407
        %v3409 = vpop.f32.mrb[0].mxu0
        %3410 = vdwg.mxu0
        %3411 = vrot.lane.b32.xlu0 %v3083, 64
        %v3412 = vpop.permute.xlu0 %3411
        %3413 = vrot.lane.b32.xlu0 %v3079, 64
        %v3414 = vpop.permute.xlu0 %3413
        %v3415 = vsel %vm2082, %v3412, 0
        %v3417 = vsel %vm2082, %v3414, 0
        %3419 = vmatprep.subr.mxu0 0.0
        %3420 = vmatpush1.xpose.msra.mxu0 %v3417
        %3421 = vmatprep.subr.mxu0 0.0
        %3422 = vmatpush1.xpose.msra.mxu0 0.0
        %3423 = vmatprep.subr.mxu0 0.0
        %3424 = vmatpush1.xpose.msra.mxu0 0.0
        %3425 = vmatprep.subr.mxu0 0.0
        %3426 = vmatpush1.xpose.msra.mxu0 0.0
        %3427 = vmatprep.subr.mxu0 0.0
        %3428 = vmatpush1.xpose.msra.mxu0 0.0
        %3429 = vmatprep.subr.mxu0 0.0
        %3430 = vmatpush1.xpose.msra.mxu0 0.0
        %3431 = vmatprep.subr.mxu0 0.0
        %3432 = vmatpush1.xpose.msra.mxu0 0.0
        %3433 = vmatprep.subr.mxu0 0.0
        %3434 = vmatpush1.xpose.msra.mxu0 0.0
        %3435 = vmatprep.subr.mxu0 0.0
        %3436 = vmatpush1.xpose.msra.mxu0 0.0
        %3437 = vmatprep.subr.mxu0 0.0
        %3438 = vmatpush1.xpose.msra.mxu0 0.0
        %3439 = vmatprep.subr.mxu0 0.0
        %3440 = vmatpush1.xpose.msra.mxu0 0.0
        %3441 = vmatprep.subr.mxu0 0.0
        %3442 = vmatpush1.xpose.msra.mxu0 0.0
        %3443 = vmatprep.subr.mxu0 0.0
        %3444 = vmatpush1.xpose.msra.mxu0 0.0
        %3445 = vmatprep.subr.mxu0 0.0
        %3446 = vmatpush1.xpose.msra.mxu0 0.0
        %3447 = vmatprep.subr.mxu0 0.0
        %3448 = vmatpush1.xpose.msra.mxu0 0.0
        %3449 = vmatprep.subr.mxu0 0.0
        %3450 = vmatpush1.xpose.msra.mxu0 0.0
        %3451 = vmatprep.subr.mxu0 0.0
        %3452 = vmatpush1.xpose.msra.mxu0 0.0
        %3453 = vmatprep.subr.mxu0 0.0
        %3454 = vmatpush1.xpose.msra.mxu0 0.0
        %3455 = vmatprep.subr.mxu0 0.0
        %3456 = vmatpush1.xpose.msra.mxu0 0.0
        %3457 = vmatprep.subr.mxu0 0.0
        %3458 = vmatpush1.xpose.msra.mxu0 0.0
        %3459 = vmatprep.subr.mxu0 0.0
        %3460 = vmatpush1.xpose.msra.mxu0 0.0
        %3461 = vmatprep.subr.mxu0 0.0
        %3462 = vmatpush1.xpose.msra.mxu0 0.0
        %3463 = vmatprep.subr.mxu0 0.0
        %3464 = vmatpush1.xpose.msra.mxu0 0.0
        %3465 = vmatprep.subr.mxu0 0.0
        %3466 = vmatpush1.xpose.msra.mxu0 0.0
        %3467 = vmatprep.subr.mxu0 0.0
        %3468 = vmatpush1.xpose.msra.mxu0 0.0
        %3469 = vmatprep.subr.mxu0 0.0
        %3470 = vmatpush1.xpose.msra.mxu0 0.0
        %3471 = vmatprep.subr.mxu0 0.0
        %3472 = vmatpush1.xpose.msra.mxu0 0.0
        %3473 = vmatprep.subr.mxu0 0.0
        %3474 = vmatpush1.xpose.msra.mxu0 0.0
        %3475 = vmatprep.subr.mxu0 0.0
        %3476 = vmatpush1.xpose.msra.mxu0 0.0
        %3477 = vmatprep.subr.mxu0 0.0
        %3478 = vmatpush1.xpose.msra.mxu0 0.0
        %3479 = vmatprep.subr.mxu0 0.0
        %3480 = vmatpush1.xpose.msra.mxu0 0.0
        %3481 = vmatprep.subr.mxu0 0.0
        %3482 = vmatpush1.xpose.msra.mxu0 0.0
        %3483 = vmatprep.mubr.f32.mxu0 0.0
        %3484 = vmatmul.mubr.f32.gmra.mrb[0].mxu0 %v3415
        %v3485 = vpop.f32.mrb[0].mxu0
        %v3486 = vadd.f32 0.0, %v3485
        %v3487 = vpop.f32.mrb[0].mxu0
        %3488 = vdwg.mxu0
        %v3489 = vsel %vm3160, %v3486, -inf
        %3490 = vmax.xlane.f32.xlu0 %v3489
        %v3491 = vpop.xlane.xlu0 %3490
        %v3492 = vsub.f32 %v3486, %v3491
        %v3493 = vmul.f32 %v3492, 1.442695
        %v3494 = vpow.pop %v3493
        %v3495 = vsel %vm3160, %v3494, 0.0
        %3496 = vadd.xlane.f32.xlu0 %v3495
        %v3497 = vpop.xlane.xlu0 %3496
        %v3498 = vrcp.pop %v3497
        %v3499 = vmul.f32 %v3494, %v3498
        %3500 = vrot.lane.b32.xlu0 %v3081, 64
        %v3501 = vpop.permute.xlu0 %3500
        %v3504 = vsel %vm3160, %v3499, 0
        %3506 = vmatprep.subr.mxu0 0.0
        %3507 = vmatpush1.msra.mxu0 %v3501
        %3508 = vmatprep.subr.mxu0 0.0
        %3509 = vmatpush1.msra.mxu0 0.0
        %3510 = vmatprep.subr.mxu0 0.0
        %3511 = vmatpush1.msra.mxu0 0.0
        %3512 = vmatprep.subr.mxu0 0.0
        %3513 = vmatpush1.msra.mxu0 0.0
        %3514 = vmatprep.subr.mxu0 0.0
        %3515 = vmatpush1.msra.mxu0 0.0
        %3516 = vmatprep.subr.mxu0 0.0
        %3517 = vmatpush1.msra.mxu0 0.0
        %3518 = vmatprep.subr.mxu0 0.0
        %3519 = vmatpush1.msra.mxu0 0.0
        %3520 = vmatprep.subr.mxu0 0.0
        %3521 = vmatpush1.msra.mxu0 0.0
        %3522 = vmatprep.subr.mxu0 0.0
        %3523 = vmatpush1.msra.mxu0 0.0
        %3524 = vmatprep.subr.mxu0 0.0
        %3525 = vmatpush1.msra.mxu0 0.0
        %3526 = vmatprep.subr.mxu0 0.0
        %3527 = vmatpush1.msra.mxu0 0.0
        %3528 = vmatprep.subr.mxu0 0.0
        %3529 = vmatpush1.msra.mxu0 0.0
        %3530 = vmatprep.subr.mxu0 0.0
        %3531 = vmatpush1.msra.mxu0 0.0
        %3532 = vmatprep.subr.mxu0 0.0
        %3533 = vmatpush1.msra.mxu0 0.0
        %3534 = vmatprep.subr.mxu0 0.0
        %3535 = vmatpush1.msra.mxu0 0.0
        %3536 = vmatprep.subr.mxu0 0.0
        %3537 = vmatpush1.msra.mxu0 0.0
        %3538 = vmatprep.subr.mxu0 0.0
        %3539 = vmatpush1.msra.mxu0 0.0
        %3540 = vmatprep.subr.mxu0 0.0
        %3541 = vmatpush1.msra.mxu0 0.0
        %3542 = vmatprep.subr.mxu0 0.0
        %3543 = vmatpush1.msra.mxu0 0.0
        %3544 = vmatprep.subr.mxu0 0.0
        %3545 = vmatpush1.msra.mxu0 0.0
        %3546 = vmatprep.subr.mxu0 0.0
        %3547 = vmatpush1.msra.mxu0 0.0
        %3548 = vmatprep.subr.mxu0 0.0
        %3549 = vmatpush1.msra.mxu0 0.0
        %3550 = vmatprep.subr.mxu0 0.0
        %3551 = vmatpush1.msra.mxu0 0.0
        %3552 = vmatprep.subr.mxu0 0.0
        %3553 = vmatpush1.msra.mxu0 0.0
        %3554 = vmatprep.subr.mxu0 0.0
        %3555 = vmatpush1.msra.mxu0 0.0
        %3556 = vmatprep.subr.mxu0 0.0
        %3557 = vmatpush1.msra.mxu0 0.0
        %3558 = vmatprep.subr.mxu0 0.0
        %3559 = vmatpush1.msra.mxu0 0.0
        %3560 = vmatprep.subr.mxu0 0.0
        %3561 = vmatpush1.msra.mxu0 0.0
        %3562 = vmatprep.subr.mxu0 0.0
        %3563 = vmatpush1.msra.mxu0 0.0
        %3564 = vmatprep.subr.mxu0 0.0
        %3565 = vmatpush1.msra.mxu0 0.0
        %3566 = vmatprep.subr.mxu0 0.0
        %3567 = vmatpush1.msra.mxu0 0.0
        %3568 = vmatprep.subr.mxu0 0.0
        %3569 = vmatpush1.msra.mxu0 0.0
        %3570 = vmatprep.mubr.f32.mxu0 0.0
        %3571 = vmatmul.mubr.f32.gmra.mrb[0].mxu0 %v3504
        %v3572 = vpop.f32.mrb[0].mxu0
        %v3573 = vadd.f32 0.0, %v3572
        %v3574 = vpop.f32.mrb[0].mxu0
        %3575 = vdwg.mxu0
        %3576 = vrot.lane.b32.xlu0 %v3083, 32
        %v3577 = vpop.permute.xlu0 %3576
        %3578 = vrot.lane.b32.xlu0 %v3079, 32
        %v3579 = vpop.permute.xlu0 %3578
        %v3580 = vsel %vm2082, %v3577, 0
        %v3582 = vsel %vm2082, %v3579, 0
        %3584 = vmatprep.subr.mxu0 0.0
        %3585 = vmatpush1.xpose.msra.mxu0 %v3582
        %3586 = vmatprep.subr.mxu0 0.0
        %3587 = vmatpush1.xpose.msra.mxu0 0.0
        %3588 = vmatprep.subr.mxu0 0.0
        %3589 = vmatpush1.xpose.msra.mxu0 0.0
        %3590 = vmatprep.subr.mxu0 0.0
        %3591 = vmatpush1.xpose.msra.mxu0 0.0
        %3592 = vmatprep.subr.mxu0 0.0
        %3593 = vmatpush1.xpose.msra.mxu0 0.0
        %3594 = vmatprep.subr.mxu0 0.0
        %3595 = vmatpush1.xpose.msra.mxu0 0.0
        %3596 = vmatprep.subr.mxu0 0.0
        %3597 = vmatpush1.xpose.msra.mxu0 0.0
        %3598 = vmatprep.subr.mxu0 0.0
        %3599 = vmatpush1.xpose.msra.mxu0 0.0
        %3600 = vmatprep.subr.mxu0 0.0
        %3601 = vmatpush1.xpose.msra.mxu0 0.0
        %3602 = vmatprep.subr.mxu0 0.0
        %3603 = vmatpush1.xpose.msra.mxu0 0.0
        %3604 = vmatprep.subr.mxu0 0.0
        %3605 = vmatpush1.xpose.msra.mxu0 0.0
        %3606 = vmatprep.subr.mxu0 0.0
        %3607 = vmatpush1.xpose.msra.mxu0 0.0
        %3608 = vmatprep.subr.mxu0 0.0
        %3609 = vmatpush1.xpose.msra.mxu0 0.0
        %3610 = vmatprep.subr.mxu0 0.0
        %3611 = vmatpush1.xpose.msra.mxu0 0.0
        %3612 = vmatprep.subr.mxu0 0.0
        %3613 = vmatpush1.xpose.msra.mxu0 0.0
        %3614 = vmatprep.subr.mxu0 0.0
        %3615 = vmatpush1.xpose.msra.mxu0 0.0
        %3616 = vmatprep.subr.mxu0 0.0
        %3617 = vmatpush1.xpose.msra.mxu0 0.0
        %3618 = vmatprep.subr.mxu0 0.0
        %3619 = vmatpush1.xpose.msra.mxu0 0.0
        %3620 = vmatprep.subr.mxu0 0.0
        %3621 = vmatpush1.xpose.msra.mxu0 0.0
        %3622 = vmatprep.subr.mxu0 0.0
        %3623 = vmatpush1.xpose.msra.mxu0 0.0
        %3624 = vmatprep.subr.mxu0 0.0
        %3625 = vmatpush1.xpose.msra.mxu0 0.0
        %3626 = vmatprep.subr.mxu0 0.0
        %3627 = vmatpush1.xpose.msra.mxu0 0.0
        %3628 = vmatprep.subr.mxu0 0.0
        %3629 = vmatpush1.xpose.msra.mxu0 0.0
        %3630 = vmatprep.subr.mxu0 0.0
        %3631 = vmatpush1.xpose.msra.mxu0 0.0
        %3632 = vmatprep.subr.mxu0 0.0
        %3633 = vmatpush1.xpose.msra.mxu0 0.0
        %3634 = vmatprep.subr.mxu0 0.0
        %3635 = vmatpush1.xpose.msra.mxu0 0.0
        %3636 = vmatprep.subr.mxu0 0.0
        %3637 = vmatpush1.xpose.msra.mxu0 0.0
        %3638 = vmatprep.subr.mxu0 0.0
        %3639 = vmatpush1.xpose.msra.mxu0 0.0
        %3640 = vmatprep.subr.mxu0 0.0
        %3641 = vmatpush1.xpose.msra.mxu0 0.0
        %3642 = vmatprep.subr.mxu0 0.0
        %3643 = vmatpush1.xpose.msra.mxu0 0.0
        %3644 = vmatprep.subr.mxu0 0.0
        %3645 = vmatpush1.xpose.msra.mxu0 0.0
        %3646 = vmatprep.subr.mxu0 0.0
        %3647 = vmatpush1.xpose.msra.mxu0 0.0
        %3648 = vmatprep.mubr.f32.mxu0 0.0
        %3649 = vmatmul.mubr.f32.gmra.mrb[0].mxu0 %v3580
        %v3650 = vpop.f32.mrb[0].mxu0
        %v3651 = vadd.f32 0.0, %v3650
        %v3652 = vpop.f32.mrb[0].mxu0
        %3653 = vdwg.mxu0
        %v3654 = vsel %vm3160, %v3651, -inf
        %3655 = vmax.xlane.f32.xlu0 %v3654
        %v3656 = vpop.xlane.xlu0 %3655
        %v3657 = vsub.f32 %v3651, %v3656
        %v3658 = vmul.f32 %v3657, 1.442695
        %v3659 = vpow.pop %v3658
        %v3660 = vsel %vm3160, %v3659, 0.0
        %3661 = vadd.xlane.f32.xlu0 %v3660
        %v3662 = vpop.xlane.xlu0 %3661
        %v3663 = vrcp.pop %v3662
        %v3664 = vmul.f32 %v3659, %v3663
        %3665 = vrot.lane.b32.xlu0 %v3081, 32
        %v3666 = vpop.permute.xlu0 %3665
        %v3669 = vsel %vm3160, %v3664, 0
        %3671 = vmatprep.subr.mxu0 0.0
        %3672 = vmatpush1.msra.mxu0 %v3666
        %3673 = vmatprep.subr.mxu0 0.0
        %3674 = vmatpush1.msra.mxu0 0.0
        %3675 = vmatprep.subr.mxu0 0.0
        %3676 = vmatpush1.msra.mxu0 0.0
        %3677 = vmatprep.subr.mxu0 0.0
        %3678 = vmatpush1.msra.mxu0 0.0
        %3679 = vmatprep.subr.mxu0 0.0
        %3680 = vmatpush1.msra.mxu0 0.0
        %3681 = vmatprep.subr.mxu0 0.0
        %3682 = vmatpush1.msra.mxu0 0.0
        %3683 = vmatprep.subr.mxu0 0.0
        %3684 = vmatpush1.msra.mxu0 0.0
        %3685 = vmatprep.subr.mxu0 0.0
        %3686 = vmatpush1.msra.mxu0 0.0
        %3687 = vmatprep.subr.mxu0 0.0
        %3688 = vmatpush1.msra.mxu0 0.0
        %3689 = vmatprep.subr.mxu0 0.0
        %3690 = vmatpush1.msra.mxu0 0.0
        %3691 = vmatprep.subr.mxu0 0.0
        %3692 = vmatpush1.msra.mxu0 0.0
        %3693 = vmatprep.subr.mxu0 0.0
        %3694 = vmatpush1.msra.mxu0 0.0
        %3695 = vmatprep.subr.mxu0 0.0
        %3696 = vmatpush1.msra.mxu0 0.0
        %3697 = vmatprep.subr.mxu0 0.0
        %3698 = vmatpush1.msra.mxu0 0.0
        %3699 = vmatprep.subr.mxu0 0.0
        %3700 = vmatpush1.msra.mxu0 0.0
        %3701 = vmatprep.subr.mxu0 0.0
        %3702 = vmatpush1.msra.mxu0 0.0
        %3703 = vmatprep.subr.mxu0 0.0
        %3704 = vmatpush1.msra.mxu0 0.0
        %3705 = vmatprep.subr.mxu0 0.0
        %3706 = vmatpush1.msra.mxu0 0.0
        %3707 = vmatprep.subr.mxu0 0.0
        %3708 = vmatpush1.msra.mxu0 0.0
        %3709 = vmatprep.subr.mxu0 0.0
        %3710 = vmatpush1.msra.mxu0 0.0
        %3711 = vmatprep.subr.mxu0 0.0
        %3712 = vmatpush1.msra.mxu0 0.0
        %3713 = vmatprep.subr.mxu0 0.0
        %3714 = vmatpush1.msra.mxu0 0.0
        %3715 = vmatprep.subr.mxu0 0.0
        %3716 = vmatpush1.msra.mxu0 0.0
        %3717 = vmatprep.subr.mxu0 0.0
        %3718 = vmatpush1.msra.mxu0 0.0
        %3719 = vmatprep.subr.mxu0 0.0
        %3720 = vmatpush1.msra.mxu0 0.0
        %3721 = vmatprep.subr.mxu0 0.0
        %3722 = vmatpush1.msra.mxu0 0.0
        %3723 = vmatprep.subr.mxu0 0.0
        %3724 = vmatpush1.msra.mxu0 0.0
        %3725 = vmatprep.subr.mxu0 0.0
        %3726 = vmatpush1.msra.mxu0 0.0
        %3727 = vmatprep.subr.mxu0 0.0
        %3728 = vmatpush1.msra.mxu0 0.0
        %3729 = vmatprep.subr.mxu0 0.0
        %3730 = vmatpush1.msra.mxu0 0.0
        %3731 = vmatprep.subr.mxu0 0.0
        %3732 = vmatpush1.msra.mxu0 0.0
        %3733 = vmatprep.subr.mxu0 0.0
        %3734 = vmatpush1.msra.mxu0 0.0
        %3735 = vmatprep.mubr.f32.mxu0 0.0
        %3736 = vmatmul.mubr.f32.gmra.mrb[0].mxu0 %v3669
        %v3737 = vpop.f32.mrb[0].mxu0
        %v3738 = vadd.f32 0.0, %v3737
        %v3739 = vpop.f32.mrb[0].mxu0
        %3740 = vdwg.mxu0
        %3742 = vrot.lane.b32.xlu0 %v3408, 32
        %v3743 = vpop.permute.xlu0 %3742
        %3746 = vrot.lane.b32.xlu0 %v3573, 64
        %v3747 = vpop.permute.xlu0 %3746
        %3750 = vrot.lane.b32.xlu0 %v3738, 96
        %v3751 = vpop.permute.xlu0 %3750
        %v3753 = vsel %vm2082, %v3242, %v3743
        %v3754 = vsel %vm2783, %v3753, %v3747
        %v3755 = vsel %vm2785, %v3754, %v3751
        %v3756 = vld [vmem:[%s949 + $0x8] sm:$0xff]
        %v3757 = vld [vmem:[%s949 + $0x18] sm:$0xff]
        %v3758 = vld [vmem:[%s949 + $0x28] sm:$0xff]
        %v3759 = vld [vmem:[%s949 + $0x38] sm:$0xff]
        %v3760 = vld [vmem:[%s949 + $0x48] sm:$0xff]
        %v3761 = vld [vmem:[%s949 + $0x58] sm:$0xff]
        %v3762 = vld [vmem:[%s949 + $0x68] sm:$0xff]
        %v3763 = vld [vmem:[%s949 + $0x78] sm:$0xff]
        %v3764 = vld [vmem:[%s949 + $0x88] sm:$0xff]
        %v3765 = vld [vmem:[%s949 + $0x98] sm:$0xff]
        %v3766 = vld [vmem:[%s949 + $0xa8] sm:$0xff]
        %v3767 = vld [vmem:[%s949 + $0xb8] sm:$0xff]
        %v3768 = vld [vmem:[%s949 + $0xc8] sm:$0xff]
        %v3769 = vld [vmem:[%s949 + $0xd8] sm:$0xff]
        %v3770 = vld [vmem:[%s949 + $0xe8] sm:$0xff]
        %v3771 = vld [vmem:[%s949 + $0xf8] sm:$0xff]
        %3772 = vmatprep.subr.mxu0 0.0
        %3773 = vmatpush1.msra.mxu0 %v3756
        %3774 = vmatprep.subr.mxu0 0.0
        %3775 = vmatpush1.msra.mxu0 %v3757
        %3776 = vmatprep.subr.mxu0 0.0
        %3777 = vmatpush1.msra.mxu0 %v3758
        %3778 = vmatprep.subr.mxu0 0.0
        %3779 = vmatpush1.msra.mxu0 %v3759
        %3780 = vmatprep.subr.mxu0 0.0
        %3781 = vmatpush1.msra.mxu0 %v3760
        %3782 = vmatprep.subr.mxu0 0.0
        %3783 = vmatpush1.msra.mxu0 %v3761
        %3784 = vmatprep.subr.mxu0 0.0
        %3785 = vmatpush1.msra.mxu0 %v3762
        %3786 = vmatprep.subr.mxu0 0.0
        %3787 = vmatpush1.msra.mxu0 %v3763
        %3788 = vmatprep.subr.mxu0 0.0
        %3789 = vmatpush1.msra.mxu0 %v3764
        %3790 = vmatprep.subr.mxu0 0.0
        %3791 = vmatpush1.msra.mxu0 %v3765
        %3792 = vmatprep.subr.mxu0 0.0
        %3793 = vmatpush1.msra.mxu0 %v3766
        %3794 = vmatprep.subr.mxu0 0.0
        %3795 = vmatpush1.msra.mxu0 %v3767
        %3796 = vmatprep.subr.mxu0 0.0
        %3797 = vmatpush1.msra.mxu0 %v3768
        %3798 = vmatprep.subr.mxu0 0.0
        %3799 = vmatpush1.msra.mxu0 %v3769
        %3800 = vmatprep.subr.mxu0 0.0
        %3801 = vmatpush1.msra.mxu0 %v3770
        %3802 = vmatprep.subr.mxu0 0.0
        %3803 = vmatpush1.msra.mxu0 %v3771
        %3804 = vmatprep.subr.mxu0 0.0
        %3805 = vmatpush1.msra.mxu0 0.0
        %3806 = vmatprep.subr.mxu0 0.0
        %3807 = vmatpush1.msra.mxu0 0.0
        %3808 = vmatprep.subr.mxu0 0.0
        %3809 = vmatpush1.msra.mxu0 0.0
        %3810 = vmatprep.subr.mxu0 0.0
        %3811 = vmatpush1.msra.mxu0 0.0
        %3812 = vmatprep.subr.mxu0 0.0
        %3813 = vmatpush1.msra.mxu0 0.0
        %3814 = vmatprep.subr.mxu0 0.0
        %3815 = vmatpush1.msra.mxu0 0.0
        %3816 = vmatprep.subr.mxu0 0.0
        %3817 = vmatpush1.msra.mxu0 0.0
        %3818 = vmatprep.subr.mxu0 0.0
        %3819 = vmatpush1.msra.mxu0 0.0
        %3820 = vmatprep.subr.mxu0 0.0
        %3821 = vmatpush1.msra.mxu0 0.0
        %3822 = vmatprep.subr.mxu0 0.0
        %3823 = vmatpush1.msra.mxu0 0.0
        %3824 = vmatprep.subr.mxu0 0.0
        %3825 = vmatpush1.msra.mxu0 0.0
        %3826 = vmatprep.subr.mxu0 0.0
        %3827 = vmatpush1.msra.mxu0 0.0
        %3828 = vmatprep.subr.mxu0 0.0
        %3829 = vmatpush1.msra.mxu0 0.0
        %3830 = vmatprep.subr.mxu0 0.0
        %3831 = vmatpush1.msra.mxu0 0.0
        %3832 = vmatprep.subr.mxu0 0.0
        %3833 = vmatpush1.msra.mxu0 0.0
        %3834 = vmatprep.subr.mxu0 0.0
        %3835 = vmatpush1.msra.mxu0 0.0
        %3836 = vmatprep.mubr.f32.mxu0 0.0
        %3837 = vmatmul.mubr.f32.gmra.mrb[0].mxu0 %v3755
        %v3838 = vpop.f32.mrb[0].mxu0
        %v3839 = vadd.f32 %v2870, %v3838
        %v3840 = vpop.f32.mrb[0].mxu0
        %3841 = vdwg.mxu0
        %3842 = vadd.xlane.f32.xlu0 %v3839
        %v3843 = vpop.xlane.xlu0 %3842
        %v3844 = vmul.f32 %v3843, %v1840
        %v3845 = vsub.f32 %v3839, %v3844
        %v3846 = vmul.f32 %v3845, %v3845
        %3847 = vadd.xlane.f32.xlu0 %v3846
        %v3848 = vpop.xlane.xlu0 %3847
        %v3849 = vmul.f32 %v3848, %v1840
        %v3850 = vadd.f32 %v3849, 1e-05
        %v3851 = vrsqrt.pop %v3850
        %v3852 = vmul.f32 %v3845, %v3851
        %v3853 = vlaneseq
        %v3854 = vshrl.u32 %v3853, 7
        %v3855 = vsub.s32 6, %v3854
        %v3856 = vrot.slane %v1835, %v3855
        %v3857 = vmul.f32 %v3852, %v3856
        %v3858 = vlaneseq
        %v3859 = vshrl.u32 %v3858, 7
        %v3860 = vsub.s32 7, %v3859
        %v3861 = vrot.slane %v1835, %v3860
        %v3862 = vadd.f32 %v3857, %v3861
        %v3863 = vld [vmem:[%s940 + $0x30] sm:$0xff]
        %v3864 = vld [vmem:[%s940 + $0x38] sm:$0xff]
        %v3865 = vld [vmem:[%s940 + $0x70] sm:$0xff]
        %v3866 = vld [vmem:[%s940 + $0x78] sm:$0xff]
        %v3867 = vld [vmem:[%s940 + $0xb0] sm:$0xff]
        %v3868 = vld [vmem:[%s940 + $0xb8] sm:$0xff]
        %v3869 = vld [vmem:[%s940 + $0xf0] sm:$0xff]
        %v3870 = vld [vmem:[%s940 + $0xf8] sm:$0xff]
        %v3871 = vld [vmem:[%s940 + $0x130] sm:$0xff]
        %v3872 = vld [vmem:[%s940 + $0x138] sm:$0xff]
        %v3873 = vld [vmem:[%s940 + $0x170] sm:$0xff]
        %v3874 = vld [vmem:[%s940 + $0x178] sm:$0xff]
        %v3875 = vld [vmem:[%s940 + $0x1b0] sm:$0xff]
        %v3876 = vld [vmem:[%s940 + $0x1b8] sm:$0xff]
        %v3877 = vld [vmem:[%s940 + $0x1f0] sm:$0xff]
        %v3878 = vld [vmem:[%s940 + $0x1f8] sm:$0xff]
        %v3879 = vld [vmem:[%s940 + $0x230] sm:$0xff]
        %v3880 = vld [vmem:[%s940 + $0x238] sm:$0xff]
        %v3881 = vld [vmem:[%s940 + $0x270] sm:$0xff]
        %v3882 = vld [vmem:[%s940 + $0x278] sm:$0xff]
        %v3883 = vld [vmem:[%s940 + $0x2b0] sm:$0xff]
        %v3884 = vld [vmem:[%s940 + $0x2b8] sm:$0xff]
        %v3885 = vld [vmem:[%s940 + $0x2f0] sm:$0xff]
        %v3886 = vld [vmem:[%s940 + $0x2f8] sm:$0xff]
        %v3887 = vld [vmem:[%s940 + $0x330] sm:$0xff]
        %v3888 = vld [vmem:[%s940 + $0x338] sm:$0xff]
        %v3889 = vld [vmem:[%s940 + $0x370] sm:$0xff]
        %v3890 = vld [vmem:[%s940 + $0x378] sm:$0xff]
        %v3891 = vld [vmem:[%s940 + $0x3b0] sm:$0xff]
        %v3892 = vld [vmem:[%s940 + $0x3b8] sm:$0xff]
        %v3893 = vld [vmem:[%s940 + $0x3f0] sm:$0xff]
        %v3894 = vld [vmem:[%s940 + $0x3f8] sm:$0xff]
        %3895 = vmatprep.subr.mxu0 %v3864
        %3896 = vmatpush1.msra.mxu0 %v3863
        %3897 = vmatprep.subr.mxu0 %v3866
        %3898 = vmatpush1.msra.mxu0 %v3865
        %3899 = vmatprep.subr.mxu0 %v3868
        %3900 = vmatpush1.msra.mxu0 %v3867
        %3901 = vmatprep.subr.mxu0 %v3870
        %3902 = vmatpush1.msra.mxu0 %v3869
        %3903 = vmatprep.subr.mxu0 %v3872
        %3904 = vmatpush1.msra.mxu0 %v3871
        %3905 = vmatprep.subr.mxu0 %v3874
        %3906 = vmatpush1.msra.mxu0 %v3873
        %3907 = vmatprep.subr.mxu0 %v3876
        %3908 = vmatpush1.msra.mxu0 %v3875
        %3909 = vmatprep.subr.mxu0 %v3878
        %3910 = vmatpush1.msra.mxu0 %v3877
        %3911 = vmatprep.subr.mxu0 %v3880
        %3912 = vmatpush1.msra.mxu0 %v3879
        %3913 = vmatprep.subr.mxu0 %v3882
        %3914 = vmatpush1.msra.mxu0 %v3881
        %3915 = vmatprep.subr.mxu0 %v3884
        %3916 = vmatpush1.msra.mxu0 %v3883
        %3917 = vmatprep.subr.mxu0 %v3886
        %3918 = vmatpush1.msra.mxu0 %v3885
        %3919 = vmatprep.subr.mxu0 %v3888
        %3920 = vmatpush1.msra.mxu0 %v3887
        %3921 = vmatprep.subr.mxu0 %v3890
        %3922 = vmatpush1.msra.mxu0 %v3889
        %3923 = vmatprep.subr.mxu0 %v3892
        %3924 = vmatpush1.msra.mxu0 %v3891
        %3925 = vmatprep.subr.mxu0 %v3894
        %3926 = vmatpush1.msra.mxu0 %v3893
        %3927 = vmatprep.subr.mxu0 0.0
        %3928 = vmatpush1.msra.mxu0 0.0
        %3929 = vmatprep.subr.mxu0 0.0
        %3930 = vmatpush1.msra.mxu0 0.0
        %3931 = vmatprep.subr.mxu0 0.0
        %3932 = vmatpush1.msra.mxu0 0.0
        %3933 = vmatprep.subr.mxu0 0.0
        %3934 = vmatpush1.msra.mxu0 0.0
        %3935 = vmatprep.subr.mxu0 0.0
        %3936 = vmatpush1.msra.mxu0 0.0
        %3937 = vmatprep.subr.mxu0 0.0
        %3938 = vmatpush1.msra.mxu0 0.0
        %3939 = vmatprep.subr.mxu0 0.0
        %3940 = vmatpush1.msra.mxu0 0.0
        %3941 = vmatprep.subr.mxu0 0.0
        %3942 = vmatpush1.msra.mxu0 0.0
        %3943 = vmatprep.subr.mxu0 0.0
        %3944 = vmatpush1.msra.mxu0 0.0
        %3945 = vmatprep.subr.mxu0 0.0
        %3946 = vmatpush1.msra.mxu0 0.0
        %3947 = vmatprep.subr.mxu0 0.0
        %3948 = vmatpush1.msra.mxu0 0.0
        %3949 = vmatprep.subr.mxu0 0.0
        %3950 = vmatpush1.msra.mxu0 0.0
        %3951 = vmatprep.subr.mxu0 0.0
        %3952 = vmatpush1.msra.mxu0 0.0
        %3953 = vmatprep.subr.mxu0 0.0
        %3954 = vmatpush1.msra.mxu0 0.0
        %3955 = vmatprep.subr.mxu0 0.0
        %3956 = vmatpush1.msra.mxu0 0.0
        %3957 = vmatprep.subr.mxu0 0.0
        %3958 = vmatpush1.msra.mxu0 0.0
        %3959 = vmatprep.mubr.f32.mxu0 0.0
        %3960 = vmatmul.mubr.f32.gmra.mrb[0].mxu0 %v3862
        %v3961 = vpop.f32.mrb[0].mxu0
        %v3962 = vadd.f32 0.0, %v3961
        %v3963 = vpop.f32.mrb[0].mxu0
        %v3964 = vadd.f32 0.0, %v3963
        %3965 = vdwg.mxu0
        %v3966 = vmul.f32 %v3962, 0.5
        %v3967 = vmul.f32 %v3964, 0.5
        %v3968 = vmul.f32 %v3962, 0.70710677
        %v3969 = vmul.f32 %v3964, 0.70710677
        %vm3970 = vcmp.ge.f32.partialorder %v3968, 0.0
        %vm3971 = vcmp.ge.f32.partialorder %v3969, 0.0
        %v3972 = vsel %vm3970, 1.0, -1.0
        %v3973 = vsel %vm3971, 1.0, -1.0
        %v3974 = vand.u32 2147483647, %v3968
        %v3975 = vand.u32 2147483647, %v3969
        %v3976 = vmul.f32 %v3974, 0.3275911
        %v3977 = vmul.f32 %v3975, 0.3275911
        %v3978 = vadd.f32 %v3976, 1.0
        %v3979 = vadd.f32 %v3977, 1.0
        %v3980 = vrcp.pop %v3978
        %v3981 = vmul.f32 1.0, %v3980
        %v3982 = vrcp.pop %v3979
        %v3983 = vmul.f32 1.0, %v3982
        %v3984 = vmul.f32 %v3981, 1.0614054
        %v3985 = vmul.f32 %v3983, 1.0614054
        %v3986 = vadd.f32 %v3984, -1.4531521
        %v3987 = vadd.f32 %v3985, -1.4531521
        %v3988 = vmul.f32 %v3981, %v3986
        %v3989 = vmul.f32 %v3983, %v3987
        %v3990 = vadd.f32 %v3988, 1.4214138
        %v3991 = vadd.f32 %v3989, 1.4214138
        %v3992 = vmul.f32 %v3981, %v3990
        %v3993 = vmul.f32 %v3983, %v3991
        %v3994 = vadd.f32 %v3992, -0.28449672
        %v3995 = vadd.f32 %v3993, -0.28449672
        %v3996 = vmul.f32 %v3981, %v3994
        %v3997 = vmul.f32 %v3983, %v3995
        %v3998 = vadd.f32 %v3996, 0.2548296
        %v3999 = vadd.f32 %v3997, 0.2548296
        %v4000 = vmul.f32 %v3981, %v3998
        %v4001 = vmul.f32 %v3983, %v3999
        %v4002 = vsub.f32 0.0, %v3974
        %v4003 = vsub.f32 0.0, %v3975
        %v4004 = vmul.f32 %v4002, %v3974
        %v4005 = vmul.f32 %v4003, %v3975
        %v4006 = vmul.f32 %v4004, 1.442695
        %v4007 = vpow.pop %v4006
        %v4008 = vmul.f32 %v4005, 1.442695
        %v4009 = vpow.pop %v4008
        %v4010 = vmul.f32 %v4000, %v4007
        %v4011 = vmul.f32 %v4001, %v4009
        %v4012 = vsub.f32 1.0, %v4010
        %v4013 = vsub.f32 1.0, %v4011
        %v4014 = vmul.f32 %v3972, %v4012
        %v4015 = vmul.f32 %v3973, %v4013
        %v4016 = vadd.f32 %v4014, 1.0
        %v4017 = vadd.f32 %v4015, 1.0
        %v4018 = vmul.f32 %v3966, %v4016
        %v4019 = vmul.f32 %v3967, %v4017
        %v4020 = vld [vmem:[%s958] sm:$0xff]
        %v4021 = vld [vmem:[%s958 + $0x8] sm:$0xff]
        %v4022 = vld [vmem:[%s958 + $0x10] sm:$0xff]
        %v4023 = vld [vmem:[%s958 + $0x18] sm:$0xff]
        %v4024 = vld [vmem:[%s958 + $0x20] sm:$0xff]
        %v4025 = vld [vmem:[%s958 + $0x28] sm:$0xff]
        %v4026 = vld [vmem:[%s958 + $0x30] sm:$0xff]
        %v4027 = vld [vmem:[%s958 + $0x38] sm:$0xff]
        %v4028 = vld [vmem:[%s958 + $0x40] sm:$0xff]
        %v4029 = vld [vmem:[%s958 + $0x48] sm:$0xff]
        %v4030 = vld [vmem:[%s958 + $0x50] sm:$0xff]
        %v4031 = vld [vmem:[%s958 + $0x58] sm:$0xff]
        %v4032 = vld [vmem:[%s958 + $0x60] sm:$0xff]
        %v4033 = vld [vmem:[%s958 + $0x68] sm:$0xff]
        %v4034 = vld [vmem:[%s958 + $0x70] sm:$0xff]
        %v4035 = vld [vmem:[%s958 + $0x78] sm:$0xff]
        %v4036 = vld [vmem:[%s958 + $0x80] sm:$0xff]
        %v4037 = vld [vmem:[%s958 + $0x88] sm:$0xff]
        %v4038 = vld [vmem:[%s958 + $0x90] sm:$0xff]
        %v4039 = vld [vmem:[%s958 + $0x98] sm:$0xff]
        %v4040 = vld [vmem:[%s958 + $0xa0] sm:$0xff]
        %v4041 = vld [vmem:[%s958 + $0xa8] sm:$0xff]
        %v4042 = vld [vmem:[%s958 + $0xb0] sm:$0xff]
        %v4043 = vld [vmem:[%s958 + $0xb8] sm:$0xff]
        %v4044 = vld [vmem:[%s958 + $0xc0] sm:$0xff]
        %v4045 = vld [vmem:[%s958 + $0xc8] sm:$0xff]
        %v4046 = vld [vmem:[%s958 + $0xd0] sm:$0xff]
        %v4047 = vld [vmem:[%s958 + $0xd8] sm:$0xff]
        %v4048 = vld [vmem:[%s958 + $0xe0] sm:$0xff]
        %v4049 = vld [vmem:[%s958 + $0xe8] sm:$0xff]
        %v4050 = vld [vmem:[%s958 + $0xf0] sm:$0xff]
        %v4051 = vld [vmem:[%s958 + $0xf8] sm:$0xff]
        %4052 = vmatprep.subr.mxu0 0.0
        %4053 = vmatpush1.msra.mxu0 %v4020
        %4054 = vmatprep.subr.mxu0 0.0
        %4055 = vmatpush1.msra.mxu0 %v4021
        %4056 = vmatprep.subr.mxu0 0.0
        %4057 = vmatpush1.msra.mxu0 %v4022
        %4058 = vmatprep.subr.mxu0 0.0
        %4059 = vmatpush1.msra.mxu0 %v4023
        %4060 = vmatprep.subr.mxu0 0.0
        %4061 = vmatpush1.msra.mxu0 %v4024
        %4062 = vmatprep.subr.mxu0 0.0
        %4063 = vmatpush1.msra.mxu0 %v4025
        %4064 = vmatprep.subr.mxu0 0.0
        %4065 = vmatpush1.msra.mxu0 %v4026
        %4066 = vmatprep.subr.mxu0 0.0
        %4067 = vmatpush1.msra.mxu0 %v4027
        %4068 = vmatprep.subr.mxu0 0.0
        %4069 = vmatpush1.msra.mxu0 %v4028
        %4070 = vmatprep.subr.mxu0 0.0
        %4071 = vmatpush1.msra.mxu0 %v4029
        %4072 = vmatprep.subr.mxu0 0.0
        %4073 = vmatpush1.msra.mxu0 %v4030
        %4074 = vmatprep.subr.mxu0 0.0
        %4075 = vmatpush1.msra.mxu0 %v4031
        %4076 = vmatprep.subr.mxu0 0.0
        %4077 = vmatpush1.msra.mxu0 %v4032
        %4078 = vmatprep.subr.mxu0 0.0
        %4079 = vmatpush1.msra.mxu0 %v4033
        %4080 = vmatprep.subr.mxu0 0.0
        %4081 = vmatpush1.msra.mxu0 %v4034
        %4082 = vmatprep.subr.mxu0 0.0
        %4083 = vmatpush1.msra.mxu0 %v4035
        %4084 = vmatprep.subr.mxu0 0.0
        %4085 = vmatpush1.msra.mxu0 %v4036
        %4086 = vmatprep.subr.mxu0 0.0
        %4087 = vmatpush1.msra.mxu0 %v4037
        %4088 = vmatprep.subr.mxu0 0.0
        %4089 = vmatpush1.msra.mxu0 %v4038
        %4090 = vmatprep.subr.mxu0 0.0
        %4091 = vmatpush1.msra.mxu0 %v4039
        %4092 = vmatprep.subr.mxu0 0.0
        %4093 = vmatpush1.msra.mxu0 %v4040
        %4094 = vmatprep.subr.mxu0 0.0
        %4095 = vmatpush1.msra.mxu0 %v4041
        %4096 = vmatprep.subr.mxu0 0.0
        %4097 = vmatpush1.msra.mxu0 %v4042
        %4098 = vmatprep.subr.mxu0 0.0
        %4099 = vmatpush1.msra.mxu0 %v4043
        %4100 = vmatprep.subr.mxu0 0.0
        %4101 = vmatpush1.msra.mxu0 %v4044
        %4102 = vmatprep.subr.mxu0 0.0
        %4103 = vmatpush1.msra.mxu0 %v4045
        %4104 = vmatprep.subr.mxu0 0.0
        %4105 = vmatpush1.msra.mxu0 %v4046
        %4106 = vmatprep.subr.mxu0 0.0
        %4107 = vmatpush1.msra.mxu0 %v4047
        %4108 = vmatprep.subr.mxu0 0.0
        %4109 = vmatpush1.msra.mxu0 %v4048
        %4110 = vmatprep.subr.mxu0 0.0
        %4111 = vmatpush1.msra.mxu0 %v4049
        %4112 = vmatprep.subr.mxu0 0.0
        %4113 = vmatpush1.msra.mxu0 %v4050
        %4114 = vmatprep.subr.mxu0 0.0
        %4115 = vmatpush1.msra.mxu0 %v4051
        %4116 = vmatprep.mubr.f32.mxu0 %v4019
        %4117 = vmatmul.mubr.f32.gmra.mrb[0].mxu0 %v4018
        %v4118 = vpop.f32.mrb[0].mxu0
        %v4119 = vadd.f32 %v3839, %v4118
        %v4120 = vpop.f32.mrb[0].mxu0
        %4121 = vdwg.mxu0
        %4122 = vst [vmem:[#allocation2] sm:$0xff] %v4119
        %p4123 = scmp.eq.s32.totalorder %s44, 3
        // Predicated region
        $region201: #{tpu_custom_call.1} parent=107 // pred_check
          %p4124 = pneg %p4123
        $region202: #{tpu_custom_call.1} parent=107 // pred_check_branch
          %4126 = sbr.rel (%p4124) target = $region204
        $region203: #{tpu_custom_call.1} parent=107 // pred_region
          %v4127 = vld [vmem:[#allocation28] sm:$0x1]
          %v4128 = vld [vmem:[#allocation29] sm:$0x1]
          %4129 = vadd.xlane.f32.xlu0 %v4119
          %v4130 = vpop.xlane.xlu0 %4129
          %v4131 = vmul.f32 %v4130, %v1840
          %v4132 = vsub.f32 %v4119, %v4131
          %v4133 = vmul.f32 %v4132, %v4132
          %4134 = vadd.xlane.f32.xlu0 %v4133
          %v4135 = vpop.xlane.xlu0 %4134
          %v4136 = vmul.f32 %v4135, %v1840
          %v4137 = vadd.f32 %v4136, 1e-05
          %v4138 = vrsqrt.pop %v4137
          %v4139 = vmul.f32 %v4132, %v4138
          %v4141 = vlaneseq
          %v4142 = vshrl.u32 %v4141, 7
          %v4143 = vsub.s32 0, %v4142
          %v4144 = vrot.slane %v4127, %v4143
          %v4146 = vmul.f32 %v4139, %v4144
          %v4148 = vlaneseq
          %v4149 = vshrl.u32 %v4148, 7
          %v4150 = vsub.s32 0, %v4149
          %v4151 = vrot.slane %v4128, %v4150
          %v4153 = vadd.f32 %v4146, %v4151
          %v4154 = vld [vmem:[#allocation31] sm:$0xff]
          %v4155 = vld [vmem:[#allocation31 + $0x8] sm:$0xff]
          %v4156 = vld [vmem:[#allocation31 + $0x10] sm:$0xff]
          %v4157 = vld [vmem:[#allocation31 + $0x18] sm:$0xff]
          %v4158 = vld [vmem:[#allocation31 + $0x20] sm:$0xff]
          %v4159 = vld [vmem:[#allocation31 + $0x28] sm:$0xff]
          %v4160 = vld [vmem:[#allocation31 + $0x30] sm:$0xff]
          %v4161 = vld [vmem:[#allocation31 + $0x38] sm:$0xff]
          %v4162 = vld [vmem:[#allocation31 + $0x40] sm:$0xff]
          %v4163 = vld [vmem:[#allocation31 + $0x48] sm:$0xff]
          %v4164 = vld [vmem:[#allocation31 + $0x50] sm:$0xff]
          %v4165 = vld [vmem:[#allocation31 + $0x58] sm:$0xff]
          %v4166 = vld [vmem:[#allocation31 + $0x60] sm:$0xff]
          %v4167 = vld [vmem:[#allocation31 + $0x68] sm:$0xff]
          %v4168 = vld [vmem:[#allocation31 + $0x70] sm:$0xff]
          %v4169 = vld [vmem:[#allocation31 + $0x78] sm:$0xff]
          %v4170 = vld [vmem:[#allocation32] sm:$0x1]
          %v4172 = vlaneseq
          %v4173 = vshrl.u32 %v4172, 7
          %v4174 = vsub.s32 0, %v4173
          %v4175 = vrot.slane %v4170, %v4174
          %4177 = vmatprep.subr.mxu0 0.0
          %4178 = vmatpush1.msra.mxu0 %v4154
          %4179 = vmatprep.subr.mxu0 0.0
          %4180 = vmatpush1.msra.mxu0 %v4155
          %4181 = vmatprep.subr.mxu0 0.0
          %4182 = vmatpush1.msra.mxu0 %v4156
          %4183 = vmatprep.subr.mxu0 0.0
          %4184 = vmatpush1.msra.mxu0 %v4157
          %4185 = vmatprep.subr.mxu0 0.0
          %4186 = vmatpush1.msra.mxu0 %v4158
          %4187 = vmatprep.subr.mxu0 0.0
          %4188 = vmatpush1.msra.mxu0 %v4159
          %4189 = vmatprep.subr.mxu0 0.0
          %4190 = vmatpush1.msra.mxu0 %v4160
          %4191 = vmatprep.subr.mxu0 0.0
          %4192 = vmatpush1.msra.mxu0 %v4161
          %4193 = vmatprep.subr.mxu0 0.0
          %4194 = vmatpush1.msra.mxu0 %v4162
          %4195 = vmatprep.subr.mxu0 0.0
          %4196 = vmatpush1.msra.mxu0 %v4163
          %4197 = vmatprep.subr.mxu0 0.0
          %4198 = vmatpush1.msra.mxu0 %v4164
          %4199 = vmatprep.subr.mxu0 0.0
          %4200 = vmatpush1.msra.mxu0 %v4165
          %4201 = vmatprep.subr.mxu0 0.0
          %4202 = vmatpush1.msra.mxu0 %v4166
          %4203 = vmatprep.subr.mxu0 0.0
          %4204 = vmatpush1.msra.mxu0 %v4167
          %4205 = vmatprep.subr.mxu0 0.0
          %4206 = vmatpush1.msra.mxu0 %v4168
          %4207 = vmatprep.subr.mxu0 0.0
          %4208 = vmatpush1.msra.mxu0 %v4169
          %4209 = vmatprep.subr.mxu0 0.0
          %4210 = vmatpush1.msra.mxu0 0.0
          %4211 = vmatprep.subr.mxu0 0.0
          %4212 = vmatpush1.msra.mxu0 0.0
          %4213 = vmatprep.subr.mxu0 0.0
          %4214 = vmatpush1.msra.mxu0 0.0
          %4215 = vmatprep.subr.mxu0 0.0
          %4216 = vmatpush1.msra.mxu0 0.0
          %4217 = vmatprep.subr.mxu0 0.0
          %4218 = vmatpush1.msra.mxu0 0.0
          %4219 = vmatprep.subr.mxu0 0.0
          %4220 = vmatpush1.msra.mxu0 0.0
          %4221 = vmatprep.subr.mxu0 0.0
          %4222 = vmatpush1.msra.mxu0 0.0
          %4223 = vmatprep.subr.mxu0 0.0
          %4224 = vmatpush1.msra.mxu0 0.0
          %4225 = vmatprep.subr.mxu0 0.0
          %4226 = vmatpush1.msra.mxu0 0.0
          %4227 = vmatprep.subr.mxu0 0.0
          %4228 = vmatpush1.msra.mxu0 0.0
          %4229 = vmatprep.subr.mxu0 0.0
          %4230 = vmatpush1.msra.mxu0 0.0
          %4231 = vmatprep.subr.mxu0 0.0
          %4232 = vmatpush1.msra.mxu0 0.0
          %4233 = vmatprep.subr.mxu0 0.0
          %4234 = vmatpush1.msra.mxu0 0.0
          %4235 = vmatprep.subr.mxu0 0.0
          %4236 = vmatpush1.msra.mxu0 0.0
          %4237 = vmatprep.subr.mxu0 0.0
          %4238 = vmatpush1.msra.mxu0 0.0
          %4239 = vmatprep.subr.mxu0 0.0
          %4240 = vmatpush1.msra.mxu0 0.0
          %4241 = vmatprep.mubr.f32.mxu0 0.0
          %4242 = vmatmul.mubr.f32.gmra.mrb[0].mxu0 %v4153
          %v4243 = vpop.f32.mrb[0].mxu0
          %v4244 = vadd.f32 %v4175, %v4243
          %v4245 = vpop.f32.mrb[0].mxu0
          %4246 = vdwg.mxu0
          %4247 = vst [vmem:[#allocation38] sm:$0xff] %v4244
        $region204: #{tpu_custom_call.1} parent=107 // pred_fallthru
          _
        // Predicated region
        $region205: #{tpu_custom_call.1} parent=107 // pred_check
          %p4248 = pneg %p539
        $region206: #{tpu_custom_call.1} parent=107 // pred_check_branch
          %4250 = sbr.rel (%p4248) target = $region208
        $region207: #{tpu_custom_call.1} parent=107 // pred_region
          %s4252 = ssub.s32 128, 128
          %4253 = vsyncadd [#allocation7], %s4252
          %s4255 = sshll.u32 [#allocation38], 4
          %s4256 = int_to_ptr.vmem [resolvable:$true] %s4255
          %4258 = dma.vmem_to_hbm [thread:$0]  %s4256, 128, %s22, [#allocation7]
        $region208: #{tpu_custom_call.1} parent=107 // pred_fallthru
          _
        // Predicated region
        $region209: #{tpu_custom_call.1} parent=107 // pred_check
          %p4259 = pneg %p539
        $region210: #{tpu_custom_call.1} parent=107 // pred_check_branch
          %4261 = sbr.rel (%p4259) target = $region212
        $region211: #{tpu_custom_call.1} parent=107 // pred_region
          %4262 = dma.done [#allocation7], 128
        $region212: #{tpu_custom_call.1} parent=107 // pred_fallthru
          _
      $region108: #{tpu_custom_call.1} parent=5 // pred_fallthru
        _
      %p4263 = scmp.le.s32.totalorder 2, %s39
      // Predicated region
      $region213: #{tpu_custom_call.1} parent=5 // pred_check
        %p4264 = pneg %p4263
      $region214: #{tpu_custom_call.1} parent=5 // pred_check_branch
        %4266 = sbr.rel (%p4264) target = $region216
      $region215: #{tpu_custom_call.1} parent=5 // pred_region
        %s4267 = ssub.s32 %s39, 2
      $region216: #{tpu_custom_call.1} parent=5 // pred_fallthru
        _
    $region6: #{tpu_custom_call.1} parent=1 // loop_footer
      %s43 = sadd.s32 1, %s39
    $region7: #{tpu_custom_call.1} parent=1 // loop_footer_branch
      %38 = sbr.rel target = $region3
    $region8: #{tpu_custom_call.1} parent=1 // loop_exit
      _
    %4268 = vsyncpa [#allocation6], 1
    %s4269 = scalar_lea.sflag [#allocation6], 1
    %4270 = vsyncpa %s4269, 1
    %4271 = vsyncpa [#allocation9], 1
    %4272 = vsyncpa [#allocation12], 1
    %4273 = vsyncpa [#allocation15], 1
    %4274 = vsyncpa [#allocation18], 1
    %4275 = vsyncpa [#allocation21], 1
    %4276 = vsyncpa [#allocation24], 1
    %4277 = vsyncpa [#allocation27], 1
    %4278 = vsyncpa [#allocation30], 1
    %4279 = vsyncpa [#allocation33], 1
    %4280 = vsyncpa [#allocation7], 1
    %s4281 = scalar_lea.sflag [#allocation7], 1
    %4282 = vsyncpa %s4281, 1

</llo_original>
